<compile_context>
chip_gen: v7x
topology: tpu7x:2x2x1
jax: 0.10.0
libtpu: 0.0.40
codegen_flags: <defaults>
</compile_context>

<pallas_src>
import functools
import math

import jax
import jax.numpy as jnp
from jax import lax
from jax.experimental import pallas as pl
from jax.experimental.pallas import tpu as pltpu  # noqa: F401  (TPU backend; no tpu-specific params needed at this size)

# ---- static problem configuration (small synthetic sizes) -------------------
BS = 2          # batch
N = 8           # number of points (full self-attention neighbourhood)
D = 32          # feature dim (c_in == c_out == dim)
H = 4           # n_heads
DH = D // H     # per-head dim
GD = 3          # group.lie_dim + 2*group.q_dim  (e.g. T(3): lie_dim=3, q_dim=0)
GDP = 8         # GD lane-padded (zeros) for the stacked weight-net matmul
HID = 16        # kernel_dim (weight-net hidden width)
HHID = H * HID  # stacked weight-net width (64)
LN_EPS = 1e-5
NEG_INF = -1e38

# ---- packed-weight row offsets -----------------------------------------------
# W32 buffer, shape (208, 32): six (32, 32) matrices + a 16-row vector block.
_WQ, _WK, _WV, _WOUT, _MW1, _MW2, _VEC = 0, 32, 64, 96, 128, 160, 192
_W32_ROWS = 208
# rows inside the (16, 32) vector block
_LN1G, _LN1B, _BQ, _BK, _BV, _BOUT, _LN2G, _LN2B, _MB1, _MB2 = range(10)
# W64 buffer, shape (80, 64): head-stacked location weight-net.
_WN1, _WN2, _MISC = 0, 8, 72
_W64_ROWS = 80
# rows inside the (8, 64) misc block
_B1, _B2, _WN3, _B3 = 0, 1, 2, 6


def _swish(x):
    return x * jax.nn.sigmoid(x)


def _layernorm(x, gamma, beta):
    mu = jnp.mean(x, axis=-1, keepdims=True)
    var = jnp.mean((x - mu) ** 2, axis=-1, keepdims=True)
    return (x - mu) * lax.rsqrt(var + LN_EPS) * gamma + beta


# ----------------------------- Pallas kernel ---------------------------------
def _block_kernel(x_ref, g_ref, maskadd_ref, w32_ref, w64_ref, out_ref,
                  *, bs, n, d, heads, dh, hid):
    hhid = heads * hid

    # ---- packed weights (2 buffers instead of ~26 tiny operands) ----
    wq = w32_ref[_WQ:_WQ + d, :]
    wk = w32_ref[_WK:_WK + d, :]
    wv = w32_ref[_WV:_WV + d, :]
    wout = w32_ref[_WOUT:_WOUT + d, :]
    mw1 = w32_ref[_MW1:_MW1 + d, :]
    mw2 = w32_ref[_MW2:_MW2 + d, :]
    vecs = w32_ref[_VEC:_VEC + 16, :]                 # (16, 32) bias / LN block
    ln1_g, ln1_b = vecs[_LN1G:_LN1G + 1, :], vecs[_LN1B:_LN1B + 1, :]
    bq, bk, bv = vecs[_BQ:_BQ + 1, :], vecs[_BK:_BK + 1, :], vecs[_BV:_BV + 1, :]
    bout = vecs[_BOUT:_BOUT + 1, :]
    ln2_g, ln2_b = vecs[_LN2G:_LN2G + 1, :], vecs[_LN2B:_LN2B + 1, :]
    mb1, mb2 = vecs[_MB1:_MB1 + 1, :], vecs[_MB2:_MB2 + 1, :]

    wn1 = w64_ref[_WN1:_WN1 + GDP, :]                 # (8, 64)   rows >= GD zero
    wn2 = w64_ref[_WN2:_WN2 + hhid, :]                # (64, 64)  block-diagonal
    misc = w64_ref[_MISC:_MISC + 8, :]                # (8, 64)
    b1 = misc[_B1:_B1 + 1, :]
    b2 = misc[_B2:_B2 + 1, :]
    wn3t = misc[_WN3:_WN3 + heads, :]                 # (H, 64)   head-block sparse
    b3 = misc[_B3:_B3 + 1, 0:heads]                   # (1, H)

    x = x_ref[...]                                    # (BS*N, D) residual stream

    # ---- attention branch: pre-LayerNorm (ln_ema) + fused full-width Q/K/V ----
    xn = _layernorm(x, ln1_g, ln1_b)
    q = jnp.dot(xn, wq, preferred_element_type=jnp.float32) + bq     # (BS*N, D)
    k = jnp.dot(xn, wk, preferred_element_type=jnp.float32) + bk
    v = jnp.dot(xn, wv, preferred_element_type=jnp.float32) + bv

    # head-major relayout: (BS*N, D) -> (H*BS, N, DH) via static lane slices,
    # a safe sublane split and a leading-axis concat (no transposes).
    def head_major(t):
        return jnp.concatenate(
            [t[:, h_ * dh:(h_ + 1) * dh].reshape(bs, n, dh) for h_ in range(heads)],
            axis=0)

    qh = head_major(q)                                # (H*BS, N, DH)
    kh = head_major(k)
    vh = head_major(v)

    # ---- location weight-net, stacked over heads: one MXU matmul per layer ----
    g = g_ref[...]                                                    # (BS*N*N, 8)
    h1 = _swish(jnp.dot(g, wn1, preferred_element_type=jnp.float32) + b1)
    h2 = _swish(jnp.dot(h1, wn2, preferred_element_type=jnp.float32) + b2)
    loc_pre = lax.dot_general(h2, wn3t, (((1,), (1,)), ((), ())),
                              preferred_element_type=jnp.float32)     # (BS*N*N, H)
    # additive key mask (0 / -1e38), hoisted: added once to the weight-net output
    loc = _swish(loc_pre + b3) + maskadd_ref[...]                     # (BS*N*N, H)
    loc4 = loc.reshape(bs * n, n, heads)              # ((b,q) rows, k, h lanes)
    # per-head bias via static lane slices -> (H*BS, N, N) matching (h, b) order
    loc_b = jnp.concatenate(
        [loc4[:, :, h_].reshape(bs, n, n) for h_ in range(heads)], axis=0)

    # ---- batched attention over the merged (head, batch) axis ----
    scale = 1.0 / math.sqrt(d / heads)  # SumKernel: dot-product / sqrt(c_in / n_heads)
    dots = jnp.einsum('bqd,bkd->bqk', qh, kh,
                      preferred_element_type=jnp.float32)             # (H*BS, N, N)
    logits = dots * scale + loc_b
    m = jnp.max(logits, axis=-1, keepdims=True)
    e = jnp.exp(logits - m)
    s = jnp.sum(e, axis=-1, keepdims=True)
    attn = e / s                                      # exact softmax normalisation
    ov = jnp.einsum('bqk,bkd->bqd', attn, vh,
                    preferred_element_type=jnp.float32)               # (H*BS, N, DH)

    # merge heads back onto the lane axis and do ONE output projection
    ov_flat = jnp.concatenate(
        [ov[h_ * bs:(h_ + 1) * bs].reshape(bs * n, dh) for h_ in range(heads)],
        axis=-1)                                                      # (BS*N, D)
    x1 = x + jnp.dot(ov_flat, wout, preferred_element_type=jnp.float32) + bout

    # ---- MLP branch: pre-LayerNorm (ln_mlp) + 2-layer swish MLP ----
    x1n = _layernorm(x1, ln2_g, ln2_b)
    hdn = _swish(jnp.dot(x1n, mw1, preferred_element_type=jnp.float32) + mb1)
    mlp = jnp.dot(hdn, mw2, preferred_element_type=jnp.float32) + mb2
    out_ref[...] = x1 + mlp                           # residual 2


# ------------------------------ wrapper ---------------------------------------
def _pack_weights(params):
    d, heads, dh, hid, gd = D, H, DH, HID, GD
    hhid = heads * hid

    def row(vec):
        return vec.reshape(1, d)

    w32 = jnp.concatenate(
        [params["wq"], params["wk"], params["wv"], params["wout"],
         params["mw1"], params["mw2"],
         row(params["ln1_g"]), row(params["ln1_b"]),
         row(params["bq"]), row(params["bk"]), row(params["bv"]), row(params["bout"]),
         row(params["ln2_g"]), row(params["ln2_b"]),
         row(params["mb1"]), row(params["mb2"]),
         jnp.zeros((6, d), jnp.float32)],
        axis=0).astype(jnp.float32)                                   # (208, 32)

    # head-stacked location weight-net
    wn1s = params["wn1_w"].transpose(1, 0, 2).reshape(gd, hhid)       # (GD, H*HID)
    wn1p = jnp.zeros((GDP, hhid), jnp.float32).at[:gd].set(wn1s)
    wn2bd = jnp.zeros((hhid, hhid), jnp.float32)
    wn3t = jnp.zeros((heads, hhid), jnp.float32)
    for h_ in range(heads):
        blk = slice(h_ * hid, (h_ + 1) * hid)
        wn2bd = wn2bd.at[blk, blk].set(params["wn2_w"][h_])
        wn3t = wn3t.at[h_, blk].set(params["wn3_w"][h_])
    b3 = jnp.zeros((1, hhid), jnp.float32).at[0, :heads].set(params["wn3_b"])
    w64 = jnp.concatenate(
        [wn1p, wn2bd,
         params["wn1_b"].reshape(1, hhid), params["wn2_b"].reshape(1, hhid),
         wn3t, b3, jnp.zeros((1, hhid), jnp.float32)],
        axis=0).astype(jnp.float32)                                   # (80, 64)

    assert w32.shape == (_W32_ROWS, d) and w64.shape == (_W64_ROWS, hhid)
    return w32, w64


def equivariant_transformer_block(pairwise_g, coset_functions, mask, params):
    bs, n, d = coset_functions.shape
    gd = pairwise_g.shape[-1]

    x_flat = coset_functions.reshape(bs * n, d).astype(jnp.float32)
    g_flat = pairwise_g.reshape(bs * n * n, gd).astype(jnp.float32)
    g_flat = jnp.pad(g_flat, ((0, 0), (0, GDP - gd)))        # lane-pad GD -> 8
    # additive key mask, broadcast over query rows, as a (BS*N*N, 1) column
    key_mask = jnp.broadcast_to((mask > 0.5)[:, None, :], (bs, n, n))
    mask_add = jnp.where(key_mask, 0.0, NEG_INF).astype(jnp.float32).reshape(bs * n * n, 1)
    w32, w64 = _pack_weights(params)

    kernel = functools.partial(_block_kernel, bs=bs, n=n, d=d,
                               heads=H, dh=DH, hid=HID)

    # Whole problem (<60 KiB) in a single gridless invocation: all 5 operands
    # are whole-array VMEM blocks, weights packed into two contiguous buffers.
    out_flat = pl.pallas_call(
        kernel,
        out_shape=jax.ShapeDtypeStruct((bs * n, d), jnp.float32),
    )(x_flat, g_flat, mask_add, w32, w64)

    return pairwise_g, out_flat.reshape(bs, n, d), mask


# -------------------------- deterministic parameters --------------------------
def init_params(key):
    ks = jax.random.split(key, 16)

    def w(k, shape, fan_in):
        return jax.random.normal(k, shape, jnp.float32) / jnp.sqrt(float(fan_in))

    def b(k, shape):
        return 0.1 * jax.random.normal(k, shape, jnp.float32)

    return dict(
        ln1_g=jnp.ones((D,), jnp.float32), ln1_b=jnp.zeros((D,), jnp.float32),
        wq=w(ks[0], (D, D), D), bq=b(ks[1], (D,)),          # DotProductKernel q
        wk=w(ks[2], (D, D), D), bk=b(ks[3], (D,)),          # DotProductKernel k
        wv=w(ks[4], (D, D), D), bv=b(ks[5], (D,)),          # input_linear (values)
        wout=w(ks[6], (D, D), D), bout=b(ks[7], (D,)),      # output_linear
        wn1_w=w(ks[8], (H, GD, HID), GD), wn1_b=b(ks[9], (H, HID)),
        wn2_w=w(ks[10], (H, HID, HID), HID), wn2_b=b(ks[11], (H, HID)),
        wn3_w=w(ks[12], (H, HID), HID), wn3_b=b(ks[13], (H,)),
        ln2_g=jnp.ones((D,), jnp.float32), ln2_b=jnp.zeros((D,), jnp.float32),
        mw1=w(ks[14], (D, D), D), mb1=jnp.zeros((D,), jnp.float32),
        mw2=w(ks[15], (D, D), D), mb2=jnp.zeros((D,), jnp.float32),
    )


# ------------------------- pure-JAX reference (check) --------------------------
def reference_block(x, g4, mask, p):
    bs, n, d = x.shape

    def ln(z, gam, bet):
        mu = z.mean(-1, keepdims=True)
        var = ((z - mu) ** 2).mean(-1, keepdims=True)
        return (z - mu) / jnp.sqrt(var + LN_EPS) * gam + bet

    xn = ln(x, p["ln1_g"], p["ln1_b"])
    q = (xn @ p["wq"] + p["bq"]).reshape(bs, n, H, DH)
    k = (xn @ p["wk"] + p["bk"]).reshape(bs, n, H, DH)
    v = (xn @ p["wv"] + p["bv"]).reshape(bs, n, H, DH)
    dots = jnp.einsum("bihd,bjhd->bijh", q, k) / math.sqrt(d / H)
    l1 = _swish(jnp.einsum("bijg,hgk->bijhk", g4, p["wn1_w"]) + p["wn1_b"])
    l2 = _swish(jnp.einsum("bijhk,hkl->bijhl", l1, p["wn2_w"]) + p["wn2_b"])
    loc = _swish(jnp.einsum("bijhk,hk->bijh", l2, p["wn3_w"]) + p["wn3_b"])
    logits = jnp.where(mask[:, None, :, None] > 0.5, loc + dots, NEG_INF)
    attn = jax.nn.softmax(logits, axis=2)
    out = jnp.einsum("bijh,bjhd->bihd", attn, v).reshape(bs, n, d)
    x1 = x + out @ p["wout"] + p["bout"]
    x1n = ln(x1, p["ln2_g"], p["ln2_b"])
    mlp = _swish(x1n @ p["mw1"] + p["mb1"]) @ p["mw2"] + p["mb2"]
    return x1 + mlp


if __name__ == "__main__":
    key = jax.random.PRNGKey(0)
    kx, kg, kp = jax.random.split(key, 3)
    coset_functions = jax.random.normal(kx, (BS, N, D), jnp.float32)
    pairwise_g = jax.random.normal(kg, (BS, N, N, GD), jnp.float32)
    mask = jnp.stack([jnp.ones((N,), jnp.float32),
                      (jnp.arange(N) < 6).astype(jnp.float32)])   # (BS, N)
    params = init_params(kp)

    _, y, _ = equivariant_transformer_block(pairwise_g, coset_functions, mask, params)
    y = jax.block_until_ready(y)

    y_ref = reference_block(coset_functions, pairwise_g, mask, params)
    err = float(jnp.max(jnp.abs(y - y_ref)))
    # exact softmax normalisation in-kernel -> tight tolerance again
    assert y.shape == (BS, N, D) and err < 1e-4, f"mismatch vs reference: {err}"
    print("KERNEL_OK")
</pallas_src>

<mosaic_0001>
module attributes {stable_mosaic.version = 11 : i64} {
  func.func @_block_kernel(%arg0: memref<16x32xf32, #tpu.memory_space<vmem>>, %arg1: memref<128x8xf32, #tpu.memory_space<vmem>>, %arg2: memref<128x1xf32, #tpu.memory_space<vmem>>, %arg3: memref<208x32xf32, #tpu.memory_space<vmem>>, %arg4: memref<80x64xf32, #tpu.memory_space<vmem>>, %arg5: memref<16x32xf32, #tpu.memory_space<vmem>>) attributes {dimension_semantics = [], scalar_prefetch = 0 : i64, scratch_operands = 0 : i64, tpu.core_type = #tpu.core_type<tc>} {
    %c0 = arith.constant 0 : index
    %c0_0 = arith.constant 0 : index
    %0 = vector.load %arg3[%c0, %c0_0] : memref<208x32xf32, #tpu.memory_space<vmem>>, vector<32x32xf32>
    %c32 = arith.constant 32 : index
    %c0_1 = arith.constant 0 : index
    %1 = vector.load %arg3[%c32, %c0_1] : memref<208x32xf32, #tpu.memory_space<vmem>>, vector<32x32xf32>
    %c64 = arith.constant 64 : index
    %c0_2 = arith.constant 0 : index
    %2 = vector.load %arg3[%c64, %c0_2] : memref<208x32xf32, #tpu.memory_space<vmem>>, vector<32x32xf32>
    %c96 = arith.constant 96 : index
    %c0_3 = arith.constant 0 : index
    %3 = vector.load %arg3[%c96, %c0_3] : memref<208x32xf32, #tpu.memory_space<vmem>>, vector<32x32xf32>
    %c128 = arith.constant 128 : index
    %c0_4 = arith.constant 0 : index
    %4 = vector.load %arg3[%c128, %c0_4] : memref<208x32xf32, #tpu.memory_space<vmem>>, vector<32x32xf32>
    %c160 = arith.constant 160 : index
    %c0_5 = arith.constant 0 : index
    %5 = vector.load %arg3[%c160, %c0_5] : memref<208x32xf32, #tpu.memory_space<vmem>>, vector<32x32xf32>
    %c192 = arith.constant 192 : index
    %c0_6 = arith.constant 0 : index
    %6 = vector.load %arg3[%c192, %c0_6] : memref<208x32xf32, #tpu.memory_space<vmem>>, vector<16x32xf32>
    %7 = vector.extract_strided_slice %6 {offsets = [0, 0], sizes = [1, 32], strides = [1, 1]} : vector<16x32xf32> to vector<1x32xf32>
    %8 = vector.extract_strided_slice %6 {offsets = [1, 0], sizes = [1, 32], strides = [1, 1]} : vector<16x32xf32> to vector<1x32xf32>
    %9 = vector.extract_strided_slice %6 {offsets = [2, 0], sizes = [1, 32], strides = [1, 1]} : vector<16x32xf32> to vector<1x32xf32>
    %10 = vector.extract_strided_slice %6 {offsets = [3, 0], sizes = [1, 32], strides = [1, 1]} : vector<16x32xf32> to vector<1x32xf32>
    %11 = vector.extract_strided_slice %6 {offsets = [4, 0], sizes = [1, 32], strides = [1, 1]} : vector<16x32xf32> to vector<1x32xf32>
    %12 = vector.extract_strided_slice %6 {offsets = [5, 0], sizes = [1, 32], strides = [1, 1]} : vector<16x32xf32> to vector<1x32xf32>
    %13 = vector.extract_strided_slice %6 {offsets = [6, 0], sizes = [1, 32], strides = [1, 1]} : vector<16x32xf32> to vector<1x32xf32>
    %14 = vector.extract_strided_slice %6 {offsets = [7, 0], sizes = [1, 32], strides = [1, 1]} : vector<16x32xf32> to vector<1x32xf32>
    %15 = vector.extract_strided_slice %6 {offsets = [8, 0], sizes = [1, 32], strides = [1, 1]} : vector<16x32xf32> to vector<1x32xf32>
    %16 = vector.extract_strided_slice %6 {offsets = [9, 0], sizes = [1, 32], strides = [1, 1]} : vector<16x32xf32> to vector<1x32xf32>
    %c0_7 = arith.constant 0 : index
    %c0_8 = arith.constant 0 : index
    %17 = vector.load %arg4[%c0_7, %c0_8] : memref<80x64xf32, #tpu.memory_space<vmem>>, vector<8x64xf32>
    %c8 = arith.constant 8 : index
    %c0_9 = arith.constant 0 : index
    %18 = vector.load %arg4[%c8, %c0_9] : memref<80x64xf32, #tpu.memory_space<vmem>>, vector<64x64xf32>
    %c72 = arith.constant 72 : index
    %c0_10 = arith.constant 0 : index
    %19 = vector.load %arg4[%c72, %c0_10] : memref<80x64xf32, #tpu.memory_space<vmem>>, vector<8x64xf32>
    %20 = vector.extract_strided_slice %19 {offsets = [0, 0], sizes = [1, 64], strides = [1, 1]} : vector<8x64xf32> to vector<1x64xf32>
    %21 = vector.extract_strided_slice %19 {offsets = [1, 0], sizes = [1, 64], strides = [1, 1]} : vector<8x64xf32> to vector<1x64xf32>
    %22 = vector.extract_strided_slice %19 {offsets = [2, 0], sizes = [4, 64], strides = [1, 1]} : vector<8x64xf32> to vector<4x64xf32>
    %23 = vector.extract_strided_slice %19 {offsets = [6, 0], sizes = [1, 4], strides = [1, 1]} : vector<8x64xf32> to vector<1x4xf32>
    %c0_11 = arith.constant 0 : index
    %c0_12 = arith.constant 0 : index
    %24 = vector.load %arg0[%c0_11, %c0_12] : memref<16x32xf32, #tpu.memory_space<vmem>>, vector<16x32xf32>
    %cst = arith.constant dense<0.000000e+00> : vector<16xf32>
    %25 = vector.multi_reduction <add>, %24, %cst [1] : vector<16x32xf32> to vector<16xf32>
    %26 = vector.shape_cast %25 : vector<16xf32> to vector<16x1xf32>
    %cst_13 = arith.constant 3.200000e+01 : f32
    %27 = vector.broadcast %cst_13 : f32 to vector<16x1xf32>
    %28 = arith.divf %26, %27 : vector<16x1xf32>
    %29 = vector.broadcast %28 : vector<16x1xf32> to vector<16x32xf32>
    %30 = arith.subf %24, %29 : vector<16x32xf32>
    %31 = arith.mulf %30, %30 : vector<16x32xf32>
    %cst_14 = arith.constant dense<0.000000e+00> : vector<16xf32>
    %32 = vector.multi_reduction <add>, %31, %cst_14 [1] : vector<16x32xf32> to vector<16xf32>
    %33 = vector.shape_cast %32 : vector<16xf32> to vector<16x1xf32>
    %cst_15 = arith.constant 3.200000e+01 : f32
    %34 = vector.broadcast %cst_15 : f32 to vector<16x1xf32>
    %35 = arith.divf %33, %34 : vector<16x1xf32>
    %36 = vector.broadcast %28 : vector<16x1xf32> to vector<16x32xf32>
    %37 = arith.subf %24, %36 : vector<16x32xf32>
    %cst_16 = arith.constant 9.99999974E-6 : f32
    %38 = vector.broadcast %cst_16 : f32 to vector<16x1xf32>
    %39 = arith.addf %35, %38 : vector<16x1xf32>
    %40 = math.rsqrt %39 : vector<16x1xf32>
    %41 = vector.broadcast %40 : vector<16x1xf32> to vector<16x32xf32>
    %42 = arith.mulf %37, %41 : vector<16x32xf32>
    %43 = vector.broadcast %7 : vector<1x32xf32> to vector<16x32xf32>
    %44 = arith.mulf %42, %43 : vector<16x32xf32>
    %45 = vector.broadcast %8 : vector<1x32xf32> to vector<16x32xf32>
    %46 = arith.addf %44, %45 : vector<16x32xf32>
    %cst_17 = arith.constant dense<0.000000e+00> : vector<16x32xf32>
    %47 = tpu.matmul %46, %0, %cst_17 {dimension_numbers = #tpu.dot_dimension_numbers<[1], [0], [0], [1], [0, 0, 1, 1], [], []>} : vector<16x32xf32>, vector<32x32xf32>, vector<16x32xf32> -> vector<16x32xf32>
    %48 = vector.broadcast %9 : vector<1x32xf32> to vector<16x32xf32>
    %49 = arith.addf %47, %48 : vector<16x32xf32>
    %cst_18 = arith.constant dense<0.000000e+00> : vector<16x32xf32>
    %50 = tpu.matmul %46, %1, %cst_18 {dimension_numbers = #tpu.dot_dimension_numbers<[1], [0], [0], [1], [0, 0, 1, 1], [], []>} : vector<16x32xf32>, vector<32x32xf32>, vector<16x32xf32> -> vector<16x32xf32>
    %51 = vector.broadcast %10 : vector<1x32xf32> to vector<16x32xf32>
    %52 = arith.addf %50, %51 : vector<16x32xf32>
    %cst_19 = arith.constant dense<0.000000e+00> : vector<16x32xf32>
    %53 = tpu.matmul %46, %2, %cst_19 {dimension_numbers = #tpu.dot_dimension_numbers<[1], [0], [0], [1], [0, 0, 1, 1], [], []>} : vector<16x32xf32>, vector<32x32xf32>, vector<16x32xf32> -> vector<16x32xf32>
    %54 = vector.broadcast %11 : vector<1x32xf32> to vector<16x32xf32>
    %55 = arith.addf %53, %54 : vector<16x32xf32>
    %56 = vector.extract_strided_slice %49 {offsets = [0, 0], sizes = [16, 8], strides = [1, 1]} : vector<16x32xf32> to vector<16x8xf32>
    %57 = vector.shape_cast %56 : vector<16x8xf32> to vector<2x8x8xf32>
    %58 = vector.extract_strided_slice %49 {offsets = [0, 8], sizes = [16, 8], strides = [1, 1]} : vector<16x32xf32> to vector<16x8xf32>
    %59 = vector.shape_cast %58 : vector<16x8xf32> to vector<2x8x8xf32>
    %60 = vector.extract_strided_slice %49 {offsets = [0, 16], sizes = [16, 8], strides = [1, 1]} : vector<16x32xf32> to vector<16x8xf32>
    %61 = vector.shape_cast %60 : vector<16x8xf32> to vector<2x8x8xf32>
    %62 = vector.extract_strided_slice %49 {offsets = [0, 24], sizes = [16, 8], strides = [1, 1]} : vector<16x32xf32> to vector<16x8xf32>
    %63 = vector.shape_cast %62 : vector<16x8xf32> to vector<2x8x8xf32>
    %64 = tpu.concatenate %57, %59, %61, %63 in 0 : vector<2x8x8xf32>, vector<2x8x8xf32>, vector<2x8x8xf32>, vector<2x8x8xf32> -> vector<8x8x8xf32>
    %65 = vector.extract_strided_slice %52 {offsets = [0, 0], sizes = [16, 8], strides = [1, 1]} : vector<16x32xf32> to vector<16x8xf32>
    %66 = vector.shape_cast %65 : vector<16x8xf32> to vector<2x8x8xf32>
    %67 = vector.extract_strided_slice %52 {offsets = [0, 8], sizes = [16, 8], strides = [1, 1]} : vector<16x32xf32> to vector<16x8xf32>
    %68 = vector.shape_cast %67 : vector<16x8xf32> to vector<2x8x8xf32>
    %69 = vector.extract_strided_slice %52 {offsets = [0, 16], sizes = [16, 8], strides = [1, 1]} : vector<16x32xf32> to vector<16x8xf32>
    %70 = vector.shape_cast %69 : vector<16x8xf32> to vector<2x8x8xf32>
    %71 = vector.extract_strided_slice %52 {offsets = [0, 24], sizes = [16, 8], strides = [1, 1]} : vector<16x32xf32> to vector<16x8xf32>
    %72 = vector.shape_cast %71 : vector<16x8xf32> to vector<2x8x8xf32>
    %73 = tpu.concatenate %66, %68, %70, %72 in 0 : vector<2x8x8xf32>, vector<2x8x8xf32>, vector<2x8x8xf32>, vector<2x8x8xf32> -> vector<8x8x8xf32>
    %74 = vector.extract_strided_slice %55 {offsets = [0, 0], sizes = [16, 8], strides = [1, 1]} : vector<16x32xf32> to vector<16x8xf32>
    %75 = vector.shape_cast %74 : vector<16x8xf32> to vector<2x8x8xf32>
    %76 = vector.extract_strided_slice %55 {offsets = [0, 8], sizes = [16, 8], strides = [1, 1]} : vector<16x32xf32> to vector<16x8xf32>
    %77 = vector.shape_cast %76 : vector<16x8xf32> to vector<2x8x8xf32>
    %78 = vector.extract_strided_slice %55 {offsets = [0, 16], sizes = [16, 8], strides = [1, 1]} : vector<16x32xf32> to vector<16x8xf32>
    %79 = vector.shape_cast %78 : vector<16x8xf32> to vector<2x8x8xf32>
    %80 = vector.extract_strided_slice %55 {offsets = [0, 24], sizes = [16, 8], strides = [1, 1]} : vector<16x32xf32> to vector<16x8xf32>
    %81 = vector.shape_cast %80 : vector<16x8xf32> to vector<2x8x8xf32>
    %82 = tpu.concatenate %75, %77, %79, %81 in 0 : vector<2x8x8xf32>, vector<2x8x8xf32>, vector<2x8x8xf32>, vector<2x8x8xf32> -> vector<8x8x8xf32>
    %c0_20 = arith.constant 0 : index
    %c0_21 = arith.constant 0 : index
    %83 = vector.load %arg1[%c0_20, %c0_21] : memref<128x8xf32, #tpu.memory_space<vmem>>, vector<128x8xf32>
    %cst_22 = arith.constant dense<0.000000e+00> : vector<128x64xf32>
    %84 = tpu.matmul %83, %17, %cst_22 {dimension_numbers = #tpu.dot_dimension_numbers<[1], [0], [0], [1], [0, 0, 1, 1], [], []>} : vector<128x8xf32>, vector<8x64xf32>, vector<128x64xf32> -> vector<128x64xf32>
    %85 = vector.broadcast %20 : vector<1x64xf32> to vector<128x64xf32>
    %86 = arith.addf %84, %85 : vector<128x64xf32>
    %87 = arith.negf %86 : vector<128x64xf32>
    %88 = math.exp %87 : vector<128x64xf32>
    %cst_23 = arith.constant 1.000000e+00 : f32
    %89 = vector.broadcast %cst_23 : f32 to vector<128x64xf32>
    %90 = arith.addf %89, %88 : vector<128x64xf32>
    %91 = arith.divf %89, %90 : vector<128x64xf32>
    %92 = arith.mulf %86, %91 : vector<128x64xf32>
    %cst_24 = arith.constant dense<0.000000e+00> : vector<128x64xf32>
    %93 = tpu.matmul %92, %18, %cst_24 {dimension_numbers = #tpu.dot_dimension_numbers<[1], [0], [0], [1], [0, 0, 1, 1], [], []>} : vector<128x64xf32>, vector<64x64xf32>, vector<128x64xf32> -> vector<128x64xf32>
    %94 = vector.broadcast %21 : vector<1x64xf32> to vector<128x64xf32>
    %95 = arith.addf %93, %94 : vector<128x64xf32>
    %96 = arith.negf %95 : vector<128x64xf32>
    %97 = math.exp %96 : vector<128x64xf32>
    %cst_25 = arith.constant 1.000000e+00 : f32
    %98 = vector.broadcast %cst_25 : f32 to vector<128x64xf32>
    %99 = arith.addf %98, %97 : vector<128x64xf32>
    %100 = arith.divf %98, %99 : vector<128x64xf32>
    %101 = arith.mulf %95, %100 : vector<128x64xf32>
    %cst_26 = arith.constant dense<0.000000e+00> : vector<128x4xf32>
    %102 = tpu.matmul %101, %22, %cst_26 {dimension_numbers = #tpu.dot_dimension_numbers<[1], [1], [0], [0], [0, 0, 1, 0], [], []>} : vector<128x64xf32>, vector<4x64xf32>, vector<128x4xf32> -> vector<128x4xf32>
    %103 = vector.broadcast %23 : vector<1x4xf32> to vector<128x4xf32>
    %104 = arith.addf %102, %103 : vector<128x4xf32>
    %105 = arith.negf %104 : vector<128x4xf32>
    %106 = math.exp %105 : vector<128x4xf32>
    %cst_27 = arith.constant 1.000000e+00 : f32
    %107 = vector.broadcast %cst_27 : f32 to vector<128x4xf32>
    %108 = arith.addf %107, %106 : vector<128x4xf32>
    %109 = arith.divf %107, %108 : vector<128x4xf32>
    %110 = arith.mulf %104, %109 : vector<128x4xf32>
    %c0_28 = arith.constant 0 : index
    %c0_29 = arith.constant 0 : index
    %111 = vector.load %arg2[%c0_28, %c0_29] : memref<128x1xf32, #tpu.memory_space<vmem>>, vector<128x1xf32>
    %112 = vector.broadcast %111 : vector<128x1xf32> to vector<128x4xf32>
    %113 = arith.addf %110, %112 : vector<128x4xf32>
    %114 = vector.shape_cast %113 : vector<128x4xf32> to vector<16x8x4xf32>
    %115 = vector.extract_strided_slice %114 {offsets = [0, 0, 0], sizes = [16, 8, 1], strides = [1, 1, 1]} : vector<16x8x4xf32> to vector<16x8x1xf32>
    %116 = vector.shape_cast %115 : vector<16x8x1xf32> to vector<16x8xf32>
    %117 = vector.shape_cast %116 : vector<16x8xf32> to vector<2x8x8xf32>
    %118 = vector.extract_strided_slice %114 {offsets = [0, 0, 1], sizes = [16, 8, 1], strides = [1, 1, 1]} : vector<16x8x4xf32> to vector<16x8x1xf32>
    %119 = vector.shape_cast %118 : vector<16x8x1xf32> to vector<16x8xf32>
    %120 = vector.shape_cast %119 : vector<16x8xf32> to vector<2x8x8xf32>
    %121 = vector.extract_strided_slice %114 {offsets = [0, 0, 2], sizes = [16, 8, 1], strides = [1, 1, 1]} : vector<16x8x4xf32> to vector<16x8x1xf32>
    %122 = vector.shape_cast %121 : vector<16x8x1xf32> to vector<16x8xf32>
    %123 = vector.shape_cast %122 : vector<16x8xf32> to vector<2x8x8xf32>
    %124 = vector.extract_strided_slice %114 {offsets = [0, 0, 3], sizes = [16, 8, 1], strides = [1, 1, 1]} : vector<16x8x4xf32> to vector<16x8x1xf32>
    %125 = vector.shape_cast %124 : vector<16x8x1xf32> to vector<16x8xf32>
    %126 = vector.shape_cast %125 : vector<16x8xf32> to vector<2x8x8xf32>
    %127 = tpu.concatenate %117, %120, %123, %126 in 0 : vector<2x8x8xf32>, vector<2x8x8xf32>, vector<2x8x8xf32>, vector<2x8x8xf32> -> vector<8x8x8xf32>
    "tpu.trace_start"() <{level = 10 : i32, message = "bqd,bkd->bqk"}> : () -> ()
    %cst_30 = arith.constant dense<0.000000e+00> : vector<8x8x8xf32>
    %128 = tpu.matmul %64, %73, %cst_30 {dimension_numbers = #tpu.dot_dimension_numbers<[2], [2], [1], [1], [0, 0, 0, 1, 1, 1], [0], [0]>} : vector<8x8x8xf32>, vector<8x8x8xf32>, vector<8x8x8xf32> -> vector<8x8x8xf32>
    "tpu.trace_stop"() : () -> ()
    %cst_31 = arith.constant 0.353553385 : f32
    %129 = vector.broadcast %cst_31 : f32 to vector<8x8x8xf32>
    %130 = arith.mulf %128, %129 : vector<8x8x8xf32>
    %131 = arith.addf %130, %127 : vector<8x8x8xf32>
    %cst_32 = arith.constant dense<0xFF800000> : vector<8x8xf32>
    %132 = vector.multi_reduction <maximumf>, %131, %cst_32 [2] : vector<8x8x8xf32> to vector<8x8xf32>
    %133 = vector.shape_cast %132 : vector<8x8xf32> to vector<8x8x1xf32>
    %134 = vector.broadcast %133 : vector<8x8x1xf32> to vector<8x8x8xf32>
    %135 = arith.subf %131, %134 : vector<8x8x8xf32>
    %136 = math.exp %135 : vector<8x8x8xf32>
    %cst_33 = arith.constant dense<0.000000e+00> : vector<8x8xf32>
    %137 = vector.multi_reduction <add>, %136, %cst_33 [2] : vector<8x8x8xf32> to vector<8x8xf32>
    %138 = vector.shape_cast %137 : vector<8x8xf32> to vector<8x8x1xf32>
    %139 = vector.broadcast %138 : vector<8x8x1xf32> to vector<8x8x8xf32>
    %140 = arith.divf %136, %139 : vector<8x8x8xf32>
    "tpu.trace_start"() <{level = 10 : i32, message = "bqk,bkd->bqd"}> : () -> ()
    %cst_34 = arith.constant dense<0.000000e+00> : vector<8x8x8xf32>
    %141 = tpu.matmul %140, %82, %cst_34 {dimension_numbers = #tpu.dot_dimension_numbers<[2], [1], [1], [2], [0, 0, 0, 1, 1, 2], [0], [0]>} : vector<8x8x8xf32>, vector<8x8x8xf32>, vector<8x8x8xf32> -> vector<8x8x8xf32>
    "tpu.trace_stop"() : () -> ()
    %142 = vector.extract_strided_slice %141 {offsets = [0, 0, 0], sizes = [2, 8, 8], strides = [1, 1, 1]} : vector<8x8x8xf32> to vector<2x8x8xf32>
    %143 = vector.shape_cast %142 : vector<2x8x8xf32> to vector<16x8xf32>
    %144 = vector.extract_strided_slice %141 {offsets = [2, 0, 0], sizes = [2, 8, 8], strides = [1, 1, 1]} : vector<8x8x8xf32> to vector<2x8x8xf32>
    %145 = vector.shape_cast %144 : vector<2x8x8xf32> to vector<16x8xf32>
    %146 = vector.extract_strided_slice %141 {offsets = [4, 0, 0], sizes = [2, 8, 8], strides = [1, 1, 1]} : vector<8x8x8xf32> to vector<2x8x8xf32>
    %147 = vector.shape_cast %146 : vector<2x8x8xf32> to vector<16x8xf32>
    %148 = vector.extract_strided_slice %141 {offsets = [6, 0, 0], sizes = [2, 8, 8], strides = [1, 1, 1]} : vector<8x8x8xf32> to vector<2x8x8xf32>
    %149 = vector.shape_cast %148 : vector<2x8x8xf32> to vector<16x8xf32>
    %150 = tpu.concatenate %143, %145, %147, %149 in 1 : vector<16x8xf32>, vector<16x8xf32>, vector<16x8xf32>, vector<16x8xf32> -> vector<16x32xf32>
    %cst_35 = arith.constant dense<0.000000e+00> : vector<16x32xf32>
    %151 = tpu.matmul %150, %3, %cst_35 {dimension_numbers = #tpu.dot_dimension_numbers<[1], [0], [0], [1], [0, 0, 1, 1], [], []>} : vector<16x32xf32>, vector<32x32xf32>, vector<16x32xf32> -> vector<16x32xf32>
    %152 = arith.addf %24, %151 : vector<16x32xf32>
    %153 = vector.broadcast %12 : vector<1x32xf32> to vector<16x32xf32>
    %154 = arith.addf %152, %153 : vector<16x32xf32>
    %cst_36 = arith.constant dense<0.000000e+00> : vector<16xf32>
    %155 = vector.multi_reduction <add>, %154, %cst_36 [1] : vector<16x32xf32> to vector<16xf32>
    %156 = vector.shape_cast %155 : vector<16xf32> to vector<16x1xf32>
    %cst_37 = arith.constant 3.200000e+01 : f32
    %157 = vector.broadcast %cst_37 : f32 to vector<16x1xf32>
    %158 = arith.divf %156, %157 : vector<16x1xf32>
    %159 = vector.broadcast %158 : vector<16x1xf32> to vector<16x32xf32>
    %160 = arith.subf %154, %159 : vector<16x32xf32>
    %161 = arith.mulf %160, %160 : vector<16x32xf32>
    %cst_38 = arith.constant dense<0.000000e+00> : vector<16xf32>
    %162 = vector.multi_reduction <add>, %161, %cst_38 [1] : vector<16x32xf32> to vector<16xf32>
    %163 = vector.shape_cast %162 : vector<16xf32> to vector<16x1xf32>
    %cst_39 = arith.constant 3.200000e+01 : f32
    %164 = vector.broadcast %cst_39 : f32 to vector<16x1xf32>
    %165 = arith.divf %163, %164 : vector<16x1xf32>
    %166 = vector.broadcast %158 : vector<16x1xf32> to vector<16x32xf32>
    %167 = arith.subf %154, %166 : vector<16x32xf32>
    %cst_40 = arith.constant 9.99999974E-6 : f32
    %168 = vector.broadcast %cst_40 : f32 to vector<16x1xf32>
    %169 = arith.addf %165, %168 : vector<16x1xf32>
    %170 = math.rsqrt %169 : vector<16x1xf32>
    %171 = vector.broadcast %170 : vector<16x1xf32> to vector<16x32xf32>
    %172 = arith.mulf %167, %171 : vector<16x32xf32>
    %173 = vector.broadcast %13 : vector<1x32xf32> to vector<16x32xf32>
    %174 = arith.mulf %172, %173 : vector<16x32xf32>
    %175 = vector.broadcast %14 : vector<1x32xf32> to vector<16x32xf32>
    %176 = arith.addf %174, %175 : vector<16x32xf32>
    %cst_41 = arith.constant dense<0.000000e+00> : vector<16x32xf32>
    %177 = tpu.matmul %176, %4, %cst_41 {dimension_numbers = #tpu.dot_dimension_numbers<[1], [0], [0], [1], [0, 0, 1, 1], [], []>} : vector<16x32xf32>, vector<32x32xf32>, vector<16x32xf32> -> vector<16x32xf32>
    %178 = vector.broadcast %15 : vector<1x32xf32> to vector<16x32xf32>
    %179 = arith.addf %177, %178 : vector<16x32xf32>
    %180 = arith.negf %179 : vector<16x32xf32>
    %181 = math.exp %180 : vector<16x32xf32>
    %cst_42 = arith.constant 1.000000e+00 : f32
    %182 = vector.broadcast %cst_42 : f32 to vector<16x32xf32>
    %183 = arith.addf %182, %181 : vector<16x32xf32>
    %184 = arith.divf %182, %183 : vector<16x32xf32>
    %185 = arith.mulf %179, %184 : vector<16x32xf32>
    %cst_43 = arith.constant dense<0.000000e+00> : vector<16x32xf32>
    %186 = tpu.matmul %185, %5, %cst_43 {dimension_numbers = #tpu.dot_dimension_numbers<[1], [0], [0], [1], [0, 0, 1, 1], [], []>} : vector<16x32xf32>, vector<32x32xf32>, vector<16x32xf32> -> vector<16x32xf32>
    %187 = vector.broadcast %16 : vector<1x32xf32> to vector<16x32xf32>
    %188 = arith.addf %186, %187 : vector<16x32xf32>
    %189 = arith.addf %154, %188 : vector<16x32xf32>
    %c0_44 = arith.constant 0 : index
    %c0_45 = arith.constant 0 : index
    %190 = vector.load %arg5[%c0_44, %c0_45] : memref<16x32xf32, #tpu.memory_space<vmem>>, vector<16x32xf32>
    tpu.vector_store %arg5[%c0_44, %c0_45], %189 {strides = array<i32>} : memref<16x32xf32, #tpu.memory_space<vmem>>, vector<16x32xf32>,
    return
  }
}

</mosaic_0001>

<llo_original>
// kernel: tpu_custom_call.1
$region0: #{tpu_custom_call.1}
  #allocation0 [shape = 'u32[]', space=smem, size = 0x4, offset = 0x4, fixed_abs, tag = 'smem constant byte address 0x4 - core index']
  #allocation1 [shape = 'u32[144,128]{1,0:T(1,128)}', space=vmem, size = 0x12000, scoped, tag = 'internal scratch']
  %s0 = inlined_call_operand.vmem [shape: f32[16,32], index: 0, kind: input, shape index: {}]
  %s1 = inlined_call_operand.vmem [shape: f32[128,8], index: 1, kind: input, shape index: {}]
  %s2 = inlined_call_operand.vmem [shape: f32[128,1], index: 2, kind: input, shape index: {}]
  %s3 = inlined_call_operand.vmem [shape: f32[208,32], index: 3, kind: input, shape index: {}]
  %s4 = inlined_call_operand.vmem [shape: f32[80,64], index: 4, kind: input, shape index: {}]
  %s5 = inlined_call_operand.hbm [shape: f32[16,32], index: 5, kind: output, shape index: {}]
  %s6 = sld [smem:[#allocation0]]
  $region30: #{tpu_custom_call.1} parent=0
    _
  %s8 = ssub.s32 1, %s6
  %s9 = scalar_select 0, %s8, %s6
  $region1: #{tpu_custom_call.1} parent=0
    #allocation2 [shape = 'u8[8192]{0}', space=vmem, size = 0x2000, scoped, tag = 'output window, operand 0, single buffered']
    #allocation3 [shape = 's32[1]{0}', space=sflag, size = 0x4, scoped, tag = 'scoped memory for tpu_custom_call.1']
    %10 = vsyncpa [#allocation3], 0
    // Predicated region
    $region2: #{tpu_custom_call.1} parent=1 // pred_check
      _
    $region3: #{tpu_custom_call.1} parent=1 // pred_check_branch
      %12 = sbr.rel (0) target = $region5
    $region4: #{tpu_custom_call.1} parent=1 // pred_region
      _
    $region5: #{tpu_custom_call.1} parent=1 // pred_fallthru
      _
    // Predicated region
    $region6: #{tpu_custom_call.1} parent=1 // pred_check
      _
    $region7: #{tpu_custom_call.1} parent=1 // pred_check_branch
      %14 = sbr.rel (0) target = $region9
    $region8: #{tpu_custom_call.1} parent=1 // pred_region
      _
    $region9: #{tpu_custom_call.1} parent=1 // pred_fallthru
      _
    // Predicated region
    $region10: #{tpu_custom_call.1} parent=1 // pred_check
      _
    $region11: #{tpu_custom_call.1} parent=1 // pred_check_branch
      %16 = sbr.rel (0) target = $region13
    $region12: #{tpu_custom_call.1} parent=1 // pred_region
      _
    $region13: #{tpu_custom_call.1} parent=1 // pred_fallthru
      _
    // Predicated region
    $region14: #{tpu_custom_call.1} parent=1 // pred_check
      _
    $region15: #{tpu_custom_call.1} parent=1 // pred_check_branch
      %18 = sbr.rel (0) target = $region17
    $region16: #{tpu_custom_call.1} parent=1 // pred_region
      _
    $region17: #{tpu_custom_call.1} parent=1 // pred_fallthru
      _
    // Predicated region
    $region18: #{tpu_custom_call.1} parent=1 // pred_check
      _
    $region19: #{tpu_custom_call.1} parent=1 // pred_check_branch
      %20 = sbr.rel (0) target = $region21
    $region20: #{tpu_custom_call.1} parent=1 // pred_region
      _
    $region21: #{tpu_custom_call.1} parent=1 // pred_fallthru
      _
    %v21 = vld [vmem:[%s3] sm:$0xff]
    %v22 = vld [vmem:[%s3 + $0x8] sm:$0xff]
    %v23 = vld [vmem:[%s3 + $0x10] sm:$0xff]
    %v24 = vld [vmem:[%s3 + $0x18] sm:$0xff]
    %v25 = vld [vmem:[%s3 + $0x20] sm:$0xff]
    %v26 = vld [vmem:[%s3 + $0x28] sm:$0xff]
    %v27 = vld [vmem:[%s3 + $0x30] sm:$0xff]
    %v28 = vld [vmem:[%s3 + $0x38] sm:$0xff]
    %v29 = vld [vmem:[%s3 + $0x40] sm:$0xff]
    %v30 = vld [vmem:[%s3 + $0x48] sm:$0xff]
    %v31 = vld [vmem:[%s3 + $0x50] sm:$0xff]
    %v32 = vld [vmem:[%s3 + $0x58] sm:$0xff]
    %v33 = vld [vmem:[%s3 + $0x60] sm:$0xff]
    %v34 = vld [vmem:[%s3 + $0x68] sm:$0xff]
    %v35 = vld [vmem:[%s3 + $0x70] sm:$0xff]
    %v36 = vld [vmem:[%s3 + $0x78] sm:$0xff]
    %v37 = vld [vmem:[%s3 + $0x80] sm:$0xff]
    %v38 = vld [vmem:[%s3 + $0x88] sm:$0xff]
    %v39 = vld [vmem:[%s3 + $0x90] sm:$0xff]
    %v40 = vld [vmem:[%s3 + $0x98] sm:$0xff]
    %v41 = vld [vmem:[%s3 + $0xa0] sm:$0xff]
    %v42 = vld [vmem:[%s3 + $0xa8] sm:$0xff]
    %v43 = vld [vmem:[%s3 + $0xb0] sm:$0xff]
    %v44 = vld [vmem:[%s3 + $0xb8] sm:$0xff]
    %v45 = vld [vmem:[%s3 + $0xc0] sm:$0xff]
    %v46 = vld [vmem:[%s3 + $0xc8] sm:$0xff]
    %v47 = vld [vmem:[%s4] sm:$0xff]
    %v48 = vld [vmem:[%s4 + $0x8] sm:$0xff]
    %v49 = vld [vmem:[%s4 + $0x10] sm:$0xff]
    %v50 = vld [vmem:[%s4 + $0x18] sm:$0xff]
    %v51 = vld [vmem:[%s4 + $0x20] sm:$0xff]
    %v52 = vld [vmem:[%s4 + $0x28] sm:$0xff]
    %v53 = vld [vmem:[%s4 + $0x30] sm:$0xff]
    %v54 = vld [vmem:[%s4 + $0x38] sm:$0xff]
    %v55 = vld [vmem:[%s4 + $0x40] sm:$0xff]
    %v56 = vld [vmem:[%s4 + $0x48] sm:$0xff]
    %v57 = vld [vmem:[%s0] sm:$0xff]
    %v58 = vld [vmem:[%s0 + $0x8] sm:$0xff]
    %vm59 = vcmask 261120
    %v60 = vsel %vm59, %v57, 0.0
    %61 = vadd.xlane.f32.xlu0 %v60
    %v62 = vpop.xlane.xlu0 %61
    %v63 = vsel %vm59, %v58, 0.0
    %64 = vadd.xlane.f32.xlu0 %v63
    %v65 = vpop.xlane.xlu0 %64
    %v66 = vrcp.pop 32.0
    %v67 = vmul.f32 %v62, %v66
    %v68 = vmul.f32 %v65, %v66
    %v69 = vsub.f32 %v57, %v67
    %v70 = vsub.f32 %v58, %v68
    %v71 = vmul.f32 %v69, %v69
    %v72 = vmul.f32 %v70, %v70
    %v73 = vsel %vm59, %v71, 0.0
    %74 = vadd.xlane.f32.xlu0 %v73
    %v75 = vpop.xlane.xlu0 %74
    %v76 = vsel %vm59, %v72, 0.0
    %77 = vadd.xlane.f32.xlu0 %v76
    %v78 = vpop.xlane.xlu0 %77
    %v79 = vmul.f32 %v75, %v66
    %v80 = vmul.f32 %v78, %v66
    %v81 = vadd.f32 %v79, 1e-05
    %v82 = vadd.f32 %v80, 1e-05
    %v83 = vrsqrt.pop %v81
    %v84 = vrsqrt.pop %v82
    %v85 = vmul.f32 %v69, %v83
    %v86 = vmul.f32 %v70, %v84
    %v87 = vlaneseq
    %v88 = vshrl.u32 %v87, 7
    %v89 = vsub.s32 0, %v88
    %v90 = vrot.slane %v45, %v89
    %v91 = vmul.f32 %v85, %v90
    %v92 = vmul.f32 %v86, %v90
    %v93 = vlaneseq
    %v94 = vshrl.u32 %v93, 7
    %v95 = vsub.s32 1, %v94
    %v96 = vrot.slane %v45, %v95
    %v97 = vadd.f32 %v91, %v96
    %v98 = vadd.f32 %v92, %v96
    %v99 = vlaneseq
    %v100 = vshrl.u32 %v99, 7
    %v101 = vsub.s32 2, %v100
    %v102 = vrot.slane %v45, %v101
    %v104 = vsel %vm59, %v97, 0
    %v107 = vsel %vm59, %v98, 0
    %109 = vmatprep.subr.mxu0 0.0
    %110 = vmatpush1.msra.mxu0 %v21
    %111 = vmatprep.subr.mxu0 0.0
    %112 = vmatpush1.msra.mxu0 %v22
    %113 = vmatprep.subr.mxu0 0.0
    %114 = vmatpush1.msra.mxu0 %v23
    %115 = vmatprep.subr.mxu0 0.0
    %116 = vmatpush1.msra.mxu0 %v24
    %117 = vmatprep.subr.mxu0 0.0
    %118 = vmatpush1.msra.mxu0 0.0
    %119 = vmatprep.subr.mxu0 0.0
    %120 = vmatpush1.msra.mxu0 0.0
    %121 = vmatprep.subr.mxu0 0.0
    %122 = vmatpush1.msra.mxu0 0.0
    %123 = vmatprep.subr.mxu0 0.0
    %124 = vmatpush1.msra.mxu0 0.0
    %125 = vmatprep.subr.mxu0 0.0
    %126 = vmatpush1.msra.mxu0 0.0
    %127 = vmatprep.subr.mxu0 0.0
    %128 = vmatpush1.msra.mxu0 0.0
    %129 = vmatprep.subr.mxu0 0.0
    %130 = vmatpush1.msra.mxu0 0.0
    %131 = vmatprep.subr.mxu0 0.0
    %132 = vmatpush1.msra.mxu0 0.0
    %133 = vmatprep.subr.mxu0 0.0
    %134 = vmatpush1.msra.mxu0 0.0
    %135 = vmatprep.subr.mxu0 0.0
    %136 = vmatpush1.msra.mxu0 0.0
    %137 = vmatprep.subr.mxu0 0.0
    %138 = vmatpush1.msra.mxu0 0.0
    %139 = vmatprep.subr.mxu0 0.0
    %140 = vmatpush1.msra.mxu0 0.0
    %141 = vmatprep.subr.mxu0 0.0
    %142 = vmatpush1.msra.mxu0 0.0
    %143 = vmatprep.subr.mxu0 0.0
    %144 = vmatpush1.msra.mxu0 0.0
    %145 = vmatprep.subr.mxu0 0.0
    %146 = vmatpush1.msra.mxu0 0.0
    %147 = vmatprep.subr.mxu0 0.0
    %148 = vmatpush1.msra.mxu0 0.0
    %149 = vmatprep.subr.mxu0 0.0
    %150 = vmatpush1.msra.mxu0 0.0
    %151 = vmatprep.subr.mxu0 0.0
    %152 = vmatpush1.msra.mxu0 0.0
    %153 = vmatprep.subr.mxu0 0.0
    %154 = vmatpush1.msra.mxu0 0.0
    %155 = vmatprep.subr.mxu0 0.0
    %156 = vmatpush1.msra.mxu0 0.0
    %157 = vmatprep.subr.mxu0 0.0
    %158 = vmatpush1.msra.mxu0 0.0
    %159 = vmatprep.subr.mxu0 0.0
    %160 = vmatpush1.msra.mxu0 0.0
    %161 = vmatprep.subr.mxu0 0.0
    %162 = vmatpush1.msra.mxu0 0.0
    %163 = vmatprep.subr.mxu0 0.0
    %164 = vmatpush1.msra.mxu0 0.0
    %165 = vmatprep.subr.mxu0 0.0
    %166 = vmatpush1.msra.mxu0 0.0
    %167 = vmatprep.subr.mxu0 0.0
    %168 = vmatpush1.msra.mxu0 0.0
    %169 = vmatprep.subr.mxu0 0.0
    %170 = vmatpush1.msra.mxu0 0.0
    %171 = vmatprep.subr.mxu0 0.0
    %172 = vmatpush1.msra.mxu0 0.0
    %173 = vmatprep.mubr.f32.mxu0 0.0
    %174 = vmatmul.mubr.f32.gmra.mrb[0].mxu0 %v104
    %v175 = vpop.f32.mrb[0].mxu0
    %v176 = vadd.f32 %v102, %v175
    %v177 = vpop.f32.mrb[0].mxu0
    %178 = vmatprep.mubr.f32.mxu0 0.0
    %179 = vmatmul.mubr.f32.gmra.mrb[0].mxu0 %v107
    %v180 = vpop.f32.mrb[0].mxu0
    %v181 = vadd.f32 %v102, %v180
    %v182 = vpop.f32.mrb[0].mxu0
    %183 = vdwg.mxu0
    %v184 = vlaneseq
    %v185 = vshrl.u32 %v184, 7
    %v186 = vsub.s32 3, %v185
    %v187 = vrot.slane %v45, %v186
    %188 = vmatprep.subr.mxu0 0.0
    %189 = vmatpush1.msra.mxu0 %v25
    %190 = vmatprep.subr.mxu0 0.0
    %191 = vmatpush1.msra.mxu0 %v26
    %192 = vmatprep.subr.mxu0 0.0
    %193 = vmatpush1.msra.mxu0 %v27
    %194 = vmatprep.subr.mxu0 0.0
    %195 = vmatpush1.msra.mxu0 %v28
    %196 = vmatprep.subr.mxu0 0.0
    %197 = vmatpush1.msra.mxu0 0.0
    %198 = vmatprep.subr.mxu0 0.0
    %199 = vmatpush1.msra.mxu0 0.0
    %200 = vmatprep.subr.mxu0 0.0
    %201 = vmatpush1.msra.mxu0 0.0
    %202 = vmatprep.subr.mxu0 0.0
    %203 = vmatpush1.msra.mxu0 0.0
    %204 = vmatprep.subr.mxu0 0.0
    %205 = vmatpush1.msra.mxu0 0.0
    %206 = vmatprep.subr.mxu0 0.0
    %207 = vmatpush1.msra.mxu0 0.0
    %208 = vmatprep.subr.mxu0 0.0
    %209 = vmatpush1.msra.mxu0 0.0
    %210 = vmatprep.subr.mxu0 0.0
    %211 = vmatpush1.msra.mxu0 0.0
    %212 = vmatprep.subr.mxu0 0.0
    %213 = vmatpush1.msra.mxu0 0.0
    %214 = vmatprep.subr.mxu0 0.0
    %215 = vmatpush1.msra.mxu0 0.0
    %216 = vmatprep.subr.mxu0 0.0
    %217 = vmatpush1.msra.mxu0 0.0
    %218 = vmatprep.subr.mxu0 0.0
    %219 = vmatpush1.msra.mxu0 0.0
    %220 = vmatprep.subr.mxu0 0.0
    %221 = vmatpush1.msra.mxu0 0.0
    %222 = vmatprep.subr.mxu0 0.0
    %223 = vmatpush1.msra.mxu0 0.0
    %224 = vmatprep.subr.mxu0 0.0
    %225 = vmatpush1.msra.mxu0 0.0
    %226 = vmatprep.subr.mxu0 0.0
    %227 = vmatpush1.msra.mxu0 0.0
    %228 = vmatprep.subr.mxu0 0.0
    %229 = vmatpush1.msra.mxu0 0.0
    %230 = vmatprep.subr.mxu0 0.0
    %231 = vmatpush1.msra.mxu0 0.0
    %232 = vmatprep.subr.mxu0 0.0
    %233 = vmatpush1.msra.mxu0 0.0
    %234 = vmatprep.subr.mxu0 0.0
    %235 = vmatpush1.msra.mxu0 0.0
    %236 = vmatprep.subr.mxu0 0.0
    %237 = vmatpush1.msra.mxu0 0.0
    %238 = vmatprep.subr.mxu0 0.0
    %239 = vmatpush1.msra.mxu0 0.0
    %240 = vmatprep.subr.mxu0 0.0
    %241 = vmatpush1.msra.mxu0 0.0
    %242 = vmatprep.subr.mxu0 0.0
    %243 = vmatpush1.msra.mxu0 0.0
    %244 = vmatprep.subr.mxu0 0.0
    %245 = vmatpush1.msra.mxu0 0.0
    %246 = vmatprep.subr.mxu0 0.0
    %247 = vmatpush1.msra.mxu0 0.0
    %248 = vmatprep.subr.mxu0 0.0
    %249 = vmatpush1.msra.mxu0 0.0
    %250 = vmatprep.subr.mxu0 0.0
    %251 = vmatpush1.msra.mxu0 0.0
    %252 = vmatprep.mubr.f32.mxu0 0.0
    %253 = vmatmul.mubr.f32.gmra.mrb[0].mxu0 %v104
    %v254 = vpop.f32.mrb[0].mxu0
    %v255 = vadd.f32 %v187, %v254
    %v256 = vpop.f32.mrb[0].mxu0
    %257 = vmatprep.mubr.f32.mxu0 0.0
    %258 = vmatmul.mubr.f32.gmra.mrb[0].mxu0 %v107
    %v259 = vpop.f32.mrb[0].mxu0
    %v260 = vadd.f32 %v187, %v259
    %v261 = vpop.f32.mrb[0].mxu0
    %262 = vdwg.mxu0
    %v263 = vlaneseq
    %v264 = vshrl.u32 %v263, 7
    %v265 = vsub.s32 4, %v264
    %v266 = vrot.slane %v45, %v265
    %267 = vmatprep.subr.mxu0 0.0
    %268 = vmatpush1.msra.mxu0 %v29
    %269 = vmatprep.subr.mxu0 0.0
    %270 = vmatpush1.msra.mxu0 %v30
    %271 = vmatprep.subr.mxu0 0.0
    %272 = vmatpush1.msra.mxu0 %v31
    %273 = vmatprep.subr.mxu0 0.0
    %274 = vmatpush1.msra.mxu0 %v32
    %275 = vmatprep.subr.mxu0 0.0
    %276 = vmatpush1.msra.mxu0 0.0
    %277 = vmatprep.subr.mxu0 0.0
    %278 = vmatpush1.msra.mxu0 0.0
    %279 = vmatprep.subr.mxu0 0.0
    %280 = vmatpush1.msra.mxu0 0.0
    %281 = vmatprep.subr.mxu0 0.0
    %282 = vmatpush1.msra.mxu0 0.0
    %283 = vmatprep.subr.mxu0 0.0
    %284 = vmatpush1.msra.mxu0 0.0
    %285 = vmatprep.subr.mxu0 0.0
    %286 = vmatpush1.msra.mxu0 0.0
    %287 = vmatprep.subr.mxu0 0.0
    %288 = vmatpush1.msra.mxu0 0.0
    %289 = vmatprep.subr.mxu0 0.0
    %290 = vmatpush1.msra.mxu0 0.0
    %291 = vmatprep.subr.mxu0 0.0
    %292 = vmatpush1.msra.mxu0 0.0
    %293 = vmatprep.subr.mxu0 0.0
    %294 = vmatpush1.msra.mxu0 0.0
    %295 = vmatprep.subr.mxu0 0.0
    %296 = vmatpush1.msra.mxu0 0.0
    %297 = vmatprep.subr.mxu0 0.0
    %298 = vmatpush1.msra.mxu0 0.0
    %299 = vmatprep.subr.mxu0 0.0
    %300 = vmatpush1.msra.mxu0 0.0
    %301 = vmatprep.subr.mxu0 0.0
    %302 = vmatpush1.msra.mxu0 0.0
    %303 = vmatprep.subr.mxu0 0.0
    %304 = vmatpush1.msra.mxu0 0.0
    %305 = vmatprep.subr.mxu0 0.0
    %306 = vmatpush1.msra.mxu0 0.0
    %307 = vmatprep.subr.mxu0 0.0
    %308 = vmatpush1.msra.mxu0 0.0
    %309 = vmatprep.subr.mxu0 0.0
    %310 = vmatpush1.msra.mxu0 0.0
    %311 = vmatprep.subr.mxu0 0.0
    %312 = vmatpush1.msra.mxu0 0.0
    %313 = vmatprep.subr.mxu0 0.0
    %314 = vmatpush1.msra.mxu0 0.0
    %315 = vmatprep.subr.mxu0 0.0
    %316 = vmatpush1.msra.mxu0 0.0
    %317 = vmatprep.subr.mxu0 0.0
    %318 = vmatpush1.msra.mxu0 0.0
    %319 = vmatprep.subr.mxu0 0.0
    %320 = vmatpush1.msra.mxu0 0.0
    %321 = vmatprep.subr.mxu0 0.0
    %322 = vmatpush1.msra.mxu0 0.0
    %323 = vmatprep.subr.mxu0 0.0
    %324 = vmatpush1.msra.mxu0 0.0
    %325 = vmatprep.subr.mxu0 0.0
    %326 = vmatpush1.msra.mxu0 0.0
    %327 = vmatprep.subr.mxu0 0.0
    %328 = vmatpush1.msra.mxu0 0.0
    %329 = vmatprep.subr.mxu0 0.0
    %330 = vmatpush1.msra.mxu0 0.0
    %331 = vmatprep.mubr.f32.mxu0 0.0
    %332 = vmatmul.mubr.f32.gmra.mrb[0].mxu0 %v104
    %v333 = vpop.f32.mrb[0].mxu0
    %v334 = vadd.f32 %v266, %v333
    %v335 = vpop.f32.mrb[0].mxu0
    %336 = vmatprep.mubr.f32.mxu0 0.0
    %337 = vmatmul.mubr.f32.gmra.mrb[0].mxu0 %v107
    %v338 = vpop.f32.mrb[0].mxu0
    %v339 = vadd.f32 %v266, %v338
    %v340 = vpop.f32.mrb[0].mxu0
    %341 = vdwg.mxu0
    %344 = vrot.lane.b32.xlu0 %v176, 120
    %v345 = vpop.permute.xlu0 %344
    %346 = vrot.lane.b32.xlu0 %v181, 120
    %v347 = vpop.permute.xlu0 %346
    %348 = vrot.lane.b32.xlu0 %v176, 112
    %v349 = vpop.permute.xlu0 %348
    %350 = vrot.lane.b32.xlu0 %v181, 112
    %v351 = vpop.permute.xlu0 %350
    %352 = vrot.lane.b32.xlu0 %v176, 104
    %v353 = vpop.permute.xlu0 %352
    %354 = vrot.lane.b32.xlu0 %v181, 104
    %v355 = vpop.permute.xlu0 %354
    %358 = vrot.lane.b32.xlu0 %v255, 120
    %v359 = vpop.permute.xlu0 %358
    %360 = vrot.lane.b32.xlu0 %v260, 120
    %v361 = vpop.permute.xlu0 %360
    %362 = vrot.lane.b32.xlu0 %v255, 112
    %v363 = vpop.permute.xlu0 %362
    %364 = vrot.lane.b32.xlu0 %v260, 112
    %v365 = vpop.permute.xlu0 %364
    %366 = vrot.lane.b32.xlu0 %v255, 104
    %v367 = vpop.permute.xlu0 %366
    %368 = vrot.lane.b32.xlu0 %v260, 104
    %v369 = vpop.permute.xlu0 %368
    %372 = vrot.lane.b32.xlu0 %v334, 120
    %v373 = vpop.permute.xlu0 %372
    %374 = vrot.lane.b32.xlu0 %v339, 120
    %v375 = vpop.permute.xlu0 %374
    %378 = vrot.lane.b32.xlu0 %v334, 112
    %v379 = vpop.permute.xlu0 %378
    %380 = vrot.lane.b32.xlu0 %v339, 112
    %v381 = vpop.permute.xlu0 %380
    %384 = vrot.lane.b32.xlu0 %v334, 104
    %v385 = vpop.permute.xlu0 %384
    %386 = vrot.lane.b32.xlu0 %v339, 104
    %v387 = vpop.permute.xlu0 %386
    %v390 = vld [vmem:[%s1] sm:$0xff]
    %v391 = vld [vmem:[%s1 + $0x8] sm:$0xff]
    %v392 = vld [vmem:[%s1 + $0x10] sm:$0xff]
    %v393 = vld [vmem:[%s1 + $0x18] sm:$0xff]
    %v394 = vld [vmem:[%s1 + $0x20] sm:$0xff]
    %v395 = vld [vmem:[%s1 + $0x28] sm:$0xff]
    %v396 = vld [vmem:[%s1 + $0x30] sm:$0xff]
    %v397 = vld [vmem:[%s1 + $0x38] sm:$0xff]
    %v398 = vld [vmem:[%s1 + $0x40] sm:$0xff]
    %v399 = vld [vmem:[%s1 + $0x48] sm:$0xff]
    %v400 = vld [vmem:[%s1 + $0x50] sm:$0xff]
    %v401 = vld [vmem:[%s1 + $0x58] sm:$0xff]
    %v402 = vld [vmem:[%s1 + $0x60] sm:$0xff]
    %v403 = vld [vmem:[%s1 + $0x68] sm:$0xff]
    %v404 = vld [vmem:[%s1 + $0x70] sm:$0xff]
    %v405 = vld [vmem:[%s1 + $0x78] sm:$0xff]
    %v406 = vlaneseq
    %v407 = vshrl.u32 %v406, 7
    %v408 = vsub.s32 0, %v407
    %v409 = vrot.slane %v56, %v408
    %vm410 = vcmask 64512
    %v412 = vsel %vm410, %v390, 0
    %v415 = vsel %vm410, %v391, 0
    %v418 = vsel %vm410, %v392, 0
    %v421 = vsel %vm410, %v393, 0
    %v424 = vsel %vm410, %v394, 0
    %v427 = vsel %vm410, %v395, 0
    %v430 = vsel %vm410, %v396, 0
    %v433 = vsel %vm410, %v397, 0
    %v436 = vsel %vm410, %v398, 0
    %v439 = vsel %vm410, %v399, 0
    %v442 = vsel %vm410, %v400, 0
    %v445 = vsel %vm410, %v401, 0
    %v448 = vsel %vm410, %v402, 0
    %v451 = vsel %vm410, %v403, 0
    %v454 = vsel %vm410, %v404, 0
    %v457 = vsel %vm410, %v405, 0
    %459 = vmatprep.subr.mxu0 0.0
    %460 = vmatpush1.msra.mxu0 %v47
    %461 = vmatprep.subr.mxu0 0.0
    %462 = vmatpush1.msra.mxu0 0.0
    %463 = vmatprep.subr.mxu0 0.0
    %464 = vmatpush1.msra.mxu0 0.0
    %465 = vmatprep.subr.mxu0 0.0
    %466 = vmatpush1.msra.mxu0 0.0
    %467 = vmatprep.subr.mxu0 0.0
    %468 = vmatpush1.msra.mxu0 0.0
    %469 = vmatprep.subr.mxu0 0.0
    %470 = vmatpush1.msra.mxu0 0.0
    %471 = vmatprep.subr.mxu0 0.0
    %472 = vmatpush1.msra.mxu0 0.0
    %473 = vmatprep.subr.mxu0 0.0
    %474 = vmatpush1.msra.mxu0 0.0
    %475 = vmatprep.subr.mxu0 0.0
    %476 = vmatpush1.msra.mxu0 0.0
    %477 = vmatprep.subr.mxu0 0.0
    %478 = vmatpush1.msra.mxu0 0.0
    %479 = vmatprep.subr.mxu0 0.0
    %480 = vmatpush1.msra.mxu0 0.0
    %481 = vmatprep.subr.mxu0 0.0
    %482 = vmatpush1.msra.mxu0 0.0
    %483 = vmatprep.subr.mxu0 0.0
    %484 = vmatpush1.msra.mxu0 0.0
    %485 = vmatprep.subr.mxu0 0.0
    %486 = vmatpush1.msra.mxu0 0.0
    %487 = vmatprep.subr.mxu0 0.0
    %488 = vmatpush1.msra.mxu0 0.0
    %489 = vmatprep.subr.mxu0 0.0
    %490 = vmatpush1.msra.mxu0 0.0
    %491 = vmatprep.subr.mxu0 0.0
    %492 = vmatpush1.msra.mxu0 0.0
    %493 = vmatprep.subr.mxu0 0.0
    %494 = vmatpush1.msra.mxu0 0.0
    %495 = vmatprep.subr.mxu0 0.0
    %496 = vmatpush1.msra.mxu0 0.0
    %497 = vmatprep.subr.mxu0 0.0
    %498 = vmatpush1.msra.mxu0 0.0
    %499 = vmatprep.subr.mxu0 0.0
    %500 = vmatpush1.msra.mxu0 0.0
    %501 = vmatprep.subr.mxu0 0.0
    %502 = vmatpush1.msra.mxu0 0.0
    %503 = vmatprep.subr.mxu0 0.0
    %504 = vmatpush1.msra.mxu0 0.0
    %505 = vmatprep.subr.mxu0 0.0
    %506 = vmatpush1.msra.mxu0 0.0
    %507 = vmatprep.subr.mxu0 0.0
    %508 = vmatpush1.msra.mxu0 0.0
    %509 = vmatprep.subr.mxu0 0.0
    %510 = vmatpush1.msra.mxu0 0.0
    %511 = vmatprep.subr.mxu0 0.0
    %512 = vmatpush1.msra.mxu0 0.0
    %513 = vmatprep.subr.mxu0 0.0
    %514 = vmatpush1.msra.mxu0 0.0
    %515 = vmatprep.subr.mxu0 0.0
    %516 = vmatpush1.msra.mxu0 0.0
    %517 = vmatprep.subr.mxu0 0.0
    %518 = vmatpush1.msra.mxu0 0.0
    %519 = vmatprep.subr.mxu0 0.0
    %520 = vmatpush1.msra.mxu0 0.0
    %521 = vmatprep.subr.mxu0 0.0
    %522 = vmatpush1.msra.mxu0 0.0
    %523 = vmatprep.mubr.f32.mxu0 0.0
    %524 = vmatmul.mubr.f32.gmra.mrb[0].mxu0 %v412
    %v525 = vpop.f32.mrb[0].mxu0
    %v526 = vadd.f32 %v409, %v525
    %v527 = vpop.f32.mrb[0].mxu0
    %528 = vmatprep.mubr.f32.mxu0 0.0
    %529 = vmatmul.mubr.f32.gmra.mrb[0].mxu0 %v415
    %v530 = vpop.f32.mrb[0].mxu0
    %v531 = vadd.f32 %v409, %v530
    %v532 = vpop.f32.mrb[0].mxu0
    %533 = vmatprep.mubr.f32.mxu0 0.0
    %534 = vmatmul.mubr.f32.gmra.mrb[0].mxu0 %v418
    %v535 = vpop.f32.mrb[0].mxu0
    %v536 = vadd.f32 %v409, %v535
    %v537 = vpop.f32.mrb[0].mxu0
    %538 = vmatprep.mubr.f32.mxu0 0.0
    %539 = vmatmul.mubr.f32.gmra.mrb[0].mxu0 %v421
    %v540 = vpop.f32.mrb[0].mxu0
    %v541 = vadd.f32 %v409, %v540
    %v542 = vpop.f32.mrb[0].mxu0
    %543 = vmatprep.mubr.f32.mxu0 0.0
    %544 = vmatmul.mubr.f32.gmra.mrb[0].mxu0 %v424
    %v545 = vpop.f32.mrb[0].mxu0
    %v546 = vadd.f32 %v409, %v545
    %v547 = vpop.f32.mrb[0].mxu0
    %548 = vmatprep.mubr.f32.mxu0 0.0
    %549 = vmatmul.mubr.f32.gmra.mrb[0].mxu0 %v427
    %v550 = vpop.f32.mrb[0].mxu0
    %v551 = vadd.f32 %v409, %v550
    %v552 = vpop.f32.mrb[0].mxu0
    %553 = vmatprep.mubr.f32.mxu0 0.0
    %554 = vmatmul.mubr.f32.gmra.mrb[0].mxu0 %v430
    %v555 = vpop.f32.mrb[0].mxu0
    %v556 = vadd.f32 %v409, %v555
    %v557 = vpop.f32.mrb[0].mxu0
    %558 = vmatprep.mubr.f32.mxu0 0.0
    %559 = vmatmul.mubr.f32.gmra.mrb[0].mxu0 %v433
    %v560 = vpop.f32.mrb[0].mxu0
    %v561 = vadd.f32 %v409, %v560
    %v562 = vpop.f32.mrb[0].mxu0
    %563 = vmatprep.mubr.f32.mxu0 0.0
    %564 = vmatmul.mubr.f32.gmra.mrb[0].mxu0 %v436
    %v565 = vpop.f32.mrb[0].mxu0
    %v566 = vadd.f32 %v409, %v565
    %v567 = vpop.f32.mrb[0].mxu0
    %568 = vmatprep.mubr.f32.mxu0 0.0
    %569 = vmatmul.mubr.f32.gmra.mrb[0].mxu0 %v439
    %v570 = vpop.f32.mrb[0].mxu0
    %v571 = vadd.f32 %v409, %v570
    %v572 = vpop.f32.mrb[0].mxu0
    %573 = vmatprep.mubr.f32.mxu0 0.0
    %574 = vmatmul.mubr.f32.gmra.mrb[0].mxu0 %v442
    %v575 = vpop.f32.mrb[0].mxu0
    %v576 = vadd.f32 %v409, %v575
    %v577 = vpop.f32.mrb[0].mxu0
    %578 = vmatprep.mubr.f32.mxu0 0.0
    %579 = vmatmul.mubr.f32.gmra.mrb[0].mxu0 %v445
    %v580 = vpop.f32.mrb[0].mxu0
    %v581 = vadd.f32 %v409, %v580
    %v582 = vpop.f32.mrb[0].mxu0
    %583 = vmatprep.mubr.f32.mxu0 0.0
    %584 = vmatmul.mubr.f32.gmra.mrb[0].mxu0 %v448
    %v585 = vpop.f32.mrb[0].mxu0
    %v586 = vadd.f32 %v409, %v585
    %v587 = vpop.f32.mrb[0].mxu0
    %588 = vmatprep.mubr.f32.mxu0 0.0
    %589 = vmatmul.mubr.f32.gmra.mrb[0].mxu0 %v451
    %v590 = vpop.f32.mrb[0].mxu0
    %v591 = vadd.f32 %v409, %v590
    %v592 = vpop.f32.mrb[0].mxu0
    %593 = vmatprep.mubr.f32.mxu0 0.0
    %594 = vmatmul.mubr.f32.gmra.mrb[0].mxu0 %v454
    %v595 = vpop.f32.mrb[0].mxu0
    %v596 = vadd.f32 %v409, %v595
    %v597 = vpop.f32.mrb[0].mxu0
    %598 = vmatprep.mubr.f32.mxu0 0.0
    %599 = vmatmul.mubr.f32.gmra.mrb[0].mxu0 %v457
    %v600 = vpop.f32.mrb[0].mxu0
    %v601 = vadd.f32 %v409, %v600
    %v602 = vpop.f32.mrb[0].mxu0
    %603 = vdwg.mxu0
    %v604 = vxor.u32 %v526, 2147483648
    %v605 = vxor.u32 %v531, 2147483648
    %v606 = vxor.u32 %v536, 2147483648
    %v607 = vxor.u32 %v541, 2147483648
    %v608 = vxor.u32 %v546, 2147483648
    %v609 = vxor.u32 %v551, 2147483648
    %v610 = vxor.u32 %v556, 2147483648
    %v611 = vxor.u32 %v561, 2147483648
    %v612 = vxor.u32 %v566, 2147483648
    %v613 = vxor.u32 %v571, 2147483648
    %v614 = vxor.u32 %v576, 2147483648
    %v615 = vxor.u32 %v581, 2147483648
    %v616 = vxor.u32 %v586, 2147483648
    %v617 = vxor.u32 %v591, 2147483648
    %v618 = vxor.u32 %v596, 2147483648
    %v619 = vxor.u32 %v601, 2147483648
    %v620 = vmul.f32 %v604, 1.442695
    %v621 = vpow.pop %v620
    %v622 = vmul.f32 %v605, 1.442695
    %v623 = vpow.pop %v622
    %v624 = vmul.f32 %v606, 1.442695
    %v625 = vpow.pop %v624
    %v626 = vmul.f32 %v607, 1.442695
    %v627 = vpow.pop %v626
    %v628 = vmul.f32 %v608, 1.442695
    %v629 = vpow.pop %v628
    %v630 = vmul.f32 %v609, 1.442695
    %v631 = vpow.pop %v630
    %v632 = vmul.f32 %v610, 1.442695
    %v633 = vpow.pop %v632
    %v634 = vmul.f32 %v611, 1.442695
    %v635 = vpow.pop %v634
    %v636 = vmul.f32 %v612, 1.442695
    %v637 = vpow.pop %v636
    %v638 = vmul.f32 %v613, 1.442695
    %v639 = vpow.pop %v638
    %v640 = vmul.f32 %v614, 1.442695
    %v641 = vpow.pop %v640
    %v642 = vmul.f32 %v615, 1.442695
    %v643 = vpow.pop %v642
    %v644 = vmul.f32 %v616, 1.442695
    %v645 = vpow.pop %v644
    %v646 = vmul.f32 %v617, 1.442695
    %v647 = vpow.pop %v646
    %v648 = vmul.f32 %v618, 1.442695
    %v649 = vpow.pop %v648
    %v650 = vmul.f32 %v619, 1.442695
    %v651 = vpow.pop %v650
    %v652 = vadd.f32 %v621, 1.0
    %v653 = vadd.f32 %v623, 1.0
    %v654 = vadd.f32 %v625, 1.0
    %v655 = vadd.f32 %v627, 1.0
    %v656 = vadd.f32 %v629, 1.0
    %v657 = vadd.f32 %v631, 1.0
    %v658 = vadd.f32 %v633, 1.0
    %v659 = vadd.f32 %v635, 1.0
    %v660 = vadd.f32 %v637, 1.0
    %v661 = vadd.f32 %v639, 1.0
    %v662 = vadd.f32 %v641, 1.0
    %v663 = vadd.f32 %v643, 1.0
    %v664 = vadd.f32 %v645, 1.0
    %v665 = vadd.f32 %v647, 1.0
    %v666 = vadd.f32 %v649, 1.0
    %v667 = vadd.f32 %v651, 1.0
    %v668 = vrcp.pop %v652
    %v669 = vmul.f32 1.0, %v668
    %v670 = vrcp.pop %v653
    %v671 = vmul.f32 1.0, %v670
    %v672 = vrcp.pop %v654
    %v673 = vmul.f32 1.0, %v672
    %v674 = vrcp.pop %v655
    %v675 = vmul.f32 1.0, %v674
    %v676 = vrcp.pop %v656
    %v677 = vmul.f32 1.0, %v676
    %v678 = vrcp.pop %v657
    %v679 = vmul.f32 1.0, %v678
    %v680 = vrcp.pop %v658
    %v681 = vmul.f32 1.0, %v680
    %v682 = vrcp.pop %v659
    %v683 = vmul.f32 1.0, %v682
    %v684 = vrcp.pop %v660
    %v685 = vmul.f32 1.0, %v684
    %v686 = vrcp.pop %v661
    %v687 = vmul.f32 1.0, %v686
    %v688 = vrcp.pop %v662
    %v689 = vmul.f32 1.0, %v688
    %v690 = vrcp.pop %v663
    %v691 = vmul.f32 1.0, %v690
    %v692 = vrcp.pop %v664
    %v693 = vmul.f32 1.0, %v692
    %v694 = vrcp.pop %v665
    %v695 = vmul.f32 1.0, %v694
    %v696 = vrcp.pop %v666
    %v697 = vmul.f32 1.0, %v696
    %v698 = vrcp.pop %v667
    %v699 = vmul.f32 1.0, %v698
    %v700 = vmul.f32 %v526, %v669
    %v701 = vmul.f32 %v531, %v671
    %v702 = vmul.f32 %v536, %v673
    %v703 = vmul.f32 %v541, %v675
    %v704 = vmul.f32 %v546, %v677
    %v705 = vmul.f32 %v551, %v679
    %v706 = vmul.f32 %v556, %v681
    %v707 = vmul.f32 %v561, %v683
    %v708 = vmul.f32 %v566, %v685
    %v709 = vmul.f32 %v571, %v687
    %v710 = vmul.f32 %v576, %v689
    %v711 = vmul.f32 %v581, %v691
    %v712 = vmul.f32 %v586, %v693
    %v713 = vmul.f32 %v591, %v695
    %v714 = vmul.f32 %v596, %v697
    %v715 = vmul.f32 %v601, %v699
    %v716 = vlaneseq
    %v717 = vshrl.u32 %v716, 7
    %v718 = vsub.s32 1, %v717
    %v719 = vrot.slane %v56, %v718
    %vm720 = vcmask 523264
    %v722 = vsel %vm720, %v700, 0
    %v725 = vsel %vm720, %v701, 0
    %v728 = vsel %vm720, %v702, 0
    %v731 = vsel %vm720, %v703, 0
    %v734 = vsel %vm720, %v704, 0
    %v737 = vsel %vm720, %v705, 0
    %v740 = vsel %vm720, %v706, 0
    %v743 = vsel %vm720, %v707, 0
    %v746 = vsel %vm720, %v708, 0
    %v749 = vsel %vm720, %v709, 0
    %v752 = vsel %vm720, %v710, 0
    %v755 = vsel %vm720, %v711, 0
    %v758 = vsel %vm720, %v712, 0
    %v761 = vsel %vm720, %v713, 0
    %v764 = vsel %vm720, %v714, 0
    %v767 = vsel %vm720, %v715, 0
    %769 = vmatprep.subr.mxu0 0.0
    %770 = vmatpush1.msra.mxu0 %v48
    %771 = vmatprep.subr.mxu0 0.0
    %772 = vmatpush1.msra.mxu0 %v49
    %773 = vmatprep.subr.mxu0 0.0
    %774 = vmatpush1.msra.mxu0 %v50
    %775 = vmatprep.subr.mxu0 0.0
    %776 = vmatpush1.msra.mxu0 %v51
    %777 = vmatprep.subr.mxu0 0.0
    %778 = vmatpush1.msra.mxu0 %v52
    %779 = vmatprep.subr.mxu0 0.0
    %780 = vmatpush1.msra.mxu0 %v53
    %781 = vmatprep.subr.mxu0 0.0
    %782 = vmatpush1.msra.mxu0 %v54
    %783 = vmatprep.subr.mxu0 0.0
    %784 = vmatpush1.msra.mxu0 %v55
    %785 = vmatprep.subr.mxu0 0.0
    %786 = vmatpush1.msra.mxu0 0.0
    %787 = vmatprep.subr.mxu0 0.0
    %788 = vmatpush1.msra.mxu0 0.0
    %789 = vmatprep.subr.mxu0 0.0
    %790 = vmatpush1.msra.mxu0 0.0
    %791 = vmatprep.subr.mxu0 0.0
    %792 = vmatpush1.msra.mxu0 0.0
    %793 = vmatprep.subr.mxu0 0.0
    %794 = vmatpush1.msra.mxu0 0.0
    %795 = vmatprep.subr.mxu0 0.0
    %796 = vmatpush1.msra.mxu0 0.0
    %797 = vmatprep.subr.mxu0 0.0
    %798 = vmatpush1.msra.mxu0 0.0
    %799 = vmatprep.subr.mxu0 0.0
    %800 = vmatpush1.msra.mxu0 0.0
    %801 = vmatprep.subr.mxu0 0.0
    %802 = vmatpush1.msra.mxu0 0.0
    %803 = vmatprep.subr.mxu0 0.0
    %804 = vmatpush1.msra.mxu0 0.0
    %805 = vmatprep.subr.mxu0 0.0
    %806 = vmatpush1.msra.mxu0 0.0
    %807 = vmatprep.subr.mxu0 0.0
    %808 = vmatpush1.msra.mxu0 0.0
    %809 = vmatprep.subr.mxu0 0.0
    %810 = vmatpush1.msra.mxu0 0.0
    %811 = vmatprep.subr.mxu0 0.0
    %812 = vmatpush1.msra.mxu0 0.0
    %813 = vmatprep.subr.mxu0 0.0
    %814 = vmatpush1.msra.mxu0 0.0
    %815 = vmatprep.subr.mxu0 0.0
    %816 = vmatpush1.msra.mxu0 0.0
    %817 = vmatprep.subr.mxu0 0.0
    %818 = vmatpush1.msra.mxu0 0.0
    %819 = vmatprep.subr.mxu0 0.0
    %820 = vmatpush1.msra.mxu0 0.0
    %821 = vmatprep.subr.mxu0 0.0
    %822 = vmatpush1.msra.mxu0 0.0
    %823 = vmatprep.subr.mxu0 0.0
    %824 = vmatpush1.msra.mxu0 0.0
    %825 = vmatprep.subr.mxu0 0.0
    %826 = vmatpush1.msra.mxu0 0.0
    %827 = vmatprep.subr.mxu0 0.0
    %828 = vmatpush1.msra.mxu0 0.0
    %829 = vmatprep.subr.mxu0 0.0
    %830 = vmatpush1.msra.mxu0 0.0
    %831 = vmatprep.subr.mxu0 0.0
    %832 = vmatpush1.msra.mxu0 0.0
    %833 = vmatprep.mubr.f32.mxu0 0.0
    %834 = vmatmul.mubr.f32.gmra.mrb[0].mxu0 %v722
    %v835 = vpop.f32.mrb[0].mxu0
    %v836 = vadd.f32 %v719, %v835
    %v837 = vpop.f32.mrb[0].mxu0
    %838 = vmatprep.mubr.f32.mxu0 0.0
    %839 = vmatmul.mubr.f32.gmra.mrb[0].mxu0 %v725
    %v840 = vpop.f32.mrb[0].mxu0
    %v841 = vadd.f32 %v719, %v840
    %v842 = vpop.f32.mrb[0].mxu0
    %843 = vmatprep.mubr.f32.mxu0 0.0
    %844 = vmatmul.mubr.f32.gmra.mrb[0].mxu0 %v728
    %v845 = vpop.f32.mrb[0].mxu0
    %v846 = vadd.f32 %v719, %v845
    %v847 = vpop.f32.mrb[0].mxu0
    %848 = vmatprep.mubr.f32.mxu0 0.0
    %849 = vmatmul.mubr.f32.gmra.mrb[0].mxu0 %v731
    %v850 = vpop.f32.mrb[0].mxu0
    %v851 = vadd.f32 %v719, %v850
    %v852 = vpop.f32.mrb[0].mxu0
    %853 = vmatprep.mubr.f32.mxu0 0.0
    %854 = vmatmul.mubr.f32.gmra.mrb[0].mxu0 %v734
    %v855 = vpop.f32.mrb[0].mxu0
    %v856 = vadd.f32 %v719, %v855
    %v857 = vpop.f32.mrb[0].mxu0
    %858 = vmatprep.mubr.f32.mxu0 0.0
    %859 = vmatmul.mubr.f32.gmra.mrb[0].mxu0 %v737
    %v860 = vpop.f32.mrb[0].mxu0
    %v861 = vadd.f32 %v719, %v860
    %v862 = vpop.f32.mrb[0].mxu0
    %863 = vmatprep.mubr.f32.mxu0 0.0
    %864 = vmatmul.mubr.f32.gmra.mrb[0].mxu0 %v740
    %v865 = vpop.f32.mrb[0].mxu0
    %v866 = vadd.f32 %v719, %v865
    %v867 = vpop.f32.mrb[0].mxu0
    %868 = vmatprep.mubr.f32.mxu0 0.0
    %869 = vmatmul.mubr.f32.gmra.mrb[0].mxu0 %v743
    %v870 = vpop.f32.mrb[0].mxu0
    %v871 = vadd.f32 %v719, %v870
    %v872 = vpop.f32.mrb[0].mxu0
    %873 = vmatprep.mubr.f32.mxu0 0.0
    %874 = vmatmul.mubr.f32.gmra.mrb[0].mxu0 %v746
    %v875 = vpop.f32.mrb[0].mxu0
    %v876 = vadd.f32 %v719, %v875
    %v877 = vpop.f32.mrb[0].mxu0
    %878 = vmatprep.mubr.f32.mxu0 0.0
    %879 = vmatmul.mubr.f32.gmra.mrb[0].mxu0 %v749
    %v880 = vpop.f32.mrb[0].mxu0
    %v881 = vadd.f32 %v719, %v880
    %v882 = vpop.f32.mrb[0].mxu0
    %883 = vmatprep.mubr.f32.mxu0 0.0
    %884 = vmatmul.mubr.f32.gmra.mrb[0].mxu0 %v752
    %v885 = vpop.f32.mrb[0].mxu0
    %v886 = vadd.f32 %v719, %v885
    %v887 = vpop.f32.mrb[0].mxu0
    %888 = vmatprep.mubr.f32.mxu0 0.0
    %889 = vmatmul.mubr.f32.gmra.mrb[0].mxu0 %v755
    %v890 = vpop.f32.mrb[0].mxu0
    %v891 = vadd.f32 %v719, %v890
    %v892 = vpop.f32.mrb[0].mxu0
    %893 = vmatprep.mubr.f32.mxu0 0.0
    %894 = vmatmul.mubr.f32.gmra.mrb[0].mxu0 %v758
    %v895 = vpop.f32.mrb[0].mxu0
    %v896 = vadd.f32 %v719, %v895
    %v897 = vpop.f32.mrb[0].mxu0
    %898 = vmatprep.mubr.f32.mxu0 0.0
    %899 = vmatmul.mubr.f32.gmra.mrb[0].mxu0 %v761
    %v900 = vpop.f32.mrb[0].mxu0
    %v901 = vadd.f32 %v719, %v900
    %v902 = vpop.f32.mrb[0].mxu0
    %903 = vmatprep.mubr.f32.mxu0 0.0
    %904 = vmatmul.mubr.f32.gmra.mrb[0].mxu0 %v764
    %v905 = vpop.f32.mrb[0].mxu0
    %v906 = vadd.f32 %v719, %v905
    %v907 = vpop.f32.mrb[0].mxu0
    %908 = vmatprep.mubr.f32.mxu0 0.0
    %909 = vmatmul.mubr.f32.gmra.mrb[0].mxu0 %v767
    %v910 = vpop.f32.mrb[0].mxu0
    %v911 = vadd.f32 %v719, %v910
    %v912 = vpop.f32.mrb[0].mxu0
    %913 = vdwg.mxu0
    %v914 = vxor.u32 %v836, 2147483648
    %v915 = vxor.u32 %v841, 2147483648
    %v916 = vxor.u32 %v846, 2147483648
    %v917 = vxor.u32 %v851, 2147483648
    %v918 = vxor.u32 %v856, 2147483648
    %v919 = vxor.u32 %v861, 2147483648
    %v920 = vxor.u32 %v866, 2147483648
    %v921 = vxor.u32 %v871, 2147483648
    %v922 = vxor.u32 %v876, 2147483648
    %v923 = vxor.u32 %v881, 2147483648
    %v924 = vxor.u32 %v886, 2147483648
    %v925 = vxor.u32 %v891, 2147483648
    %v926 = vxor.u32 %v896, 2147483648
    %v927 = vxor.u32 %v901, 2147483648
    %v928 = vxor.u32 %v906, 2147483648
    %v929 = vxor.u32 %v911, 2147483648
    %v930 = vmul.f32 %v914, 1.442695
    %v931 = vpow.pop %v930
    %v932 = vmul.f32 %v915, 1.442695
    %v933 = vpow.pop %v932
    %v934 = vmul.f32 %v916, 1.442695
    %v935 = vpow.pop %v934
    %v936 = vmul.f32 %v917, 1.442695
    %v937 = vpow.pop %v936
    %v938 = vmul.f32 %v918, 1.442695
    %v939 = vpow.pop %v938
    %v940 = vmul.f32 %v919, 1.442695
    %v941 = vpow.pop %v940
    %v942 = vmul.f32 %v920, 1.442695
    %v943 = vpow.pop %v942
    %v944 = vmul.f32 %v921, 1.442695
    %v945 = vpow.pop %v944
    %v946 = vmul.f32 %v922, 1.442695
    %v947 = vpow.pop %v946
    %v948 = vmul.f32 %v923, 1.442695
    %v949 = vpow.pop %v948
    %v950 = vmul.f32 %v924, 1.442695
    %v951 = vpow.pop %v950
    %v952 = vmul.f32 %v925, 1.442695
    %v953 = vpow.pop %v952
    %v954 = vmul.f32 %v926, 1.442695
    %v955 = vpow.pop %v954
    %v956 = vmul.f32 %v927, 1.442695
    %v957 = vpow.pop %v956
    %v958 = vmul.f32 %v928, 1.442695
    %v959 = vpow.pop %v958
    %v960 = vmul.f32 %v929, 1.442695
    %v961 = vpow.pop %v960
    %v962 = vadd.f32 %v931, 1.0
    %v963 = vadd.f32 %v933, 1.0
    %v964 = vadd.f32 %v935, 1.0
    %v965 = vadd.f32 %v937, 1.0
    %v966 = vadd.f32 %v939, 1.0
    %v967 = vadd.f32 %v941, 1.0
    %v968 = vadd.f32 %v943, 1.0
    %v969 = vadd.f32 %v945, 1.0
    %v970 = vadd.f32 %v947, 1.0
    %v971 = vadd.f32 %v949, 1.0
    %v972 = vadd.f32 %v951, 1.0
    %v973 = vadd.f32 %v953, 1.0
    %v974 = vadd.f32 %v955, 1.0
    %v975 = vadd.f32 %v957, 1.0
    %v976 = vadd.f32 %v959, 1.0
    %v977 = vadd.f32 %v961, 1.0
    %v978 = vrcp.pop %v962
    %v979 = vmul.f32 1.0, %v978
    %v980 = vrcp.pop %v963
    %v981 = vmul.f32 1.0, %v980
    %v982 = vrcp.pop %v964
    %v983 = vmul.f32 1.0, %v982
    %v984 = vrcp.pop %v965
    %v985 = vmul.f32 1.0, %v984
    %v986 = vrcp.pop %v966
    %v987 = vmul.f32 1.0, %v986
    %v988 = vrcp.pop %v967
    %v989 = vmul.f32 1.0, %v988
    %v990 = vrcp.pop %v968
    %v991 = vmul.f32 1.0, %v990
    %v992 = vrcp.pop %v969
    %v993 = vmul.f32 1.0, %v992
    %v994 = vrcp.pop %v970
    %v995 = vmul.f32 1.0, %v994
    %v996 = vrcp.pop %v971
    %v997 = vmul.f32 1.0, %v996
    %v998 = vrcp.pop %v972
    %v999 = vmul.f32 1.0, %v998
    %v1000 = vrcp.pop %v973
    %v1001 = vmul.f32 1.0, %v1000
    %v1002 = vrcp.pop %v974
    %v1003 = vmul.f32 1.0, %v1002
    %v1004 = vrcp.pop %v975
    %v1005 = vmul.f32 1.0, %v1004
    %v1006 = vrcp.pop %v976
    %v1007 = vmul.f32 1.0, %v1006
    %v1008 = vrcp.pop %v977
    %v1009 = vmul.f32 1.0, %v1008
    %v1010 = vmul.f32 %v836, %v979
    %v1011 = vmul.f32 %v841, %v981
    %v1012 = vmul.f32 %v846, %v983
    %v1013 = vmul.f32 %v851, %v985
    %v1014 = vmul.f32 %v856, %v987
    %v1015 = vmul.f32 %v861, %v989
    %v1016 = vmul.f32 %v866, %v991
    %v1017 = vmul.f32 %v871, %v993
    %v1018 = vmul.f32 %v876, %v995
    %v1019 = vmul.f32 %v881, %v997
    %v1020 = vmul.f32 %v886, %v999
    %v1021 = vmul.f32 %v891, %v1001
    %v1022 = vmul.f32 %v896, %v1003
    %v1023 = vmul.f32 %v901, %v1005
    %v1024 = vmul.f32 %v906, %v1007
    %v1025 = vmul.f32 %v911, %v1009
    %v1026 = vlaneseq
    %v1027 = vshrl.u32 %v1026, 7
    %v1028 = vsub.s32 6, %v1027
    %v1029 = vrot.slane %v56, %v1028
    %v1031 = vrot.slane %v56, 2
    %v1033 = vsel %vm720, %v1010, 0
    %v1036 = vsel %vm720, %v1011, 0
    %v1039 = vsel %vm720, %v1012, 0
    %v1042 = vsel %vm720, %v1013, 0
    %v1045 = vsel %vm720, %v1014, 0
    %v1048 = vsel %vm720, %v1015, 0
    %v1051 = vsel %vm720, %v1016, 0
    %v1054 = vsel %vm720, %v1017, 0
    %v1057 = vsel %vm720, %v1018, 0
    %v1060 = vsel %vm720, %v1019, 0
    %v1063 = vsel %vm720, %v1020, 0
    %v1066 = vsel %vm720, %v1021, 0
    %v1069 = vsel %vm720, %v1022, 0
    %v1072 = vsel %vm720, %v1023, 0
    %v1075 = vsel %vm720, %v1024, 0
    %v1078 = vsel %vm720, %v1025, 0
    %v1080 = vsel %vm720, %v1031, 0
    %1082 = vmatprep.subr.mxu0 0.0
    %1083 = vmatpush1.xpose.msra.mxu0 %v1080
    %1084 = vmatprep.subr.mxu0 0.0
    %1085 = vmatpush1.xpose.msra.mxu0 0.0
    %1086 = vmatprep.subr.mxu0 0.0
    %1087 = vmatpush1.xpose.msra.mxu0 0.0
    %1088 = vmatprep.subr.mxu0 0.0
    %1089 = vmatpush1.xpose.msra.mxu0 0.0
    %1090 = vmatprep.subr.mxu0 0.0
    %1091 = vmatpush1.xpose.msra.mxu0 0.0
    %1092 = vmatprep.subr.mxu0 0.0
    %1093 = vmatpush1.xpose.msra.mxu0 0.0
    %1094 = vmatprep.subr.mxu0 0.0
    %1095 = vmatpush1.xpose.msra.mxu0 0.0
    %1096 = vmatprep.subr.mxu0 0.0
    %1097 = vmatpush1.xpose.msra.mxu0 0.0
    %1098 = vmatprep.subr.mxu0 0.0
    %1099 = vmatpush1.xpose.msra.mxu0 0.0
    %1100 = vmatprep.subr.mxu0 0.0
    %1101 = vmatpush1.xpose.msra.mxu0 0.0
    %1102 = vmatprep.subr.mxu0 0.0
    %1103 = vmatpush1.xpose.msra.mxu0 0.0
    %1104 = vmatprep.subr.mxu0 0.0
    %1105 = vmatpush1.xpose.msra.mxu0 0.0
    %1106 = vmatprep.subr.mxu0 0.0
    %1107 = vmatpush1.xpose.msra.mxu0 0.0
    %1108 = vmatprep.subr.mxu0 0.0
    %1109 = vmatpush1.xpose.msra.mxu0 0.0
    %1110 = vmatprep.subr.mxu0 0.0
    %1111 = vmatpush1.xpose.msra.mxu0 0.0
    %1112 = vmatprep.subr.mxu0 0.0
    %1113 = vmatpush1.xpose.msra.mxu0 0.0
    %1114 = vmatprep.subr.mxu0 0.0
    %1115 = vmatpush1.xpose.msra.mxu0 0.0
    %1116 = vmatprep.subr.mxu0 0.0
    %1117 = vmatpush1.xpose.msra.mxu0 0.0
    %1118 = vmatprep.subr.mxu0 0.0
    %1119 = vmatpush1.xpose.msra.mxu0 0.0
    %1120 = vmatprep.subr.mxu0 0.0
    %1121 = vmatpush1.xpose.msra.mxu0 0.0
    %1122 = vmatprep.subr.mxu0 0.0
    %1123 = vmatpush1.xpose.msra.mxu0 0.0
    %1124 = vmatprep.subr.mxu0 0.0
    %1125 = vmatpush1.xpose.msra.mxu0 0.0
    %1126 = vmatprep.subr.mxu0 0.0
    %1127 = vmatpush1.xpose.msra.mxu0 0.0
    %1128 = vmatprep.subr.mxu0 0.0
    %1129 = vmatpush1.xpose.msra.mxu0 0.0
    %1130 = vmatprep.subr.mxu0 0.0
    %1131 = vmatpush1.xpose.msra.mxu0 0.0
    %1132 = vmatprep.subr.mxu0 0.0
    %1133 = vmatpush1.xpose.msra.mxu0 0.0
    %1134 = vmatprep.subr.mxu0 0.0
    %1135 = vmatpush1.xpose.msra.mxu0 0.0
    %1136 = vmatprep.subr.mxu0 0.0
    %1137 = vmatpush1.xpose.msra.mxu0 0.0
    %1138 = vmatprep.subr.mxu0 0.0
    %1139 = vmatpush1.xpose.msra.mxu0 0.0
    %1140 = vmatprep.subr.mxu0 0.0
    %1141 = vmatpush1.xpose.msra.mxu0 0.0
    %1142 = vmatprep.subr.mxu0 0.0
    %1143 = vmatpush1.xpose.msra.mxu0 0.0
    %1144 = vmatprep.subr.mxu0 0.0
    %1145 = vmatpush1.xpose.msra.mxu0 0.0
    %1146 = vmatprep.mubr.f32.mxu0 0.0
    %1147 = vmatmul.mubr.f32.gmra.mrb[0].mxu0 %v1033
    %v1148 = vpop.f32.mrb[0].mxu0
    %v1149 = vadd.f32 %v1029, %v1148
    %v1150 = vpop.f32.mrb[0].mxu0
    %1151 = vmatprep.mubr.f32.mxu0 0.0
    %1152 = vmatmul.mubr.f32.gmra.mrb[0].mxu0 %v1036
    %v1153 = vpop.f32.mrb[0].mxu0
    %v1154 = vadd.f32 %v1029, %v1153
    %v1155 = vpop.f32.mrb[0].mxu0
    %1156 = vmatprep.mubr.f32.mxu0 0.0
    %1157 = vmatmul.mubr.f32.gmra.mrb[0].mxu0 %v1039
    %v1158 = vpop.f32.mrb[0].mxu0
    %v1159 = vadd.f32 %v1029, %v1158
    %v1160 = vpop.f32.mrb[0].mxu0
    %1161 = vmatprep.mubr.f32.mxu0 0.0
    %1162 = vmatmul.mubr.f32.gmra.mrb[0].mxu0 %v1042
    %v1163 = vpop.f32.mrb[0].mxu0
    %v1164 = vadd.f32 %v1029, %v1163
    %v1165 = vpop.f32.mrb[0].mxu0
    %1166 = vmatprep.mubr.f32.mxu0 0.0
    %1167 = vmatmul.mubr.f32.gmra.mrb[0].mxu0 %v1045
    %v1168 = vpop.f32.mrb[0].mxu0
    %v1169 = vadd.f32 %v1029, %v1168
    %v1170 = vpop.f32.mrb[0].mxu0
    %1171 = vmatprep.mubr.f32.mxu0 0.0
    %1172 = vmatmul.mubr.f32.gmra.mrb[0].mxu0 %v1048
    %v1173 = vpop.f32.mrb[0].mxu0
    %v1174 = vadd.f32 %v1029, %v1173
    %v1175 = vpop.f32.mrb[0].mxu0
    %1176 = vmatprep.mubr.f32.mxu0 0.0
    %1177 = vmatmul.mubr.f32.gmra.mrb[0].mxu0 %v1051
    %v1178 = vpop.f32.mrb[0].mxu0
    %v1179 = vadd.f32 %v1029, %v1178
    %v1180 = vpop.f32.mrb[0].mxu0
    %1181 = vmatprep.mubr.f32.mxu0 0.0
    %1182 = vmatmul.mubr.f32.gmra.mrb[0].mxu0 %v1054
    %v1183 = vpop.f32.mrb[0].mxu0
    %v1184 = vadd.f32 %v1029, %v1183
    %v1185 = vpop.f32.mrb[0].mxu0
    %1186 = vmatprep.mubr.f32.mxu0 0.0
    %1187 = vmatmul.mubr.f32.gmra.mrb[0].mxu0 %v1057
    %v1188 = vpop.f32.mrb[0].mxu0
    %v1189 = vadd.f32 %v1029, %v1188
    %v1190 = vpop.f32.mrb[0].mxu0
    %1191 = vmatprep.mubr.f32.mxu0 0.0
    %1192 = vmatmul.mubr.f32.gmra.mrb[0].mxu0 %v1060
    %v1193 = vpop.f32.mrb[0].mxu0
    %v1194 = vadd.f32 %v1029, %v1193
    %v1195 = vpop.f32.mrb[0].mxu0
    %1196 = vmatprep.mubr.f32.mxu0 0.0
    %1197 = vmatmul.mubr.f32.gmra.mrb[0].mxu0 %v1063
    %v1198 = vpop.f32.mrb[0].mxu0
    %v1199 = vadd.f32 %v1029, %v1198
    %v1200 = vpop.f32.mrb[0].mxu0
    %1201 = vmatprep.mubr.f32.mxu0 0.0
    %1202 = vmatmul.mubr.f32.gmra.mrb[0].mxu0 %v1066
    %v1203 = vpop.f32.mrb[0].mxu0
    %v1204 = vadd.f32 %v1029, %v1203
    %v1205 = vpop.f32.mrb[0].mxu0
    %1206 = vmatprep.mubr.f32.mxu0 0.0
    %1207 = vmatmul.mubr.f32.gmra.mrb[0].mxu0 %v1069
    %v1208 = vpop.f32.mrb[0].mxu0
    %v1209 = vadd.f32 %v1029, %v1208
    %v1210 = vpop.f32.mrb[0].mxu0
    %1211 = vmatprep.mubr.f32.mxu0 0.0
    %1212 = vmatmul.mubr.f32.gmra.mrb[0].mxu0 %v1072
    %v1213 = vpop.f32.mrb[0].mxu0
    %v1214 = vadd.f32 %v1029, %v1213
    %v1215 = vpop.f32.mrb[0].mxu0
    %1216 = vmatprep.mubr.f32.mxu0 0.0
    %1217 = vmatmul.mubr.f32.gmra.mrb[0].mxu0 %v1075
    %v1218 = vpop.f32.mrb[0].mxu0
    %v1219 = vadd.f32 %v1029, %v1218
    %v1220 = vpop.f32.mrb[0].mxu0
    %1221 = vmatprep.mubr.f32.mxu0 0.0
    %1222 = vmatmul.mubr.f32.gmra.mrb[0].mxu0 %v1078
    %v1223 = vpop.f32.mrb[0].mxu0
    %v1224 = vadd.f32 %v1029, %v1223
    %v1225 = vpop.f32.mrb[0].mxu0
    %1226 = vdwg.mxu0
    %v1227 = vxor.u32 %v1149, 2147483648
    %v1228 = vxor.u32 %v1154, 2147483648
    %v1229 = vxor.u32 %v1159, 2147483648
    %v1230 = vxor.u32 %v1164, 2147483648
    %v1231 = vxor.u32 %v1169, 2147483648
    %v1232 = vxor.u32 %v1174, 2147483648
    %v1233 = vxor.u32 %v1179, 2147483648
    %v1234 = vxor.u32 %v1184, 2147483648
    %v1235 = vxor.u32 %v1189, 2147483648
    %v1236 = vxor.u32 %v1194, 2147483648
    %v1237 = vxor.u32 %v1199, 2147483648
    %v1238 = vxor.u32 %v1204, 2147483648
    %v1239 = vxor.u32 %v1209, 2147483648
    %v1240 = vxor.u32 %v1214, 2147483648
    %v1241 = vxor.u32 %v1219, 2147483648
    %v1242 = vxor.u32 %v1224, 2147483648
    %v1243 = vmul.f32 %v1227, 1.442695
    %v1244 = vpow.pop %v1243
    %v1245 = vmul.f32 %v1228, 1.442695
    %v1246 = vpow.pop %v1245
    %v1247 = vmul.f32 %v1229, 1.442695
    %v1248 = vpow.pop %v1247
    %v1249 = vmul.f32 %v1230, 1.442695
    %v1250 = vpow.pop %v1249
    %v1251 = vmul.f32 %v1231, 1.442695
    %v1252 = vpow.pop %v1251
    %v1253 = vmul.f32 %v1232, 1.442695
    %v1254 = vpow.pop %v1253
    %v1255 = vmul.f32 %v1233, 1.442695
    %v1256 = vpow.pop %v1255
    %v1257 = vmul.f32 %v1234, 1.442695
    %v1258 = vpow.pop %v1257
    %v1259 = vmul.f32 %v1235, 1.442695
    %v1260 = vpow.pop %v1259
    %v1261 = vmul.f32 %v1236, 1.442695
    %v1262 = vpow.pop %v1261
    %v1263 = vmul.f32 %v1237, 1.442695
    %v1264 = vpow.pop %v1263
    %v1265 = vmul.f32 %v1238, 1.442695
    %v1266 = vpow.pop %v1265
    %v1267 = vmul.f32 %v1239, 1.442695
    %v1268 = vpow.pop %v1267
    %v1269 = vmul.f32 %v1240, 1.442695
    %v1270 = vpow.pop %v1269
    %v1271 = vmul.f32 %v1241, 1.442695
    %v1272 = vpow.pop %v1271
    %v1273 = vmul.f32 %v1242, 1.442695
    %v1274 = vpow.pop %v1273
    %v1275 = vadd.f32 %v1244, 1.0
    %v1276 = vadd.f32 %v1246, 1.0
    %v1277 = vadd.f32 %v1248, 1.0
    %v1278 = vadd.f32 %v1250, 1.0
    %v1279 = vadd.f32 %v1252, 1.0
    %v1280 = vadd.f32 %v1254, 1.0
    %v1281 = vadd.f32 %v1256, 1.0
    %v1282 = vadd.f32 %v1258, 1.0
    %v1283 = vadd.f32 %v1260, 1.0
    %v1284 = vadd.f32 %v1262, 1.0
    %v1285 = vadd.f32 %v1264, 1.0
    %v1286 = vadd.f32 %v1266, 1.0
    %v1287 = vadd.f32 %v1268, 1.0
    %v1288 = vadd.f32 %v1270, 1.0
    %v1289 = vadd.f32 %v1272, 1.0
    %v1290 = vadd.f32 %v1274, 1.0
    %v1291 = vrcp.pop %v1275
    %v1292 = vmul.f32 1.0, %v1291
    %v1293 = vrcp.pop %v1276
    %v1294 = vmul.f32 1.0, %v1293
    %v1295 = vrcp.pop %v1277
    %v1296 = vmul.f32 1.0, %v1295
    %v1297 = vrcp.pop %v1278
    %v1298 = vmul.f32 1.0, %v1297
    %v1299 = vrcp.pop %v1279
    %v1300 = vmul.f32 1.0, %v1299
    %v1301 = vrcp.pop %v1280
    %v1302 = vmul.f32 1.0, %v1301
    %v1303 = vrcp.pop %v1281
    %v1304 = vmul.f32 1.0, %v1303
    %v1305 = vrcp.pop %v1282
    %v1306 = vmul.f32 1.0, %v1305
    %v1307 = vrcp.pop %v1283
    %v1308 = vmul.f32 1.0, %v1307
    %v1309 = vrcp.pop %v1284
    %v1310 = vmul.f32 1.0, %v1309
    %v1311 = vrcp.pop %v1285
    %v1312 = vmul.f32 1.0, %v1311
    %v1313 = vrcp.pop %v1286
    %v1314 = vmul.f32 1.0, %v1313
    %v1315 = vrcp.pop %v1287
    %v1316 = vmul.f32 1.0, %v1315
    %v1317 = vrcp.pop %v1288
    %v1318 = vmul.f32 1.0, %v1317
    %v1319 = vrcp.pop %v1289
    %v1320 = vmul.f32 1.0, %v1319
    %v1321 = vrcp.pop %v1290
    %v1322 = vmul.f32 1.0, %v1321
    %v1323 = vmul.f32 %v1149, %v1292
    %v1324 = vmul.f32 %v1154, %v1294
    %v1325 = vmul.f32 %v1159, %v1296
    %v1326 = vmul.f32 %v1164, %v1298
    %v1327 = vmul.f32 %v1169, %v1300
    %v1328 = vmul.f32 %v1174, %v1302
    %v1329 = vmul.f32 %v1179, %v1304
    %v1330 = vmul.f32 %v1184, %v1306
    %v1331 = vmul.f32 %v1189, %v1308
    %v1332 = vmul.f32 %v1194, %v1310
    %v1333 = vmul.f32 %v1199, %v1312
    %v1334 = vmul.f32 %v1204, %v1314
    %v1335 = vmul.f32 %v1209, %v1316
    %v1336 = vmul.f32 %v1214, %v1318
    %v1337 = vmul.f32 %v1219, %v1320
    %v1338 = vmul.f32 %v1224, %v1322
    %v1339 = vld [vmem:[%s2] sm:$0xff]
    %v1340 = vld [vmem:[%s2 + $0x8] sm:$0xff]
    %v1341 = vld [vmem:[%s2 + $0x10] sm:$0xff]
    %v1342 = vld [vmem:[%s2 + $0x18] sm:$0xff]
    %v1343 = vld [vmem:[%s2 + $0x20] sm:$0xff]
    %v1344 = vld [vmem:[%s2 + $0x28] sm:$0xff]
    %v1345 = vld [vmem:[%s2 + $0x30] sm:$0xff]
    %v1346 = vld [vmem:[%s2 + $0x38] sm:$0xff]
    %v1347 = vld [vmem:[%s2 + $0x40] sm:$0xff]
    %v1348 = vld [vmem:[%s2 + $0x48] sm:$0xff]
    %v1349 = vld [vmem:[%s2 + $0x50] sm:$0xff]
    %v1350 = vld [vmem:[%s2 + $0x58] sm:$0xff]
    %v1351 = vld [vmem:[%s2 + $0x60] sm:$0xff]
    %v1352 = vld [vmem:[%s2 + $0x68] sm:$0xff]
    %v1353 = vld [vmem:[%s2 + $0x70] sm:$0xff]
    %v1354 = vld [vmem:[%s2 + $0x78] sm:$0xff]
    %1356 = vset.pattern.permute.xlu0 0
    %1357 = vperm.xlu0 %1356, %v1339
    %v1358 = vpop.permute.xlu0 %1357
    %1361 = vset.pattern.permute.xlu0 0
    %1362 = vperm.xlu0 %1361, %v1340
    %v1363 = vpop.permute.xlu0 %1362
    %1366 = vset.pattern.permute.xlu0 0
    %1367 = vperm.xlu0 %1366, %v1341
    %v1368 = vpop.permute.xlu0 %1367
    %1371 = vset.pattern.permute.xlu0 0
    %1372 = vperm.xlu0 %1371, %v1342
    %v1373 = vpop.permute.xlu0 %1372
    %1376 = vset.pattern.permute.xlu0 0
    %1377 = vperm.xlu0 %1376, %v1343
    %v1378 = vpop.permute.xlu0 %1377
    %1381 = vset.pattern.permute.xlu0 0
    %1382 = vperm.xlu0 %1381, %v1344
    %v1383 = vpop.permute.xlu0 %1382
    %1386 = vset.pattern.permute.xlu0 0
    %1387 = vperm.xlu0 %1386, %v1345
    %v1388 = vpop.permute.xlu0 %1387
    %1391 = vset.pattern.permute.xlu0 0
    %1392 = vperm.xlu0 %1391, %v1346
    %v1393 = vpop.permute.xlu0 %1392
    %1396 = vset.pattern.permute.xlu0 0
    %1397 = vperm.xlu0 %1396, %v1347
    %v1398 = vpop.permute.xlu0 %1397
    %1401 = vset.pattern.permute.xlu0 0
    %1402 = vperm.xlu0 %1401, %v1348
    %v1403 = vpop.permute.xlu0 %1402
    %1406 = vset.pattern.permute.xlu0 0
    %1407 = vperm.xlu0 %1406, %v1349
    %v1408 = vpop.permute.xlu0 %1407
    %1411 = vset.pattern.permute.xlu0 0
    %1412 = vperm.xlu0 %1411, %v1350
    %v1413 = vpop.permute.xlu0 %1412
    %1416 = vset.pattern.permute.xlu0 0
    %1417 = vperm.xlu0 %1416, %v1351
    %v1418 = vpop.permute.xlu0 %1417
    %1421 = vset.pattern.permute.xlu0 0
    %1422 = vperm.xlu0 %1421, %v1352
    %v1423 = vpop.permute.xlu0 %1422
    %1426 = vset.pattern.permute.xlu0 0
    %1427 = vperm.xlu0 %1426, %v1353
    %v1428 = vpop.permute.xlu0 %1427
    %1431 = vset.pattern.permute.xlu0 0
    %1432 = vperm.xlu0 %1431, %v1354
    %v1433 = vpop.permute.xlu0 %1432
    %v1435 = vadd.f32 %v1323, %v1358
    %v1436 = vadd.f32 %v1324, %v1363
    %v1437 = vadd.f32 %v1325, %v1368
    %v1438 = vadd.f32 %v1326, %v1373
    %v1439 = vadd.f32 %v1327, %v1378
    %v1440 = vadd.f32 %v1328, %v1383
    %v1441 = vadd.f32 %v1329, %v1388
    %v1442 = vadd.f32 %v1330, %v1393
    %v1443 = vadd.f32 %v1331, %v1398
    %v1444 = vadd.f32 %v1332, %v1403
    %v1445 = vadd.f32 %v1333, %v1408
    %v1446 = vadd.f32 %v1334, %v1413
    %v1447 = vadd.f32 %v1335, %v1418
    %v1448 = vadd.f32 %v1336, %v1423
    %v1449 = vadd.f32 %v1337, %v1428
    %v1450 = vadd.f32 %v1338, %v1433
    %1467 = vrot.lane.b32.xlu0 %v1435, 127
    %v1468 = vpop.permute.xlu0 %1467
    %1469 = vrot.lane.b32.xlu0 %v1436, 127
    %v1470 = vpop.permute.xlu0 %1469
    %1471 = vrot.lane.b32.xlu0 %v1437, 127
    %v1472 = vpop.permute.xlu0 %1471
    %1473 = vrot.lane.b32.xlu0 %v1438, 127
    %v1474 = vpop.permute.xlu0 %1473
    %1475 = vrot.lane.b32.xlu0 %v1439, 127
    %v1476 = vpop.permute.xlu0 %1475
    %1477 = vrot.lane.b32.xlu0 %v1440, 127
    %v1478 = vpop.permute.xlu0 %1477
    %1479 = vrot.lane.b32.xlu0 %v1441, 127
    %v1480 = vpop.permute.xlu0 %1479
    %1481 = vrot.lane.b32.xlu0 %v1442, 127
    %v1482 = vpop.permute.xlu0 %1481
    %1483 = vrot.lane.b32.xlu0 %v1443, 127
    %v1484 = vpop.permute.xlu0 %1483
    %1485 = vrot.lane.b32.xlu0 %v1444, 127
    %v1486 = vpop.permute.xlu0 %1485
    %1487 = vrot.lane.b32.xlu0 %v1445, 127
    %v1488 = vpop.permute.xlu0 %1487
    %1489 = vrot.lane.b32.xlu0 %v1446, 127
    %v1490 = vpop.permute.xlu0 %1489
    %1491 = vrot.lane.b32.xlu0 %v1447, 127
    %v1492 = vpop.permute.xlu0 %1491
    %1493 = vrot.lane.b32.xlu0 %v1448, 127
    %v1494 = vpop.permute.xlu0 %1493
    %1495 = vrot.lane.b32.xlu0 %v1449, 127
    %v1496 = vpop.permute.xlu0 %1495
    %1497 = vrot.lane.b32.xlu0 %v1450, 127
    %v1498 = vpop.permute.xlu0 %1497
    %1499 = vrot.lane.b32.xlu0 %v1435, 126
    %v1500 = vpop.permute.xlu0 %1499
    %1501 = vrot.lane.b32.xlu0 %v1436, 126
    %v1502 = vpop.permute.xlu0 %1501
    %1503 = vrot.lane.b32.xlu0 %v1437, 126
    %v1504 = vpop.permute.xlu0 %1503
    %1505 = vrot.lane.b32.xlu0 %v1438, 126
    %v1506 = vpop.permute.xlu0 %1505
    %1507 = vrot.lane.b32.xlu0 %v1439, 126
    %v1508 = vpop.permute.xlu0 %1507
    %1509 = vrot.lane.b32.xlu0 %v1440, 126
    %v1510 = vpop.permute.xlu0 %1509
    %1511 = vrot.lane.b32.xlu0 %v1441, 126
    %v1512 = vpop.permute.xlu0 %1511
    %1513 = vrot.lane.b32.xlu0 %v1442, 126
    %v1514 = vpop.permute.xlu0 %1513
    %1515 = vrot.lane.b32.xlu0 %v1443, 126
    %v1516 = vpop.permute.xlu0 %1515
    %1517 = vrot.lane.b32.xlu0 %v1444, 126
    %v1518 = vpop.permute.xlu0 %1517
    %1519 = vrot.lane.b32.xlu0 %v1445, 126
    %v1520 = vpop.permute.xlu0 %1519
    %1521 = vrot.lane.b32.xlu0 %v1446, 126
    %v1522 = vpop.permute.xlu0 %1521
    %1523 = vrot.lane.b32.xlu0 %v1447, 126
    %v1524 = vpop.permute.xlu0 %1523
    %1525 = vrot.lane.b32.xlu0 %v1448, 126
    %v1526 = vpop.permute.xlu0 %1525
    %1527 = vrot.lane.b32.xlu0 %v1449, 126
    %v1528 = vpop.permute.xlu0 %1527
    %1529 = vrot.lane.b32.xlu0 %v1450, 126
    %v1530 = vpop.permute.xlu0 %1529
    %1531 = vrot.lane.b32.xlu0 %v1435, 125
    %v1532 = vpop.permute.xlu0 %1531
    %1533 = vrot.lane.b32.xlu0 %v1436, 125
    %v1534 = vpop.permute.xlu0 %1533
    %1535 = vrot.lane.b32.xlu0 %v1437, 125
    %v1536 = vpop.permute.xlu0 %1535
    %1537 = vrot.lane.b32.xlu0 %v1438, 125
    %v1538 = vpop.permute.xlu0 %1537
    %1539 = vrot.lane.b32.xlu0 %v1439, 125
    %v1540 = vpop.permute.xlu0 %1539
    %1541 = vrot.lane.b32.xlu0 %v1440, 125
    %v1542 = vpop.permute.xlu0 %1541
    %1543 = vrot.lane.b32.xlu0 %v1441, 125
    %v1544 = vpop.permute.xlu0 %1543
    %1545 = vrot.lane.b32.xlu0 %v1442, 125
    %v1546 = vpop.permute.xlu0 %1545
    %1547 = vrot.lane.b32.xlu0 %v1443, 125
    %v1548 = vpop.permute.xlu0 %1547
    %1549 = vrot.lane.b32.xlu0 %v1444, 125
    %v1550 = vpop.permute.xlu0 %1549
    %1551 = vrot.lane.b32.xlu0 %v1445, 125
    %v1552 = vpop.permute.xlu0 %1551
    %1553 = vrot.lane.b32.xlu0 %v1446, 125
    %v1554 = vpop.permute.xlu0 %1553
    %1555 = vrot.lane.b32.xlu0 %v1447, 125
    %v1556 = vpop.permute.xlu0 %1555
    %1557 = vrot.lane.b32.xlu0 %v1448, 125
    %v1558 = vpop.permute.xlu0 %1557
    %1559 = vrot.lane.b32.xlu0 %v1449, 125
    %v1560 = vpop.permute.xlu0 %1559
    %1561 = vrot.lane.b32.xlu0 %v1450, 125
    %v1562 = vpop.permute.xlu0 %1561
    %v1563 = vsel %vm410, %v176, 0
    %v1565 = vsel %vm410, %v255, 0
    %1567 = vmatprep.subr.mxu0 0.0
    %1568 = vmatpush1.xpose.msra.mxu0 %v1565
    %1569 = vmatprep.subr.mxu0 0.0
    %1570 = vmatpush1.xpose.msra.mxu0 0.0
    %1571 = vmatprep.subr.mxu0 0.0
    %1572 = vmatpush1.xpose.msra.mxu0 0.0
    %1573 = vmatprep.subr.mxu0 0.0
    %1574 = vmatpush1.xpose.msra.mxu0 0.0
    %1575 = vmatprep.subr.mxu0 0.0
    %1576 = vmatpush1.xpose.msra.mxu0 0.0
    %1577 = vmatprep.subr.mxu0 0.0
    %1578 = vmatpush1.xpose.msra.mxu0 0.0
    %1579 = vmatprep.subr.mxu0 0.0
    %1580 = vmatpush1.xpose.msra.mxu0 0.0
    %1581 = vmatprep.subr.mxu0 0.0
    %1582 = vmatpush1.xpose.msra.mxu0 0.0
    %1583 = vmatprep.subr.mxu0 0.0
    %1584 = vmatpush1.xpose.msra.mxu0 0.0
    %1585 = vmatprep.subr.mxu0 0.0
    %1586 = vmatpush1.xpose.msra.mxu0 0.0
    %1587 = vmatprep.subr.mxu0 0.0
    %1588 = vmatpush1.xpose.msra.mxu0 0.0
    %1589 = vmatprep.subr.mxu0 0.0
    %1590 = vmatpush1.xpose.msra.mxu0 0.0
    %1591 = vmatprep.subr.mxu0 0.0
    %1592 = vmatpush1.xpose.msra.mxu0 0.0
    %1593 = vmatprep.subr.mxu0 0.0
    %1594 = vmatpush1.xpose.msra.mxu0 0.0
    %1595 = vmatprep.subr.mxu0 0.0
    %1596 = vmatpush1.xpose.msra.mxu0 0.0
    %1597 = vmatprep.subr.mxu0 0.0
    %1598 = vmatpush1.xpose.msra.mxu0 0.0
    %1599 = vmatprep.subr.mxu0 0.0
    %1600 = vmatpush1.xpose.msra.mxu0 0.0
    %1601 = vmatprep.subr.mxu0 0.0
    %1602 = vmatpush1.xpose.msra.mxu0 0.0
    %1603 = vmatprep.subr.mxu0 0.0
    %1604 = vmatpush1.xpose.msra.mxu0 0.0
    %1605 = vmatprep.subr.mxu0 0.0
    %1606 = vmatpush1.xpose.msra.mxu0 0.0
    %1607 = vmatprep.subr.mxu0 0.0
    %1608 = vmatpush1.xpose.msra.mxu0 0.0
    %1609 = vmatprep.subr.mxu0 0.0
    %1610 = vmatpush1.xpose.msra.mxu0 0.0
    %1611 = vmatprep.subr.mxu0 0.0
    %1612 = vmatpush1.xpose.msra.mxu0 0.0
    %1613 = vmatprep.subr.mxu0 0.0
    %1614 = vmatpush1.xpose.msra.mxu0 0.0
    %1615 = vmatprep.subr.mxu0 0.0
    %1616 = vmatpush1.xpose.msra.mxu0 0.0
    %1617 = vmatprep.subr.mxu0 0.0
    %1618 = vmatpush1.xpose.msra.mxu0 0.0
    %1619 = vmatprep.subr.mxu0 0.0
    %1620 = vmatpush1.xpose.msra.mxu0 0.0
    %1621 = vmatprep.subr.mxu0 0.0
    %1622 = vmatpush1.xpose.msra.mxu0 0.0
    %1623 = vmatprep.subr.mxu0 0.0
    %1624 = vmatpush1.xpose.msra.mxu0 0.0
    %1625 = vmatprep.subr.mxu0 0.0
    %1626 = vmatpush1.xpose.msra.mxu0 0.0
    %1627 = vmatprep.subr.mxu0 0.0
    %1628 = vmatpush1.xpose.msra.mxu0 0.0
    %1629 = vmatprep.subr.mxu0 0.0
    %1630 = vmatpush1.xpose.msra.mxu0 0.0
    %1631 = vmatprep.mubr.f32.mxu0 0.0
    %1632 = vmatmul.mubr.f32.gmra.mrb[0].mxu0 %v1563
    %v1633 = vpop.f32.mrb[0].mxu0
    %v1634 = vadd.f32 0.0, %v1633
    %v1635 = vpop.f32.mrb[0].mxu0
    %1636 = vdwg.mxu0
    %v1637 = vsel %vm410, %v181, 0
    %v1639 = vsel %vm410, %v260, 0
    %1641 = vmatprep.subr.mxu0 0.0
    %1642 = vmatpush1.xpose.msra.mxu0 %v1639
    %1643 = vmatprep.subr.mxu0 0.0
    %1644 = vmatpush1.xpose.msra.mxu0 0.0
    %1645 = vmatprep.subr.mxu0 0.0
    %1646 = vmatpush1.xpose.msra.mxu0 0.0
    %1647 = vmatprep.subr.mxu0 0.0
    %1648 = vmatpush1.xpose.msra.mxu0 0.0
    %1649 = vmatprep.subr.mxu0 0.0
    %1650 = vmatpush1.xpose.msra.mxu0 0.0
    %1651 = vmatprep.subr.mxu0 0.0
    %1652 = vmatpush1.xpose.msra.mxu0 0.0
    %1653 = vmatprep.subr.mxu0 0.0
    %1654 = vmatpush1.xpose.msra.mxu0 0.0
    %1655 = vmatprep.subr.mxu0 0.0
    %1656 = vmatpush1.xpose.msra.mxu0 0.0
    %1657 = vmatprep.subr.mxu0 0.0
    %1658 = vmatpush1.xpose.msra.mxu0 0.0
    %1659 = vmatprep.subr.mxu0 0.0
    %1660 = vmatpush1.xpose.msra.mxu0 0.0
    %1661 = vmatprep.subr.mxu0 0.0
    %1662 = vmatpush1.xpose.msra.mxu0 0.0
    %1663 = vmatprep.subr.mxu0 0.0
    %1664 = vmatpush1.xpose.msra.mxu0 0.0
    %1665 = vmatprep.subr.mxu0 0.0
    %1666 = vmatpush1.xpose.msra.mxu0 0.0
    %1667 = vmatprep.subr.mxu0 0.0
    %1668 = vmatpush1.xpose.msra.mxu0 0.0
    %1669 = vmatprep.subr.mxu0 0.0
    %1670 = vmatpush1.xpose.msra.mxu0 0.0
    %1671 = vmatprep.subr.mxu0 0.0
    %1672 = vmatpush1.xpose.msra.mxu0 0.0
    %1673 = vmatprep.subr.mxu0 0.0
    %1674 = vmatpush1.xpose.msra.mxu0 0.0
    %1675 = vmatprep.subr.mxu0 0.0
    %1676 = vmatpush1.xpose.msra.mxu0 0.0
    %1677 = vmatprep.subr.mxu0 0.0
    %1678 = vmatpush1.xpose.msra.mxu0 0.0
    %1679 = vmatprep.subr.mxu0 0.0
    %1680 = vmatpush1.xpose.msra.mxu0 0.0
    %1681 = vmatprep.subr.mxu0 0.0
    %1682 = vmatpush1.xpose.msra.mxu0 0.0
    %1683 = vmatprep.subr.mxu0 0.0
    %1684 = vmatpush1.xpose.msra.mxu0 0.0
    %1685 = vmatprep.subr.mxu0 0.0
    %1686 = vmatpush1.xpose.msra.mxu0 0.0
    %1687 = vmatprep.subr.mxu0 0.0
    %1688 = vmatpush1.xpose.msra.mxu0 0.0
    %1689 = vmatprep.subr.mxu0 0.0
    %1690 = vmatpush1.xpose.msra.mxu0 0.0
    %1691 = vmatprep.subr.mxu0 0.0
    %1692 = vmatpush1.xpose.msra.mxu0 0.0
    %1693 = vmatprep.subr.mxu0 0.0
    %1694 = vmatpush1.xpose.msra.mxu0 0.0
    %1695 = vmatprep.subr.mxu0 0.0
    %1696 = vmatpush1.xpose.msra.mxu0 0.0
    %1697 = vmatprep.subr.mxu0 0.0
    %1698 = vmatpush1.xpose.msra.mxu0 0.0
    %1699 = vmatprep.subr.mxu0 0.0
    %1700 = vmatpush1.xpose.msra.mxu0 0.0
    %1701 = vmatprep.subr.mxu0 0.0
    %1702 = vmatpush1.xpose.msra.mxu0 0.0
    %1703 = vmatprep.subr.mxu0 0.0
    %1704 = vmatpush1.xpose.msra.mxu0 0.0
    %1705 = vmatprep.mubr.f32.mxu0 0.0
    %1706 = vmatmul.mubr.f32.gmra.mrb[0].mxu0 %v1637
    %v1707 = vpop.f32.mrb[0].mxu0
    %v1708 = vadd.f32 0.0, %v1707
    %v1709 = vpop.f32.mrb[0].mxu0
    %1710 = vdwg.mxu0
    %v1711 = vsel %vm410, %v345, 0
    %v1713 = vsel %vm410, %v359, 0
    %1715 = vmatprep.subr.mxu0 0.0
    %1716 = vmatpush1.xpose.msra.mxu0 %v1713
    %1717 = vmatprep.subr.mxu0 0.0
    %1718 = vmatpush1.xpose.msra.mxu0 0.0
    %1719 = vmatprep.subr.mxu0 0.0
    %1720 = vmatpush1.xpose.msra.mxu0 0.0
    %1721 = vmatprep.subr.mxu0 0.0
    %1722 = vmatpush1.xpose.msra.mxu0 0.0
    %1723 = vmatprep.subr.mxu0 0.0
    %1724 = vmatpush1.xpose.msra.mxu0 0.0
    %1725 = vmatprep.subr.mxu0 0.0
    %1726 = vmatpush1.xpose.msra.mxu0 0.0
    %1727 = vmatprep.subr.mxu0 0.0
    %1728 = vmatpush1.xpose.msra.mxu0 0.0
    %1729 = vmatprep.subr.mxu0 0.0
    %1730 = vmatpush1.xpose.msra.mxu0 0.0
    %1731 = vmatprep.subr.mxu0 0.0
    %1732 = vmatpush1.xpose.msra.mxu0 0.0
    %1733 = vmatprep.subr.mxu0 0.0
    %1734 = vmatpush1.xpose.msra.mxu0 0.0
    %1735 = vmatprep.subr.mxu0 0.0
    %1736 = vmatpush1.xpose.msra.mxu0 0.0
    %1737 = vmatprep.subr.mxu0 0.0
    %1738 = vmatpush1.xpose.msra.mxu0 0.0
    %1739 = vmatprep.subr.mxu0 0.0
    %1740 = vmatpush1.xpose.msra.mxu0 0.0
    %1741 = vmatprep.subr.mxu0 0.0
    %1742 = vmatpush1.xpose.msra.mxu0 0.0
    %1743 = vmatprep.subr.mxu0 0.0
    %1744 = vmatpush1.xpose.msra.mxu0 0.0
    %1745 = vmatprep.subr.mxu0 0.0
    %1746 = vmatpush1.xpose.msra.mxu0 0.0
    %1747 = vmatprep.subr.mxu0 0.0
    %1748 = vmatpush1.xpose.msra.mxu0 0.0
    %1749 = vmatprep.subr.mxu0 0.0
    %1750 = vmatpush1.xpose.msra.mxu0 0.0
    %1751 = vmatprep.subr.mxu0 0.0
    %1752 = vmatpush1.xpose.msra.mxu0 0.0
    %1753 = vmatprep.subr.mxu0 0.0
    %1754 = vmatpush1.xpose.msra.mxu0 0.0
    %1755 = vmatprep.subr.mxu0 0.0
    %1756 = vmatpush1.xpose.msra.mxu0 0.0
    %1757 = vmatprep.subr.mxu0 0.0
    %1758 = vmatpush1.xpose.msra.mxu0 0.0
    %1759 = vmatprep.subr.mxu0 0.0
    %1760 = vmatpush1.xpose.msra.mxu0 0.0
    %1761 = vmatprep.subr.mxu0 0.0
    %1762 = vmatpush1.xpose.msra.mxu0 0.0
    %1763 = vmatprep.subr.mxu0 0.0
    %1764 = vmatpush1.xpose.msra.mxu0 0.0
    %1765 = vmatprep.subr.mxu0 0.0
    %1766 = vmatpush1.xpose.msra.mxu0 0.0
    %1767 = vmatprep.subr.mxu0 0.0
    %1768 = vmatpush1.xpose.msra.mxu0 0.0
    %1769 = vmatprep.subr.mxu0 0.0
    %1770 = vmatpush1.xpose.msra.mxu0 0.0
    %1771 = vmatprep.subr.mxu0 0.0
    %1772 = vmatpush1.xpose.msra.mxu0 0.0
    %1773 = vmatprep.subr.mxu0 0.0
    %1774 = vmatpush1.xpose.msra.mxu0 0.0
    %1775 = vmatprep.subr.mxu0 0.0
    %1776 = vmatpush1.xpose.msra.mxu0 0.0
    %1777 = vmatprep.subr.mxu0 0.0
    %1778 = vmatpush1.xpose.msra.mxu0 0.0
    %1779 = vmatprep.mubr.f32.mxu0 0.0
    %1780 = vmatmul.mubr.f32.gmra.mrb[0].mxu0 %v1711
    %v1781 = vpop.f32.mrb[0].mxu0
    %v1782 = vadd.f32 0.0, %v1781
    %v1783 = vpop.f32.mrb[0].mxu0
    %1784 = vdwg.mxu0
    %v1785 = vsel %vm410, %v347, 0
    %v1787 = vsel %vm410, %v361, 0
    %1789 = vmatprep.subr.mxu0 0.0
    %1790 = vmatpush1.xpose.msra.mxu0 %v1787
    %1791 = vmatprep.subr.mxu0 0.0
    %1792 = vmatpush1.xpose.msra.mxu0 0.0
    %1793 = vmatprep.subr.mxu0 0.0
    %1794 = vmatpush1.xpose.msra.mxu0 0.0
    %1795 = vmatprep.subr.mxu0 0.0
    %1796 = vmatpush1.xpose.msra.mxu0 0.0
    %1797 = vmatprep.subr.mxu0 0.0
    %1798 = vmatpush1.xpose.msra.mxu0 0.0
    %1799 = vmatprep.subr.mxu0 0.0
    %1800 = vmatpush1.xpose.msra.mxu0 0.0
    %1801 = vmatprep.subr.mxu0 0.0
    %1802 = vmatpush1.xpose.msra.mxu0 0.0
    %1803 = vmatprep.subr.mxu0 0.0
    %1804 = vmatpush1.xpose.msra.mxu0 0.0
    %1805 = vmatprep.subr.mxu0 0.0
    %1806 = vmatpush1.xpose.msra.mxu0 0.0
    %1807 = vmatprep.subr.mxu0 0.0
    %1808 = vmatpush1.xpose.msra.mxu0 0.0
    %1809 = vmatprep.subr.mxu0 0.0
    %1810 = vmatpush1.xpose.msra.mxu0 0.0
    %1811 = vmatprep.subr.mxu0 0.0
    %1812 = vmatpush1.xpose.msra.mxu0 0.0
    %1813 = vmatprep.subr.mxu0 0.0
    %1814 = vmatpush1.xpose.msra.mxu0 0.0
    %1815 = vmatprep.subr.mxu0 0.0
    %1816 = vmatpush1.xpose.msra.mxu0 0.0
    %1817 = vmatprep.subr.mxu0 0.0
    %1818 = vmatpush1.xpose.msra.mxu0 0.0
    %1819 = vmatprep.subr.mxu0 0.0
    %1820 = vmatpush1.xpose.msra.mxu0 0.0
    %1821 = vmatprep.subr.mxu0 0.0
    %1822 = vmatpush1.xpose.msra.mxu0 0.0
    %1823 = vmatprep.subr.mxu0 0.0
    %1824 = vmatpush1.xpose.msra.mxu0 0.0
    %1825 = vmatprep.subr.mxu0 0.0
    %1826 = vmatpush1.xpose.msra.mxu0 0.0
    %1827 = vmatprep.subr.mxu0 0.0
    %1828 = vmatpush1.xpose.msra.mxu0 0.0
    %1829 = vmatprep.subr.mxu0 0.0
    %1830 = vmatpush1.xpose.msra.mxu0 0.0
    %1831 = vmatprep.subr.mxu0 0.0
    %1832 = vmatpush1.xpose.msra.mxu0 0.0
    %1833 = vmatprep.subr.mxu0 0.0
    %1834 = vmatpush1.xpose.msra.mxu0 0.0
    %1835 = vmatprep.subr.mxu0 0.0
    %1836 = vmatpush1.xpose.msra.mxu0 0.0
    %1837 = vmatprep.subr.mxu0 0.0
    %1838 = vmatpush1.xpose.msra.mxu0 0.0
    %1839 = vmatprep.subr.mxu0 0.0
    %1840 = vmatpush1.xpose.msra.mxu0 0.0
    %1841 = vmatprep.subr.mxu0 0.0
    %1842 = vmatpush1.xpose.msra.mxu0 0.0
    %1843 = vmatprep.subr.mxu0 0.0
    %1844 = vmatpush1.xpose.msra.mxu0 0.0
    %1845 = vmatprep.subr.mxu0 0.0
    %1846 = vmatpush1.xpose.msra.mxu0 0.0
    %1847 = vmatprep.subr.mxu0 0.0
    %1848 = vmatpush1.xpose.msra.mxu0 0.0
    %1849 = vmatprep.subr.mxu0 0.0
    %1850 = vmatpush1.xpose.msra.mxu0 0.0
    %1851 = vmatprep.subr.mxu0 0.0
    %1852 = vmatpush1.xpose.msra.mxu0 0.0
    %1853 = vmatprep.mubr.f32.mxu0 0.0
    %1854 = vmatmul.mubr.f32.gmra.mrb[0].mxu0 %v1785
    %v1855 = vpop.f32.mrb[0].mxu0
    %v1856 = vadd.f32 0.0, %v1855
    %v1857 = vpop.f32.mrb[0].mxu0
    %1858 = vdwg.mxu0
    %v1859 = vsel %vm410, %v349, 0
    %v1861 = vsel %vm410, %v363, 0
    %1863 = vmatprep.subr.mxu0 0.0
    %1864 = vmatpush1.xpose.msra.mxu0 %v1861
    %1865 = vmatprep.subr.mxu0 0.0
    %1866 = vmatpush1.xpose.msra.mxu0 0.0
    %1867 = vmatprep.subr.mxu0 0.0
    %1868 = vmatpush1.xpose.msra.mxu0 0.0
    %1869 = vmatprep.subr.mxu0 0.0
    %1870 = vmatpush1.xpose.msra.mxu0 0.0
    %1871 = vmatprep.subr.mxu0 0.0
    %1872 = vmatpush1.xpose.msra.mxu0 0.0
    %1873 = vmatprep.subr.mxu0 0.0
    %1874 = vmatpush1.xpose.msra.mxu0 0.0
    %1875 = vmatprep.subr.mxu0 0.0
    %1876 = vmatpush1.xpose.msra.mxu0 0.0
    %1877 = vmatprep.subr.mxu0 0.0
    %1878 = vmatpush1.xpose.msra.mxu0 0.0
    %1879 = vmatprep.subr.mxu0 0.0
    %1880 = vmatpush1.xpose.msra.mxu0 0.0
    %1881 = vmatprep.subr.mxu0 0.0
    %1882 = vmatpush1.xpose.msra.mxu0 0.0
    %1883 = vmatprep.subr.mxu0 0.0
    %1884 = vmatpush1.xpose.msra.mxu0 0.0
    %1885 = vmatprep.subr.mxu0 0.0
    %1886 = vmatpush1.xpose.msra.mxu0 0.0
    %1887 = vmatprep.subr.mxu0 0.0
    %1888 = vmatpush1.xpose.msra.mxu0 0.0
    %1889 = vmatprep.subr.mxu0 0.0
    %1890 = vmatpush1.xpose.msra.mxu0 0.0
    %1891 = vmatprep.subr.mxu0 0.0
    %1892 = vmatpush1.xpose.msra.mxu0 0.0
    %1893 = vmatprep.subr.mxu0 0.0
    %1894 = vmatpush1.xpose.msra.mxu0 0.0
    %1895 = vmatprep.subr.mxu0 0.0
    %1896 = vmatpush1.xpose.msra.mxu0 0.0
    %1897 = vmatprep.subr.mxu0 0.0
    %1898 = vmatpush1.xpose.msra.mxu0 0.0
    %1899 = vmatprep.subr.mxu0 0.0
    %1900 = vmatpush1.xpose.msra.mxu0 0.0
    %1901 = vmatprep.subr.mxu0 0.0
    %1902 = vmatpush1.xpose.msra.mxu0 0.0
    %1903 = vmatprep.subr.mxu0 0.0
    %1904 = vmatpush1.xpose.msra.mxu0 0.0
    %1905 = vmatprep.subr.mxu0 0.0
    %1906 = vmatpush1.xpose.msra.mxu0 0.0
    %1907 = vmatprep.subr.mxu0 0.0
    %1908 = vmatpush1.xpose.msra.mxu0 0.0
    %1909 = vmatprep.subr.mxu0 0.0
    %1910 = vmatpush1.xpose.msra.mxu0 0.0
    %1911 = vmatprep.subr.mxu0 0.0
    %1912 = vmatpush1.xpose.msra.mxu0 0.0
    %1913 = vmatprep.subr.mxu0 0.0
    %1914 = vmatpush1.xpose.msra.mxu0 0.0
    %1915 = vmatprep.subr.mxu0 0.0
    %1916 = vmatpush1.xpose.msra.mxu0 0.0
    %1917 = vmatprep.subr.mxu0 0.0
    %1918 = vmatpush1.xpose.msra.mxu0 0.0
    %1919 = vmatprep.subr.mxu0 0.0
    %1920 = vmatpush1.xpose.msra.mxu0 0.0
    %1921 = vmatprep.subr.mxu0 0.0
    %1922 = vmatpush1.xpose.msra.mxu0 0.0
    %1923 = vmatprep.subr.mxu0 0.0
    %1924 = vmatpush1.xpose.msra.mxu0 0.0
    %1925 = vmatprep.subr.mxu0 0.0
    %1926 = vmatpush1.xpose.msra.mxu0 0.0
    %1927 = vmatprep.mubr.f32.mxu0 0.0
    %1928 = vmatmul.mubr.f32.gmra.mrb[0].mxu0 %v1859
    %v1929 = vpop.f32.mrb[0].mxu0
    %v1930 = vadd.f32 0.0, %v1929
    %v1931 = vpop.f32.mrb[0].mxu0
    %1932 = vdwg.mxu0
    %v1933 = vsel %vm410, %v351, 0
    %v1935 = vsel %vm410, %v365, 0
    %1937 = vmatprep.subr.mxu0 0.0
    %1938 = vmatpush1.xpose.msra.mxu0 %v1935
    %1939 = vmatprep.subr.mxu0 0.0
    %1940 = vmatpush1.xpose.msra.mxu0 0.0
    %1941 = vmatprep.subr.mxu0 0.0
    %1942 = vmatpush1.xpose.msra.mxu0 0.0
    %1943 = vmatprep.subr.mxu0 0.0
    %1944 = vmatpush1.xpose.msra.mxu0 0.0
    %1945 = vmatprep.subr.mxu0 0.0
    %1946 = vmatpush1.xpose.msra.mxu0 0.0
    %1947 = vmatprep.subr.mxu0 0.0
    %1948 = vmatpush1.xpose.msra.mxu0 0.0
    %1949 = vmatprep.subr.mxu0 0.0
    %1950 = vmatpush1.xpose.msra.mxu0 0.0
    %1951 = vmatprep.subr.mxu0 0.0
    %1952 = vmatpush1.xpose.msra.mxu0 0.0
    %1953 = vmatprep.subr.mxu0 0.0
    %1954 = vmatpush1.xpose.msra.mxu0 0.0
    %1955 = vmatprep.subr.mxu0 0.0
    %1956 = vmatpush1.xpose.msra.mxu0 0.0
    %1957 = vmatprep.subr.mxu0 0.0
    %1958 = vmatpush1.xpose.msra.mxu0 0.0
    %1959 = vmatprep.subr.mxu0 0.0
    %1960 = vmatpush1.xpose.msra.mxu0 0.0
    %1961 = vmatprep.subr.mxu0 0.0
    %1962 = vmatpush1.xpose.msra.mxu0 0.0
    %1963 = vmatprep.subr.mxu0 0.0
    %1964 = vmatpush1.xpose.msra.mxu0 0.0
    %1965 = vmatprep.subr.mxu0 0.0
    %1966 = vmatpush1.xpose.msra.mxu0 0.0
    %1967 = vmatprep.subr.mxu0 0.0
    %1968 = vmatpush1.xpose.msra.mxu0 0.0
    %1969 = vmatprep.subr.mxu0 0.0
    %1970 = vmatpush1.xpose.msra.mxu0 0.0
    %1971 = vmatprep.subr.mxu0 0.0
    %1972 = vmatpush1.xpose.msra.mxu0 0.0
    %1973 = vmatprep.subr.mxu0 0.0
    %1974 = vmatpush1.xpose.msra.mxu0 0.0
    %1975 = vmatprep.subr.mxu0 0.0
    %1976 = vmatpush1.xpose.msra.mxu0 0.0
    %1977 = vmatprep.subr.mxu0 0.0
    %1978 = vmatpush1.xpose.msra.mxu0 0.0
    %1979 = vmatprep.subr.mxu0 0.0
    %1980 = vmatpush1.xpose.msra.mxu0 0.0
    %1981 = vmatprep.subr.mxu0 0.0
    %1982 = vmatpush1.xpose.msra.mxu0 0.0
    %1983 = vmatprep.subr.mxu0 0.0
    %1984 = vmatpush1.xpose.msra.mxu0 0.0
    %1985 = vmatprep.subr.mxu0 0.0
    %1986 = vmatpush1.xpose.msra.mxu0 0.0
    %1987 = vmatprep.subr.mxu0 0.0
    %1988 = vmatpush1.xpose.msra.mxu0 0.0
    %1989 = vmatprep.subr.mxu0 0.0
    %1990 = vmatpush1.xpose.msra.mxu0 0.0
    %1991 = vmatprep.subr.mxu0 0.0
    %1992 = vmatpush1.xpose.msra.mxu0 0.0
    %1993 = vmatprep.subr.mxu0 0.0
    %1994 = vmatpush1.xpose.msra.mxu0 0.0
    %1995 = vmatprep.subr.mxu0 0.0
    %1996 = vmatpush1.xpose.msra.mxu0 0.0
    %1997 = vmatprep.subr.mxu0 0.0
    %1998 = vmatpush1.xpose.msra.mxu0 0.0
    %1999 = vmatprep.subr.mxu0 0.0
    %2000 = vmatpush1.xpose.msra.mxu0 0.0
    %2001 = vmatprep.mubr.f32.mxu0 0.0
    %2002 = vmatmul.mubr.f32.gmra.mrb[0].mxu0 %v1933
    %v2003 = vpop.f32.mrb[0].mxu0
    %v2004 = vadd.f32 0.0, %v2003
    %v2005 = vpop.f32.mrb[0].mxu0
    %2006 = vdwg.mxu0
    %v2007 = vsel %vm410, %v353, 0
    %v2009 = vsel %vm410, %v367, 0
    %2011 = vmatprep.subr.mxu0 0.0
    %2012 = vmatpush1.xpose.msra.mxu0 %v2009
    %2013 = vmatprep.subr.mxu0 0.0
    %2014 = vmatpush1.xpose.msra.mxu0 0.0
    %2015 = vmatprep.subr.mxu0 0.0
    %2016 = vmatpush1.xpose.msra.mxu0 0.0
    %2017 = vmatprep.subr.mxu0 0.0
    %2018 = vmatpush1.xpose.msra.mxu0 0.0
    %2019 = vmatprep.subr.mxu0 0.0
    %2020 = vmatpush1.xpose.msra.mxu0 0.0
    %2021 = vmatprep.subr.mxu0 0.0
    %2022 = vmatpush1.xpose.msra.mxu0 0.0
    %2023 = vmatprep.subr.mxu0 0.0
    %2024 = vmatpush1.xpose.msra.mxu0 0.0
    %2025 = vmatprep.subr.mxu0 0.0
    %2026 = vmatpush1.xpose.msra.mxu0 0.0
    %2027 = vmatprep.subr.mxu0 0.0
    %2028 = vmatpush1.xpose.msra.mxu0 0.0
    %2029 = vmatprep.subr.mxu0 0.0
    %2030 = vmatpush1.xpose.msra.mxu0 0.0
    %2031 = vmatprep.subr.mxu0 0.0
    %2032 = vmatpush1.xpose.msra.mxu0 0.0
    %2033 = vmatprep.subr.mxu0 0.0
    %2034 = vmatpush1.xpose.msra.mxu0 0.0
    %2035 = vmatprep.subr.mxu0 0.0
    %2036 = vmatpush1.xpose.msra.mxu0 0.0
    %2037 = vmatprep.subr.mxu0 0.0
    %2038 = vmatpush1.xpose.msra.mxu0 0.0
    %2039 = vmatprep.subr.mxu0 0.0
    %2040 = vmatpush1.xpose.msra.mxu0 0.0
    %2041 = vmatprep.subr.mxu0 0.0
    %2042 = vmatpush1.xpose.msra.mxu0 0.0
    %2043 = vmatprep.subr.mxu0 0.0
    %2044 = vmatpush1.xpose.msra.mxu0 0.0
    %2045 = vmatprep.subr.mxu0 0.0
    %2046 = vmatpush1.xpose.msra.mxu0 0.0
    %2047 = vmatprep.subr.mxu0 0.0
    %2048 = vmatpush1.xpose.msra.mxu0 0.0
    %2049 = vmatprep.subr.mxu0 0.0
    %2050 = vmatpush1.xpose.msra.mxu0 0.0
    %2051 = vmatprep.subr.mxu0 0.0
    %2052 = vmatpush1.xpose.msra.mxu0 0.0
    %2053 = vmatprep.subr.mxu0 0.0
    %2054 = vmatpush1.xpose.msra.mxu0 0.0
    %2055 = vmatprep.subr.mxu0 0.0
    %2056 = vmatpush1.xpose.msra.mxu0 0.0
    %2057 = vmatprep.subr.mxu0 0.0
    %2058 = vmatpush1.xpose.msra.mxu0 0.0
    %2059 = vmatprep.subr.mxu0 0.0
    %2060 = vmatpush1.xpose.msra.mxu0 0.0
    %2061 = vmatprep.subr.mxu0 0.0
    %2062 = vmatpush1.xpose.msra.mxu0 0.0
    %2063 = vmatprep.subr.mxu0 0.0
    %2064 = vmatpush1.xpose.msra.mxu0 0.0
    %2065 = vmatprep.subr.mxu0 0.0
    %2066 = vmatpush1.xpose.msra.mxu0 0.0
    %2067 = vmatprep.subr.mxu0 0.0
    %2068 = vmatpush1.xpose.msra.mxu0 0.0
    %2069 = vmatprep.subr.mxu0 0.0
    %2070 = vmatpush1.xpose.msra.mxu0 0.0
    %2071 = vmatprep.subr.mxu0 0.0
    %2072 = vmatpush1.xpose.msra.mxu0 0.0
    %2073 = vmatprep.subr.mxu0 0.0
    %2074 = vmatpush1.xpose.msra.mxu0 0.0
    %2075 = vmatprep.mubr.f32.mxu0 0.0
    %2076 = vmatmul.mubr.f32.gmra.mrb[0].mxu0 %v2007
    %v2077 = vpop.f32.mrb[0].mxu0
    %v2078 = vadd.f32 0.0, %v2077
    %v2079 = vpop.f32.mrb[0].mxu0
    %2080 = vdwg.mxu0
    %v2081 = vsel %vm410, %v355, 0
    %v2083 = vsel %vm410, %v369, 0
    %2085 = vmatprep.subr.mxu0 0.0
    %2086 = vmatpush1.xpose.msra.mxu0 %v2083
    %2087 = vmatprep.subr.mxu0 0.0
    %2088 = vmatpush1.xpose.msra.mxu0 0.0
    %2089 = vmatprep.subr.mxu0 0.0
    %2090 = vmatpush1.xpose.msra.mxu0 0.0
    %2091 = vmatprep.subr.mxu0 0.0
    %2092 = vmatpush1.xpose.msra.mxu0 0.0
    %2093 = vmatprep.subr.mxu0 0.0
    %2094 = vmatpush1.xpose.msra.mxu0 0.0
    %2095 = vmatprep.subr.mxu0 0.0
    %2096 = vmatpush1.xpose.msra.mxu0 0.0
    %2097 = vmatprep.subr.mxu0 0.0
    %2098 = vmatpush1.xpose.msra.mxu0 0.0
    %2099 = vmatprep.subr.mxu0 0.0
    %2100 = vmatpush1.xpose.msra.mxu0 0.0
    %2101 = vmatprep.subr.mxu0 0.0
    %2102 = vmatpush1.xpose.msra.mxu0 0.0
    %2103 = vmatprep.subr.mxu0 0.0
    %2104 = vmatpush1.xpose.msra.mxu0 0.0
    %2105 = vmatprep.subr.mxu0 0.0
    %2106 = vmatpush1.xpose.msra.mxu0 0.0
    %2107 = vmatprep.subr.mxu0 0.0
    %2108 = vmatpush1.xpose.msra.mxu0 0.0
    %2109 = vmatprep.subr.mxu0 0.0
    %2110 = vmatpush1.xpose.msra.mxu0 0.0
    %2111 = vmatprep.subr.mxu0 0.0
    %2112 = vmatpush1.xpose.msra.mxu0 0.0
    %2113 = vmatprep.subr.mxu0 0.0
    %2114 = vmatpush1.xpose.msra.mxu0 0.0
    %2115 = vmatprep.subr.mxu0 0.0
    %2116 = vmatpush1.xpose.msra.mxu0 0.0
    %2117 = vmatprep.subr.mxu0 0.0
    %2118 = vmatpush1.xpose.msra.mxu0 0.0
    %2119 = vmatprep.subr.mxu0 0.0
    %2120 = vmatpush1.xpose.msra.mxu0 0.0
    %2121 = vmatprep.subr.mxu0 0.0
    %2122 = vmatpush1.xpose.msra.mxu0 0.0
    %2123 = vmatprep.subr.mxu0 0.0
    %2124 = vmatpush1.xpose.msra.mxu0 0.0
    %2125 = vmatprep.subr.mxu0 0.0
    %2126 = vmatpush1.xpose.msra.mxu0 0.0
    %2127 = vmatprep.subr.mxu0 0.0
    %2128 = vmatpush1.xpose.msra.mxu0 0.0
    %2129 = vmatprep.subr.mxu0 0.0
    %2130 = vmatpush1.xpose.msra.mxu0 0.0
    %2131 = vmatprep.subr.mxu0 0.0
    %2132 = vmatpush1.xpose.msra.mxu0 0.0
    %2133 = vmatprep.subr.mxu0 0.0
    %2134 = vmatpush1.xpose.msra.mxu0 0.0
    %2135 = vmatprep.subr.mxu0 0.0
    %2136 = vmatpush1.xpose.msra.mxu0 0.0
    %2137 = vmatprep.subr.mxu0 0.0
    %2138 = vmatpush1.xpose.msra.mxu0 0.0
    %2139 = vmatprep.subr.mxu0 0.0
    %2140 = vmatpush1.xpose.msra.mxu0 0.0
    %2141 = vmatprep.subr.mxu0 0.0
    %2142 = vmatpush1.xpose.msra.mxu0 0.0
    %2143 = vmatprep.subr.mxu0 0.0
    %2144 = vmatpush1.xpose.msra.mxu0 0.0
    %2145 = vmatprep.subr.mxu0 0.0
    %2146 = vmatpush1.xpose.msra.mxu0 0.0
    %2147 = vmatprep.subr.mxu0 0.0
    %2148 = vmatpush1.xpose.msra.mxu0 0.0
    %2149 = vmatprep.mubr.f32.mxu0 0.0
    %2150 = vmatmul.mubr.f32.gmra.mrb[0].mxu0 %v2081
    %v2151 = vpop.f32.mrb[0].mxu0
    %v2152 = vadd.f32 0.0, %v2151
    %v2153 = vpop.f32.mrb[0].mxu0
    %2154 = vdwg.mxu0
    %v2155 = vmul.f32 %v1634, 0.35355338
    %v2156 = vmul.f32 %v1708, 0.35355338
    %v2157 = vmul.f32 %v1782, 0.35355338
    %v2158 = vmul.f32 %v1856, 0.35355338
    %v2159 = vmul.f32 %v1930, 0.35355338
    %v2160 = vmul.f32 %v2004, 0.35355338
    %v2161 = vmul.f32 %v2078, 0.35355338
    %v2162 = vmul.f32 %v2152, 0.35355338
    %2163 = vset.pattern.permute.xlu0 0
    %2164 = vperm.xlu0 %2163, %v1435
    %v2165 = vpop.permute.xlu0 %2164
    %2166 = vset.pattern.permute.xlu0 0
    %2167 = vperm.xlu0 %2166, %v1436
    %v2168 = vpop.permute.xlu0 %2167
    %2169 = vset.pattern.permute.xlu0 0
    %2170 = vperm.xlu0 %2169, %v1437
    %v2171 = vpop.permute.xlu0 %2170
    %2172 = vset.pattern.permute.xlu0 0
    %2173 = vperm.xlu0 %2172, %v1438
    %v2174 = vpop.permute.xlu0 %2173
    %2175 = vset.pattern.permute.xlu0 0
    %2176 = vperm.xlu0 %2175, %v1439
    %v2177 = vpop.permute.xlu0 %2176
    %2178 = vset.pattern.permute.xlu0 0
    %2179 = vperm.xlu0 %2178, %v1440
    %v2180 = vpop.permute.xlu0 %2179
    %2181 = vset.pattern.permute.xlu0 0
    %2182 = vperm.xlu0 %2181, %v1441
    %v2183 = vpop.permute.xlu0 %2182
    %2184 = vset.pattern.permute.xlu0 0
    %2185 = vperm.xlu0 %2184, %v1442
    %v2186 = vpop.permute.xlu0 %2185
    %2187 = vset.pattern.permute.xlu0 0
    %2188 = vperm.xlu0 %2187, %v1443
    %v2189 = vpop.permute.xlu0 %2188
    %2190 = vset.pattern.permute.xlu0 0
    %2191 = vperm.xlu0 %2190, %v1444
    %v2192 = vpop.permute.xlu0 %2191
    %2193 = vset.pattern.permute.xlu0 0
    %2194 = vperm.xlu0 %2193, %v1445
    %v2195 = vpop.permute.xlu0 %2194
    %2196 = vset.pattern.permute.xlu0 0
    %2197 = vperm.xlu0 %2196, %v1446
    %v2198 = vpop.permute.xlu0 %2197
    %2199 = vset.pattern.permute.xlu0 0
    %2200 = vperm.xlu0 %2199, %v1447
    %v2201 = vpop.permute.xlu0 %2200
    %2202 = vset.pattern.permute.xlu0 0
    %2203 = vperm.xlu0 %2202, %v1448
    %v2204 = vpop.permute.xlu0 %2203
    %2205 = vset.pattern.permute.xlu0 0
    %2206 = vperm.xlu0 %2205, %v1449
    %v2207 = vpop.permute.xlu0 %2206
    %2208 = vset.pattern.permute.xlu0 0
    %2209 = vperm.xlu0 %2208, %v1450
    %v2210 = vpop.permute.xlu0 %2209
    %2211 = vset.pattern.permute.xlu0 0
    %2212 = vperm.xlu0 %2211, %v1468
    %v2213 = vpop.permute.xlu0 %2212
    %2214 = vset.pattern.permute.xlu0 0
    %2215 = vperm.xlu0 %2214, %v1470
    %v2216 = vpop.permute.xlu0 %2215
    %2217 = vset.pattern.permute.xlu0 0
    %2218 = vperm.xlu0 %2217, %v1472
    %v2219 = vpop.permute.xlu0 %2218
    %2220 = vset.pattern.permute.xlu0 0
    %2221 = vperm.xlu0 %2220, %v1474
    %v2222 = vpop.permute.xlu0 %2221
    %2223 = vset.pattern.permute.xlu0 0
    %2224 = vperm.xlu0 %2223, %v1476
    %v2225 = vpop.permute.xlu0 %2224
    %2226 = vset.pattern.permute.xlu0 0
    %2227 = vperm.xlu0 %2226, %v1478
    %v2228 = vpop.permute.xlu0 %2227
    %2229 = vset.pattern.permute.xlu0 0
    %2230 = vperm.xlu0 %2229, %v1480
    %v2231 = vpop.permute.xlu0 %2230
    %2232 = vset.pattern.permute.xlu0 0
    %2233 = vperm.xlu0 %2232, %v1482
    %v2234 = vpop.permute.xlu0 %2233
    %2235 = vset.pattern.permute.xlu0 0
    %2236 = vperm.xlu0 %2235, %v1484
    %v2237 = vpop.permute.xlu0 %2236
    %2238 = vset.pattern.permute.xlu0 0
    %2239 = vperm.xlu0 %2238, %v1486
    %v2240 = vpop.permute.xlu0 %2239
    %2241 = vset.pattern.permute.xlu0 0
    %2242 = vperm.xlu0 %2241, %v1488
    %v2243 = vpop.permute.xlu0 %2242
    %2244 = vset.pattern.permute.xlu0 0
    %2245 = vperm.xlu0 %2244, %v1490
    %v2246 = vpop.permute.xlu0 %2245
    %2247 = vset.pattern.permute.xlu0 0
    %2248 = vperm.xlu0 %2247, %v1492
    %v2249 = vpop.permute.xlu0 %2248
    %2250 = vset.pattern.permute.xlu0 0
    %2251 = vperm.xlu0 %2250, %v1494
    %v2252 = vpop.permute.xlu0 %2251
    %2253 = vset.pattern.permute.xlu0 0
    %2254 = vperm.xlu0 %2253, %v1496
    %v2255 = vpop.permute.xlu0 %2254
    %2256 = vset.pattern.permute.xlu0 0
    %2257 = vperm.xlu0 %2256, %v1498
    %v2258 = vpop.permute.xlu0 %2257
    %2259 = vset.pattern.permute.xlu0 0
    %2260 = vperm.xlu0 %2259, %v1500
    %v2261 = vpop.permute.xlu0 %2260
    %2262 = vset.pattern.permute.xlu0 0
    %2263 = vperm.xlu0 %2262, %v1502
    %v2264 = vpop.permute.xlu0 %2263
    %2265 = vset.pattern.permute.xlu0 0
    %2266 = vperm.xlu0 %2265, %v1504
    %v2267 = vpop.permute.xlu0 %2266
    %2268 = vset.pattern.permute.xlu0 0
    %2269 = vperm.xlu0 %2268, %v1506
    %v2270 = vpop.permute.xlu0 %2269
    %2271 = vset.pattern.permute.xlu0 0
    %2272 = vperm.xlu0 %2271, %v1508
    %v2273 = vpop.permute.xlu0 %2272
    %2274 = vset.pattern.permute.xlu0 0
    %2275 = vperm.xlu0 %2274, %v1510
    %v2276 = vpop.permute.xlu0 %2275
    %2277 = vset.pattern.permute.xlu0 0
    %2278 = vperm.xlu0 %2277, %v1512
    %v2279 = vpop.permute.xlu0 %2278
    %2280 = vset.pattern.permute.xlu0 0
    %2281 = vperm.xlu0 %2280, %v1514
    %v2282 = vpop.permute.xlu0 %2281
    %2283 = vset.pattern.permute.xlu0 0
    %2284 = vperm.xlu0 %2283, %v1516
    %v2285 = vpop.permute.xlu0 %2284
    %2286 = vset.pattern.permute.xlu0 0
    %2287 = vperm.xlu0 %2286, %v1518
    %v2288 = vpop.permute.xlu0 %2287
    %2289 = vset.pattern.permute.xlu0 0
    %2290 = vperm.xlu0 %2289, %v1520
    %v2291 = vpop.permute.xlu0 %2290
    %2292 = vset.pattern.permute.xlu0 0
    %2293 = vperm.xlu0 %2292, %v1522
    %v2294 = vpop.permute.xlu0 %2293
    %2295 = vset.pattern.permute.xlu0 0
    %2296 = vperm.xlu0 %2295, %v1524
    %v2297 = vpop.permute.xlu0 %2296
    %2298 = vset.pattern.permute.xlu0 0
    %2299 = vperm.xlu0 %2298, %v1526
    %v2300 = vpop.permute.xlu0 %2299
    %2301 = vset.pattern.permute.xlu0 0
    %2302 = vperm.xlu0 %2301, %v1528
    %v2303 = vpop.permute.xlu0 %2302
    %2304 = vset.pattern.permute.xlu0 0
    %2305 = vperm.xlu0 %2304, %v1530
    %v2306 = vpop.permute.xlu0 %2305
    %2307 = vset.pattern.permute.xlu0 0
    %2308 = vperm.xlu0 %2307, %v1532
    %v2309 = vpop.permute.xlu0 %2308
    %2310 = vset.pattern.permute.xlu0 0
    %2311 = vperm.xlu0 %2310, %v1534
    %v2312 = vpop.permute.xlu0 %2311
    %2313 = vset.pattern.permute.xlu0 0
    %2314 = vperm.xlu0 %2313, %v1536
    %v2315 = vpop.permute.xlu0 %2314
    %2316 = vset.pattern.permute.xlu0 0
    %2317 = vperm.xlu0 %2316, %v1538
    %v2318 = vpop.permute.xlu0 %2317
    %2319 = vset.pattern.permute.xlu0 0
    %2320 = vperm.xlu0 %2319, %v1540
    %v2321 = vpop.permute.xlu0 %2320
    %2322 = vset.pattern.permute.xlu0 0
    %2323 = vperm.xlu0 %2322, %v1542
    %v2324 = vpop.permute.xlu0 %2323
    %2325 = vset.pattern.permute.xlu0 0
    %2326 = vperm.xlu0 %2325, %v1544
    %v2327 = vpop.permute.xlu0 %2326
    %2328 = vset.pattern.permute.xlu0 0
    %2329 = vperm.xlu0 %2328, %v1546
    %v2330 = vpop.permute.xlu0 %2329
    %2331 = vset.pattern.permute.xlu0 0
    %2332 = vperm.xlu0 %2331, %v1548
    %v2333 = vpop.permute.xlu0 %2332
    %2334 = vset.pattern.permute.xlu0 0
    %2335 = vperm.xlu0 %2334, %v1550
    %v2336 = vpop.permute.xlu0 %2335
    %2337 = vset.pattern.permute.xlu0 0
    %2338 = vperm.xlu0 %2337, %v1552
    %v2339 = vpop.permute.xlu0 %2338
    %2340 = vset.pattern.permute.xlu0 0
    %2341 = vperm.xlu0 %2340, %v1554
    %v2342 = vpop.permute.xlu0 %2341
    %2343 = vset.pattern.permute.xlu0 0
    %2344 = vperm.xlu0 %2343, %v1556
    %v2345 = vpop.permute.xlu0 %2344
    %2346 = vset.pattern.permute.xlu0 0
    %2347 = vperm.xlu0 %2346, %v1558
    %v2348 = vpop.permute.xlu0 %2347
    %2349 = vset.pattern.permute.xlu0 0
    %2350 = vperm.xlu0 %2349, %v1560
    %v2351 = vpop.permute.xlu0 %2350
    %2352 = vset.pattern.permute.xlu0 0
    %2353 = vperm.xlu0 %2352, %v1562
    %v2354 = vpop.permute.xlu0 %2353
    %v2355 = vlaneseq
    %v2356 = vand.u32 %v2355, 127
    %v2357 = vlaneseq
    %v2358 = vshrl.u32 %v2357, 7
    %v2359 = vsub.s32 %v2356, %v2358
    %v2360 = vrot.slane %v2165, %v2359
    %v2361 = vlaneseq
    %v2362 = vshrl.u32 %v2361, 7
    %v2363 = vsub.s32 %v2356, %v2362
    %v2364 = vrot.slane %v2168, %v2363
    %v2365 = vlaneseq
    %v2366 = vshrl.u32 %v2365, 7
    %v2367 = vsub.s32 %v2356, %v2366
    %v2368 = vrot.slane %v2171, %v2367
    %v2369 = vlaneseq
    %v2370 = vshrl.u32 %v2369, 7
    %v2371 = vsub.s32 %v2356, %v2370
    %v2372 = vrot.slane %v2174, %v2371
    %v2373 = vlaneseq
    %v2374 = vshrl.u32 %v2373, 7
    %v2375 = vsub.s32 %v2356, %v2374
    %v2376 = vrot.slane %v2177, %v2375
    %v2377 = vlaneseq
    %v2378 = vshrl.u32 %v2377, 7
    %v2379 = vsub.s32 %v2356, %v2378
    %v2380 = vrot.slane %v2180, %v2379
    %v2381 = vlaneseq
    %v2382 = vshrl.u32 %v2381, 7
    %v2383 = vsub.s32 %v2356, %v2382
    %v2384 = vrot.slane %v2183, %v2383
    %v2385 = vlaneseq
    %v2386 = vshrl.u32 %v2385, 7
    %v2387 = vsub.s32 %v2356, %v2386
    %v2388 = vrot.slane %v2186, %v2387
    %v2389 = vlaneseq
    %v2390 = vshrl.u32 %v2389, 7
    %v2391 = vsub.s32 %v2356, %v2390
    %v2392 = vrot.slane %v2189, %v2391
    %v2393 = vlaneseq
    %v2394 = vshrl.u32 %v2393, 7
    %v2395 = vsub.s32 %v2356, %v2394
    %v2396 = vrot.slane %v2192, %v2395
    %v2397 = vlaneseq
    %v2398 = vshrl.u32 %v2397, 7
    %v2399 = vsub.s32 %v2356, %v2398
    %v2400 = vrot.slane %v2195, %v2399
    %v2401 = vlaneseq
    %v2402 = vshrl.u32 %v2401, 7
    %v2403 = vsub.s32 %v2356, %v2402
    %v2404 = vrot.slane %v2198, %v2403
    %v2405 = vlaneseq
    %v2406 = vshrl.u32 %v2405, 7
    %v2407 = vsub.s32 %v2356, %v2406
    %v2408 = vrot.slane %v2201, %v2407
    %v2409 = vlaneseq
    %v2410 = vshrl.u32 %v2409, 7
    %v2411 = vsub.s32 %v2356, %v2410
    %v2412 = vrot.slane %v2204, %v2411
    %v2413 = vlaneseq
    %v2414 = vshrl.u32 %v2413, 7
    %v2415 = vsub.s32 %v2356, %v2414
    %v2416 = vrot.slane %v2207, %v2415
    %v2417 = vlaneseq
    %v2418 = vshrl.u32 %v2417, 7
    %v2419 = vsub.s32 %v2356, %v2418
    %v2420 = vrot.slane %v2210, %v2419
    %v2421 = vlaneseq
    %v2422 = vshrl.u32 %v2421, 7
    %v2423 = vsub.s32 %v2356, %v2422
    %v2424 = vrot.slane %v2213, %v2423
    %v2425 = vlaneseq
    %v2426 = vshrl.u32 %v2425, 7
    %v2427 = vsub.s32 %v2356, %v2426
    %v2428 = vrot.slane %v2216, %v2427
    %v2429 = vlaneseq
    %v2430 = vshrl.u32 %v2429, 7
    %v2431 = vsub.s32 %v2356, %v2430
    %v2432 = vrot.slane %v2219, %v2431
    %v2433 = vlaneseq
    %v2434 = vshrl.u32 %v2433, 7
    %v2435 = vsub.s32 %v2356, %v2434
    %v2436 = vrot.slane %v2222, %v2435
    %v2437 = vlaneseq
    %v2438 = vshrl.u32 %v2437, 7
    %v2439 = vsub.s32 %v2356, %v2438
    %v2440 = vrot.slane %v2225, %v2439
    %v2441 = vlaneseq
    %v2442 = vshrl.u32 %v2441, 7
    %v2443 = vsub.s32 %v2356, %v2442
    %v2444 = vrot.slane %v2228, %v2443
    %v2445 = vlaneseq
    %v2446 = vshrl.u32 %v2445, 7
    %v2447 = vsub.s32 %v2356, %v2446
    %v2448 = vrot.slane %v2231, %v2447
    %v2449 = vlaneseq
    %v2450 = vshrl.u32 %v2449, 7
    %v2451 = vsub.s32 %v2356, %v2450
    %v2452 = vrot.slane %v2234, %v2451
    %v2453 = vlaneseq
    %v2454 = vshrl.u32 %v2453, 7
    %v2455 = vsub.s32 %v2356, %v2454
    %v2456 = vrot.slane %v2237, %v2455
    %v2457 = vlaneseq
    %v2458 = vshrl.u32 %v2457, 7
    %v2459 = vsub.s32 %v2356, %v2458
    %v2460 = vrot.slane %v2240, %v2459
    %v2461 = vlaneseq
    %v2462 = vshrl.u32 %v2461, 7
    %v2463 = vsub.s32 %v2356, %v2462
    %v2464 = vrot.slane %v2243, %v2463
    %v2465 = vlaneseq
    %v2466 = vshrl.u32 %v2465, 7
    %v2467 = vsub.s32 %v2356, %v2466
    %v2468 = vrot.slane %v2246, %v2467
    %v2469 = vlaneseq
    %v2470 = vshrl.u32 %v2469, 7
    %v2471 = vsub.s32 %v2356, %v2470
    %v2472 = vrot.slane %v2249, %v2471
    %v2473 = vlaneseq
    %v2474 = vshrl.u32 %v2473, 7
    %v2475 = vsub.s32 %v2356, %v2474
    %v2476 = vrot.slane %v2252, %v2475
    %v2477 = vlaneseq
    %v2478 = vshrl.u32 %v2477, 7
    %v2479 = vsub.s32 %v2356, %v2478
    %v2480 = vrot.slane %v2255, %v2479
    %v2481 = vlaneseq
    %v2482 = vshrl.u32 %v2481, 7
    %v2483 = vsub.s32 %v2356, %v2482
    %v2484 = vrot.slane %v2258, %v2483
    %v2485 = vlaneseq
    %v2486 = vshrl.u32 %v2485, 7
    %v2487 = vsub.s32 %v2356, %v2486
    %v2488 = vrot.slane %v2261, %v2487
    %v2489 = vlaneseq
    %v2490 = vshrl.u32 %v2489, 7
    %v2491 = vsub.s32 %v2356, %v2490
    %v2492 = vrot.slane %v2264, %v2491
    %v2493 = vlaneseq
    %v2494 = vshrl.u32 %v2493, 7
    %v2495 = vsub.s32 %v2356, %v2494
    %v2496 = vrot.slane %v2267, %v2495
    %v2497 = vlaneseq
    %v2498 = vshrl.u32 %v2497, 7
    %v2499 = vsub.s32 %v2356, %v2498
    %v2500 = vrot.slane %v2270, %v2499
    %v2501 = vlaneseq
    %v2502 = vshrl.u32 %v2501, 7
    %v2503 = vsub.s32 %v2356, %v2502
    %v2504 = vrot.slane %v2273, %v2503
    %v2505 = vlaneseq
    %v2506 = vshrl.u32 %v2505, 7
    %v2507 = vsub.s32 %v2356, %v2506
    %v2508 = vrot.slane %v2276, %v2507
    %v2509 = vlaneseq
    %v2510 = vshrl.u32 %v2509, 7
    %v2511 = vsub.s32 %v2356, %v2510
    %v2512 = vrot.slane %v2279, %v2511
    %v2513 = vlaneseq
    %v2514 = vshrl.u32 %v2513, 7
    %v2515 = vsub.s32 %v2356, %v2514
    %v2516 = vrot.slane %v2282, %v2515
    %v2517 = vlaneseq
    %v2518 = vshrl.u32 %v2517, 7
    %v2519 = vsub.s32 %v2356, %v2518
    %v2520 = vrot.slane %v2285, %v2519
    %v2521 = vlaneseq
    %v2522 = vshrl.u32 %v2521, 7
    %v2523 = vsub.s32 %v2356, %v2522
    %v2524 = vrot.slane %v2288, %v2523
    %v2525 = vlaneseq
    %v2526 = vshrl.u32 %v2525, 7
    %v2527 = vsub.s32 %v2356, %v2526
    %v2528 = vrot.slane %v2291, %v2527
    %v2529 = vlaneseq
    %v2530 = vshrl.u32 %v2529, 7
    %v2531 = vsub.s32 %v2356, %v2530
    %v2532 = vrot.slane %v2294, %v2531
    %v2533 = vlaneseq
    %v2534 = vshrl.u32 %v2533, 7
    %v2535 = vsub.s32 %v2356, %v2534
    %v2536 = vrot.slane %v2297, %v2535
    %v2537 = vlaneseq
    %v2538 = vshrl.u32 %v2537, 7
    %v2539 = vsub.s32 %v2356, %v2538
    %v2540 = vrot.slane %v2300, %v2539
    %v2541 = vlaneseq
    %v2542 = vshrl.u32 %v2541, 7
    %v2543 = vsub.s32 %v2356, %v2542
    %v2544 = vrot.slane %v2303, %v2543
    %v2545 = vlaneseq
    %v2546 = vshrl.u32 %v2545, 7
    %v2547 = vsub.s32 %v2356, %v2546
    %v2548 = vrot.slane %v2306, %v2547
    %v2549 = vlaneseq
    %v2550 = vshrl.u32 %v2549, 7
    %v2551 = vsub.s32 %v2356, %v2550
    %v2552 = vrot.slane %v2309, %v2551
    %v2553 = vlaneseq
    %v2554 = vshrl.u32 %v2553, 7
    %v2555 = vsub.s32 %v2356, %v2554
    %v2556 = vrot.slane %v2312, %v2555
    %v2557 = vlaneseq
    %v2558 = vshrl.u32 %v2557, 7
    %v2559 = vsub.s32 %v2356, %v2558
    %v2560 = vrot.slane %v2315, %v2559
    %v2561 = vlaneseq
    %v2562 = vshrl.u32 %v2561, 7
    %v2563 = vsub.s32 %v2356, %v2562
    %v2564 = vrot.slane %v2318, %v2563
    %v2565 = vlaneseq
    %v2566 = vshrl.u32 %v2565, 7
    %v2567 = vsub.s32 %v2356, %v2566
    %v2568 = vrot.slane %v2321, %v2567
    %v2569 = vlaneseq
    %v2570 = vshrl.u32 %v2569, 7
    %v2571 = vsub.s32 %v2356, %v2570
    %v2572 = vrot.slane %v2324, %v2571
    %v2573 = vlaneseq
    %v2574 = vshrl.u32 %v2573, 7
    %v2575 = vsub.s32 %v2356, %v2574
    %v2576 = vrot.slane %v2327, %v2575
    %v2577 = vlaneseq
    %v2578 = vshrl.u32 %v2577, 7
    %v2579 = vsub.s32 %v2356, %v2578
    %v2580 = vrot.slane %v2330, %v2579
    %v2581 = vlaneseq
    %v2582 = vshrl.u32 %v2581, 7
    %v2583 = vsub.s32 %v2356, %v2582
    %v2584 = vrot.slane %v2333, %v2583
    %v2585 = vlaneseq
    %v2586 = vshrl.u32 %v2585, 7
    %v2587 = vsub.s32 %v2356, %v2586
    %v2588 = vrot.slane %v2336, %v2587
    %v2589 = vlaneseq
    %v2590 = vshrl.u32 %v2589, 7
    %v2591 = vsub.s32 %v2356, %v2590
    %v2592 = vrot.slane %v2339, %v2591
    %v2593 = vlaneseq
    %v2594 = vshrl.u32 %v2593, 7
    %v2595 = vsub.s32 %v2356, %v2594
    %v2596 = vrot.slane %v2342, %v2595
    %v2597 = vlaneseq
    %v2598 = vshrl.u32 %v2597, 7
    %v2599 = vsub.s32 %v2356, %v2598
    %v2600 = vrot.slane %v2345, %v2599
    %v2601 = vlaneseq
    %v2602 = vshrl.u32 %v2601, 7
    %v2603 = vsub.s32 %v2356, %v2602
    %v2604 = vrot.slane %v2348, %v2603
    %v2605 = vlaneseq
    %v2606 = vshrl.u32 %v2605, 7
    %v2607 = vsub.s32 %v2356, %v2606
    %v2608 = vrot.slane %v2351, %v2607
    %v2609 = vlaneseq
    %v2610 = vshrl.u32 %v2609, 7
    %v2611 = vsub.s32 %v2356, %v2610
    %v2612 = vrot.slane %v2354, %v2611
    %vm2613 = vcmask 1041409
    %v2614 = vsel %vm2613, %v2364, %v2360
    %vm2615 = vcmask 1042434
    %v2616 = vsel %vm2615, %v2368, %v2614
    %vm2617 = vcmask 1043459
    %v2618 = vsel %vm2617, %v2372, %v2616
    %vm2619 = vcmask 1044484
    %v2620 = vsel %vm2619, %v2376, %v2618
    %vm2621 = vcmask 1045509
    %v2622 = vsel %vm2621, %v2380, %v2620
    %vm2623 = vcmask 1046534
    %v2624 = vsel %vm2623, %v2384, %v2622
    %vm2625 = vcmask 1047559
    %v2626 = vsel %vm2625, %v2388, %v2624
    %v2627 = vsel %vm2613, %v2396, %v2392
    %v2628 = vsel %vm2615, %v2400, %v2627
    %v2629 = vsel %vm2617, %v2404, %v2628
    %v2630 = vsel %vm2619, %v2408, %v2629
    %v2631 = vsel %vm2621, %v2412, %v2630
    %v2632 = vsel %vm2623, %v2416, %v2631
    %v2633 = vsel %vm2625, %v2420, %v2632
    %v2634 = vsel %vm2613, %v2428, %v2424
    %v2635 = vsel %vm2615, %v2432, %v2634
    %v2636 = vsel %vm2617, %v2436, %v2635
    %v2637 = vsel %vm2619, %v2440, %v2636
    %v2638 = vsel %vm2621, %v2444, %v2637
    %v2639 = vsel %vm2623, %v2448, %v2638
    %v2640 = vsel %vm2625, %v2452, %v2639
    %v2641 = vsel %vm2613, %v2460, %v2456
    %v2642 = vsel %vm2615, %v2464, %v2641
    %v2643 = vsel %vm2617, %v2468, %v2642
    %v2644 = vsel %vm2619, %v2472, %v2643
    %v2645 = vsel %vm2621, %v2476, %v2644
    %v2646 = vsel %vm2623, %v2480, %v2645
    %v2647 = vsel %vm2625, %v2484, %v2646
    %v2648 = vsel %vm2613, %v2492, %v2488
    %v2649 = vsel %vm2615, %v2496, %v2648
    %v2650 = vsel %vm2617, %v2500, %v2649
    %v2651 = vsel %vm2619, %v2504, %v2650
    %v2652 = vsel %vm2621, %v2508, %v2651
    %v2653 = vsel %vm2623, %v2512, %v2652
    %v2654 = vsel %vm2625, %v2516, %v2653
    %v2655 = vsel %vm2613, %v2524, %v2520
    %v2656 = vsel %vm2615, %v2528, %v2655
    %v2657 = vsel %vm2617, %v2532, %v2656
    %v2658 = vsel %vm2619, %v2536, %v2657
    %v2659 = vsel %vm2621, %v2540, %v2658
    %v2660 = vsel %vm2623, %v2544, %v2659
    %v2661 = vsel %vm2625, %v2548, %v2660
    %v2662 = vsel %vm2613, %v2556, %v2552
    %v2663 = vsel %vm2615, %v2560, %v2662
    %v2664 = vsel %vm2617, %v2564, %v2663
    %v2665 = vsel %vm2619, %v2568, %v2664
    %v2666 = vsel %vm2621, %v2572, %v2665
    %v2667 = vsel %vm2623, %v2576, %v2666
    %v2668 = vsel %vm2625, %v2580, %v2667
    %v2669 = vsel %vm2613, %v2588, %v2584
    %v2670 = vsel %vm2615, %v2592, %v2669
    %v2671 = vsel %vm2617, %v2596, %v2670
    %v2672 = vsel %vm2619, %v2600, %v2671
    %v2673 = vsel %vm2621, %v2604, %v2672
    %v2674 = vsel %vm2623, %v2608, %v2673
    %v2675 = vsel %vm2625, %v2612, %v2674
    %v2684 = vadd.f32 %v2155, %v2626
    %v2685 = vadd.f32 %v2156, %v2633
    %v2686 = vadd.f32 %v2157, %v2640
    %v2687 = vadd.f32 %v2158, %v2647
    %v2688 = vadd.f32 %v2159, %v2654
    %v2689 = vadd.f32 %v2160, %v2661
    %v2690 = vadd.f32 %v2161, %v2668
    %v2691 = vadd.f32 %v2162, %v2675
    %v2692 = vsel %vm410, %v2684, -inf
    %2693 = vmax.xlane.f32.xlu0 %v2692
    %v2694 = vpop.xlane.xlu0 %2693
    %v2695 = vsel %vm410, %v2685, -inf
    %2696 = vmax.xlane.f32.xlu0 %v2695
    %v2697 = vpop.xlane.xlu0 %2696
    %v2698 = vsel %vm410, %v2686, -inf
    %2699 = vmax.xlane.f32.xlu0 %v2698
    %v2700 = vpop.xlane.xlu0 %2699
    %v2701 = vsel %vm410, %v2687, -inf
    %2702 = vmax.xlane.f32.xlu0 %v2701
    %v2703 = vpop.xlane.xlu0 %2702
    %v2704 = vsel %vm410, %v2688, -inf
    %2705 = vmax.xlane.f32.xlu0 %v2704
    %v2706 = vpop.xlane.xlu0 %2705
    %v2707 = vsel %vm410, %v2689, -inf
    %2708 = vmax.xlane.f32.xlu0 %v2707
    %v2709 = vpop.xlane.xlu0 %2708
    %v2710 = vsel %vm410, %v2690, -inf
    %2711 = vmax.xlane.f32.xlu0 %v2710
    %v2712 = vpop.xlane.xlu0 %2711
    %v2713 = vsel %vm410, %v2691, -inf
    %2714 = vmax.xlane.f32.xlu0 %v2713
    %v2715 = vpop.xlane.xlu0 %2714
    %v2716 = vsub.f32 %v2684, %v2694
    %v2717 = vsub.f32 %v2685, %v2697
    %v2718 = vsub.f32 %v2686, %v2700
    %v2719 = vsub.f32 %v2687, %v2703
    %v2720 = vsub.f32 %v2688, %v2706
    %v2721 = vsub.f32 %v2689, %v2709
    %v2722 = vsub.f32 %v2690, %v2712
    %v2723 = vsub.f32 %v2691, %v2715
    %v2724 = vmul.f32 %v2716, 1.442695
    %v2725 = vpow.pop %v2724
    %v2726 = vmul.f32 %v2717, 1.442695
    %v2727 = vpow.pop %v2726
    %v2728 = vmul.f32 %v2718, 1.442695
    %v2729 = vpow.pop %v2728
    %v2730 = vmul.f32 %v2719, 1.442695
    %v2731 = vpow.pop %v2730
    %v2732 = vmul.f32 %v2720, 1.442695
    %v2733 = vpow.pop %v2732
    %v2734 = vmul.f32 %v2721, 1.442695
    %v2735 = vpow.pop %v2734
    %v2736 = vmul.f32 %v2722, 1.442695
    %v2737 = vpow.pop %v2736
    %v2738 = vmul.f32 %v2723, 1.442695
    %v2739 = vpow.pop %v2738
    %v2740 = vsel %vm410, %v2725, 0.0
    %2741 = vadd.xlane.f32.xlu0 %v2740
    %v2742 = vpop.xlane.xlu0 %2741
    %v2743 = vsel %vm410, %v2727, 0.0
    %2744 = vadd.xlane.f32.xlu0 %v2743
    %v2745 = vpop.xlane.xlu0 %2744
    %v2746 = vsel %vm410, %v2729, 0.0
    %2747 = vadd.xlane.f32.xlu0 %v2746
    %v2748 = vpop.xlane.xlu0 %2747
    %v2749 = vsel %vm410, %v2731, 0.0
    %2750 = vadd.xlane.f32.xlu0 %v2749
    %v2751 = vpop.xlane.xlu0 %2750
    %v2752 = vsel %vm410, %v2733, 0.0
    %2753 = vadd.xlane.f32.xlu0 %v2752
    %v2754 = vpop.xlane.xlu0 %2753
    %v2755 = vsel %vm410, %v2735, 0.0
    %2756 = vadd.xlane.f32.xlu0 %v2755
    %v2757 = vpop.xlane.xlu0 %2756
    %v2758 = vsel %vm410, %v2737, 0.0
    %2759 = vadd.xlane.f32.xlu0 %v2758
    %v2760 = vpop.xlane.xlu0 %2759
    %v2761 = vsel %vm410, %v2739, 0.0
    %2762 = vadd.xlane.f32.xlu0 %v2761
    %v2763 = vpop.xlane.xlu0 %2762
    %v2764 = vrcp.pop %v2742
    %v2765 = vmul.f32 %v2725, %v2764
    %v2766 = vrcp.pop %v2745
    %v2767 = vmul.f32 %v2727, %v2766
    %v2768 = vrcp.pop %v2748
    %v2769 = vmul.f32 %v2729, %v2768
    %v2770 = vrcp.pop %v2751
    %v2771 = vmul.f32 %v2731, %v2770
    %v2772 = vrcp.pop %v2754
    %v2773 = vmul.f32 %v2733, %v2772
    %v2774 = vrcp.pop %v2757
    %v2775 = vmul.f32 %v2735, %v2774
    %v2776 = vrcp.pop %v2760
    %v2777 = vmul.f32 %v2737, %v2776
    %v2778 = vrcp.pop %v2763
    %v2779 = vmul.f32 %v2739, %v2778
    %v2781 = vsel %vm410, %v2765, 0
    %2783 = vmatprep.subr.mxu0 0.0
    %2784 = vmatpush1.msra.mxu0 %v334
    %2785 = vmatprep.subr.mxu0 0.0
    %2786 = vmatpush1.msra.mxu0 0.0
    %2787 = vmatprep.subr.mxu0 0.0
    %2788 = vmatpush1.msra.mxu0 0.0
    %2789 = vmatprep.subr.mxu0 0.0
    %2790 = vmatpush1.msra.mxu0 0.0
    %2791 = vmatprep.subr.mxu0 0.0
    %2792 = vmatpush1.msra.mxu0 0.0
    %2793 = vmatprep.subr.mxu0 0.0
    %2794 = vmatpush1.msra.mxu0 0.0
    %2795 = vmatprep.subr.mxu0 0.0
    %2796 = vmatpush1.msra.mxu0 0.0
    %2797 = vmatprep.subr.mxu0 0.0
    %2798 = vmatpush1.msra.mxu0 0.0
    %2799 = vmatprep.subr.mxu0 0.0
    %2800 = vmatpush1.msra.mxu0 0.0
    %2801 = vmatprep.subr.mxu0 0.0
    %2802 = vmatpush1.msra.mxu0 0.0
    %2803 = vmatprep.subr.mxu0 0.0
    %2804 = vmatpush1.msra.mxu0 0.0
    %2805 = vmatprep.subr.mxu0 0.0
    %2806 = vmatpush1.msra.mxu0 0.0
    %2807 = vmatprep.subr.mxu0 0.0
    %2808 = vmatpush1.msra.mxu0 0.0
    %2809 = vmatprep.subr.mxu0 0.0
    %2810 = vmatpush1.msra.mxu0 0.0
    %2811 = vmatprep.subr.mxu0 0.0
    %2812 = vmatpush1.msra.mxu0 0.0
    %2813 = vmatprep.subr.mxu0 0.0
    %2814 = vmatpush1.msra.mxu0 0.0
    %2815 = vmatprep.subr.mxu0 0.0
    %2816 = vmatpush1.msra.mxu0 0.0
    %2817 = vmatprep.subr.mxu0 0.0
    %2818 = vmatpush1.msra.mxu0 0.0
    %2819 = vmatprep.subr.mxu0 0.0
    %2820 = vmatpush1.msra.mxu0 0.0
    %2821 = vmatprep.subr.mxu0 0.0
    %2822 = vmatpush1.msra.mxu0 0.0
    %2823 = vmatprep.subr.mxu0 0.0
    %2824 = vmatpush1.msra.mxu0 0.0
    %2825 = vmatprep.subr.mxu0 0.0
    %2826 = vmatpush1.msra.mxu0 0.0
    %2827 = vmatprep.subr.mxu0 0.0
    %2828 = vmatpush1.msra.mxu0 0.0
    %2829 = vmatprep.subr.mxu0 0.0
    %2830 = vmatpush1.msra.mxu0 0.0
    %2831 = vmatprep.subr.mxu0 0.0
    %2832 = vmatpush1.msra.mxu0 0.0
    %2833 = vmatprep.subr.mxu0 0.0
    %2834 = vmatpush1.msra.mxu0 0.0
    %2835 = vmatprep.subr.mxu0 0.0
    %2836 = vmatpush1.msra.mxu0 0.0
    %2837 = vmatprep.subr.mxu0 0.0
    %2838 = vmatpush1.msra.mxu0 0.0
    %2839 = vmatprep.subr.mxu0 0.0
    %2840 = vmatpush1.msra.mxu0 0.0
    %2841 = vmatprep.subr.mxu0 0.0
    %2842 = vmatpush1.msra.mxu0 0.0
    %2843 = vmatprep.subr.mxu0 0.0
    %2844 = vmatpush1.msra.mxu0 0.0
    %2845 = vmatprep.subr.mxu0 0.0
    %2846 = vmatpush1.msra.mxu0 0.0
    %2847 = vmatprep.mubr.f32.mxu0 0.0
    %2848 = vmatmul.mubr.f32.gmra.mrb[0].mxu0 %v2781
    %v2849 = vpop.f32.mrb[0].mxu0
    %v2850 = vadd.f32 0.0, %v2849
    %v2851 = vpop.f32.mrb[0].mxu0
    %2852 = vdwg.mxu0
    %v2854 = vsel %vm410, %v2767, 0
    %2856 = vmatprep.subr.mxu0 0.0
    %2857 = vmatpush1.msra.mxu0 %v339
    %2858 = vmatprep.subr.mxu0 0.0
    %2859 = vmatpush1.msra.mxu0 0.0
    %2860 = vmatprep.subr.mxu0 0.0
    %2861 = vmatpush1.msra.mxu0 0.0
    %2862 = vmatprep.subr.mxu0 0.0
    %2863 = vmatpush1.msra.mxu0 0.0
    %2864 = vmatprep.subr.mxu0 0.0
    %2865 = vmatpush1.msra.mxu0 0.0
    %2866 = vmatprep.subr.mxu0 0.0
    %2867 = vmatpush1.msra.mxu0 0.0
    %2868 = vmatprep.subr.mxu0 0.0
    %2869 = vmatpush1.msra.mxu0 0.0
    %2870 = vmatprep.subr.mxu0 0.0
    %2871 = vmatpush1.msra.mxu0 0.0
    %2872 = vmatprep.subr.mxu0 0.0
    %2873 = vmatpush1.msra.mxu0 0.0
    %2874 = vmatprep.subr.mxu0 0.0
    %2875 = vmatpush1.msra.mxu0 0.0
    %2876 = vmatprep.subr.mxu0 0.0
    %2877 = vmatpush1.msra.mxu0 0.0
    %2878 = vmatprep.subr.mxu0 0.0
    %2879 = vmatpush1.msra.mxu0 0.0
    %2880 = vmatprep.subr.mxu0 0.0
    %2881 = vmatpush1.msra.mxu0 0.0
    %2882 = vmatprep.subr.mxu0 0.0
    %2883 = vmatpush1.msra.mxu0 0.0
    %2884 = vmatprep.subr.mxu0 0.0
    %2885 = vmatpush1.msra.mxu0 0.0
    %2886 = vmatprep.subr.mxu0 0.0
    %2887 = vmatpush1.msra.mxu0 0.0
    %2888 = vmatprep.subr.mxu0 0.0
    %2889 = vmatpush1.msra.mxu0 0.0
    %2890 = vmatprep.subr.mxu0 0.0
    %2891 = vmatpush1.msra.mxu0 0.0
    %2892 = vmatprep.subr.mxu0 0.0
    %2893 = vmatpush1.msra.mxu0 0.0
    %2894 = vmatprep.subr.mxu0 0.0
    %2895 = vmatpush1.msra.mxu0 0.0
    %2896 = vmatprep.subr.mxu0 0.0
    %2897 = vmatpush1.msra.mxu0 0.0
    %2898 = vmatprep.subr.mxu0 0.0
    %2899 = vmatpush1.msra.mxu0 0.0
    %2900 = vmatprep.subr.mxu0 0.0
    %2901 = vmatpush1.msra.mxu0 0.0
    %2902 = vmatprep.subr.mxu0 0.0
    %2903 = vmatpush1.msra.mxu0 0.0
    %2904 = vmatprep.subr.mxu0 0.0
    %2905 = vmatpush1.msra.mxu0 0.0
    %2906 = vmatprep.subr.mxu0 0.0
    %2907 = vmatpush1.msra.mxu0 0.0
    %2908 = vmatprep.subr.mxu0 0.0
    %2909 = vmatpush1.msra.mxu0 0.0
    %2910 = vmatprep.subr.mxu0 0.0
    %2911 = vmatpush1.msra.mxu0 0.0
    %2912 = vmatprep.subr.mxu0 0.0
    %2913 = vmatpush1.msra.mxu0 0.0
    %2914 = vmatprep.subr.mxu0 0.0
    %2915 = vmatpush1.msra.mxu0 0.0
    %2916 = vmatprep.subr.mxu0 0.0
    %2917 = vmatpush1.msra.mxu0 0.0
    %2918 = vmatprep.subr.mxu0 0.0
    %2919 = vmatpush1.msra.mxu0 0.0
    %2920 = vmatprep.mubr.f32.mxu0 0.0
    %2921 = vmatmul.mubr.f32.gmra.mrb[0].mxu0 %v2854
    %v2922 = vpop.f32.mrb[0].mxu0
    %v2923 = vadd.f32 0.0, %v2922
    %v2924 = vpop.f32.mrb[0].mxu0
    %2925 = vdwg.mxu0
    %v2927 = vsel %vm410, %v2769, 0
    %2929 = vmatprep.subr.mxu0 0.0
    %2930 = vmatpush1.msra.mxu0 %v373
    %2931 = vmatprep.subr.mxu0 0.0
    %2932 = vmatpush1.msra.mxu0 0.0
    %2933 = vmatprep.subr.mxu0 0.0
    %2934 = vmatpush1.msra.mxu0 0.0
    %2935 = vmatprep.subr.mxu0 0.0
    %2936 = vmatpush1.msra.mxu0 0.0
    %2937 = vmatprep.subr.mxu0 0.0
    %2938 = vmatpush1.msra.mxu0 0.0
    %2939 = vmatprep.subr.mxu0 0.0
    %2940 = vmatpush1.msra.mxu0 0.0
    %2941 = vmatprep.subr.mxu0 0.0
    %2942 = vmatpush1.msra.mxu0 0.0
    %2943 = vmatprep.subr.mxu0 0.0
    %2944 = vmatpush1.msra.mxu0 0.0
    %2945 = vmatprep.subr.mxu0 0.0
    %2946 = vmatpush1.msra.mxu0 0.0
    %2947 = vmatprep.subr.mxu0 0.0
    %2948 = vmatpush1.msra.mxu0 0.0
    %2949 = vmatprep.subr.mxu0 0.0
    %2950 = vmatpush1.msra.mxu0 0.0
    %2951 = vmatprep.subr.mxu0 0.0
    %2952 = vmatpush1.msra.mxu0 0.0
    %2953 = vmatprep.subr.mxu0 0.0
    %2954 = vmatpush1.msra.mxu0 0.0
    %2955 = vmatprep.subr.mxu0 0.0
    %2956 = vmatpush1.msra.mxu0 0.0
    %2957 = vmatprep.subr.mxu0 0.0
    %2958 = vmatpush1.msra.mxu0 0.0
    %2959 = vmatprep.subr.mxu0 0.0
    %2960 = vmatpush1.msra.mxu0 0.0
    %2961 = vmatprep.subr.mxu0 0.0
    %2962 = vmatpush1.msra.mxu0 0.0
    %2963 = vmatprep.subr.mxu0 0.0
    %2964 = vmatpush1.msra.mxu0 0.0
    %2965 = vmatprep.subr.mxu0 0.0
    %2966 = vmatpush1.msra.mxu0 0.0
    %2967 = vmatprep.subr.mxu0 0.0
    %2968 = vmatpush1.msra.mxu0 0.0
    %2969 = vmatprep.subr.mxu0 0.0
    %2970 = vmatpush1.msra.mxu0 0.0
    %2971 = vmatprep.subr.mxu0 0.0
    %2972 = vmatpush1.msra.mxu0 0.0
    %2973 = vmatprep.subr.mxu0 0.0
    %2974 = vmatpush1.msra.mxu0 0.0
    %2975 = vmatprep.subr.mxu0 0.0
    %2976 = vmatpush1.msra.mxu0 0.0
    %2977 = vmatprep.subr.mxu0 0.0
    %2978 = vmatpush1.msra.mxu0 0.0
    %2979 = vmatprep.subr.mxu0 0.0
    %2980 = vmatpush1.msra.mxu0 0.0
    %2981 = vmatprep.subr.mxu0 0.0
    %2982 = vmatpush1.msra.mxu0 0.0
    %2983 = vmatprep.subr.mxu0 0.0
    %2984 = vmatpush1.msra.mxu0 0.0
    %2985 = vmatprep.subr.mxu0 0.0
    %2986 = vmatpush1.msra.mxu0 0.0
    %2987 = vmatprep.subr.mxu0 0.0
    %2988 = vmatpush1.msra.mxu0 0.0
    %2989 = vmatprep.subr.mxu0 0.0
    %2990 = vmatpush1.msra.mxu0 0.0
    %2991 = vmatprep.subr.mxu0 0.0
    %2992 = vmatpush1.msra.mxu0 0.0
    %2993 = vmatprep.mubr.f32.mxu0 0.0
    %2994 = vmatmul.mubr.f32.gmra.mrb[0].mxu0 %v2927
    %v2995 = vpop.f32.mrb[0].mxu0
    %v2996 = vadd.f32 0.0, %v2995
    %v2997 = vpop.f32.mrb[0].mxu0
    %2998 = vdwg.mxu0
    %v3000 = vsel %vm410, %v2771, 0
    %3002 = vmatprep.subr.mxu0 0.0
    %3003 = vmatpush1.msra.mxu0 %v375
    %3004 = vmatprep.subr.mxu0 0.0
    %3005 = vmatpush1.msra.mxu0 0.0
    %3006 = vmatprep.subr.mxu0 0.0
    %3007 = vmatpush1.msra.mxu0 0.0
    %3008 = vmatprep.subr.mxu0 0.0
    %3009 = vmatpush1.msra.mxu0 0.0
    %3010 = vmatprep.subr.mxu0 0.0
    %3011 = vmatpush1.msra.mxu0 0.0
    %3012 = vmatprep.subr.mxu0 0.0
    %3013 = vmatpush1.msra.mxu0 0.0
    %3014 = vmatprep.subr.mxu0 0.0
    %3015 = vmatpush1.msra.mxu0 0.0
    %3016 = vmatprep.subr.mxu0 0.0
    %3017 = vmatpush1.msra.mxu0 0.0
    %3018 = vmatprep.subr.mxu0 0.0
    %3019 = vmatpush1.msra.mxu0 0.0
    %3020 = vmatprep.subr.mxu0 0.0
    %3021 = vmatpush1.msra.mxu0 0.0
    %3022 = vmatprep.subr.mxu0 0.0
    %3023 = vmatpush1.msra.mxu0 0.0
    %3024 = vmatprep.subr.mxu0 0.0
    %3025 = vmatpush1.msra.mxu0 0.0
    %3026 = vmatprep.subr.mxu0 0.0
    %3027 = vmatpush1.msra.mxu0 0.0
    %3028 = vmatprep.subr.mxu0 0.0
    %3029 = vmatpush1.msra.mxu0 0.0
    %3030 = vmatprep.subr.mxu0 0.0
    %3031 = vmatpush1.msra.mxu0 0.0
    %3032 = vmatprep.subr.mxu0 0.0
    %3033 = vmatpush1.msra.mxu0 0.0
    %3034 = vmatprep.subr.mxu0 0.0
    %3035 = vmatpush1.msra.mxu0 0.0
    %3036 = vmatprep.subr.mxu0 0.0
    %3037 = vmatpush1.msra.mxu0 0.0
    %3038 = vmatprep.subr.mxu0 0.0
    %3039 = vmatpush1.msra.mxu0 0.0
    %3040 = vmatprep.subr.mxu0 0.0
    %3041 = vmatpush1.msra.mxu0 0.0
    %3042 = vmatprep.subr.mxu0 0.0
    %3043 = vmatpush1.msra.mxu0 0.0
    %3044 = vmatprep.subr.mxu0 0.0
    %3045 = vmatpush1.msra.mxu0 0.0
    %3046 = vmatprep.subr.mxu0 0.0
    %3047 = vmatpush1.msra.mxu0 0.0
    %3048 = vmatprep.subr.mxu0 0.0
    %3049 = vmatpush1.msra.mxu0 0.0
    %3050 = vmatprep.subr.mxu0 0.0
    %3051 = vmatpush1.msra.mxu0 0.0
    %3052 = vmatprep.subr.mxu0 0.0
    %3053 = vmatpush1.msra.mxu0 0.0
    %3054 = vmatprep.subr.mxu0 0.0
    %3055 = vmatpush1.msra.mxu0 0.0
    %3056 = vmatprep.subr.mxu0 0.0
    %3057 = vmatpush1.msra.mxu0 0.0
    %3058 = vmatprep.subr.mxu0 0.0
    %3059 = vmatpush1.msra.mxu0 0.0
    %3060 = vmatprep.subr.mxu0 0.0
    %3061 = vmatpush1.msra.mxu0 0.0
    %3062 = vmatprep.subr.mxu0 0.0
    %3063 = vmatpush1.msra.mxu0 0.0
    %3064 = vmatprep.subr.mxu0 0.0
    %3065 = vmatpush1.msra.mxu0 0.0
    %3066 = vmatprep.mubr.f32.mxu0 0.0
    %3067 = vmatmul.mubr.f32.gmra.mrb[0].mxu0 %v3000
    %v3068 = vpop.f32.mrb[0].mxu0
    %v3069 = vadd.f32 0.0, %v3068
    %v3070 = vpop.f32.mrb[0].mxu0
    %3071 = vdwg.mxu0
    %v3073 = vsel %vm410, %v2773, 0
    %3075 = vmatprep.subr.mxu0 0.0
    %3076 = vmatpush1.msra.mxu0 %v379
    %3077 = vmatprep.subr.mxu0 0.0
    %3078 = vmatpush1.msra.mxu0 0.0
    %3079 = vmatprep.subr.mxu0 0.0
    %3080 = vmatpush1.msra.mxu0 0.0
    %3081 = vmatprep.subr.mxu0 0.0
    %3082 = vmatpush1.msra.mxu0 0.0
    %3083 = vmatprep.subr.mxu0 0.0
    %3084 = vmatpush1.msra.mxu0 0.0
    %3085 = vmatprep.subr.mxu0 0.0
    %3086 = vmatpush1.msra.mxu0 0.0
    %3087 = vmatprep.subr.mxu0 0.0
    %3088 = vmatpush1.msra.mxu0 0.0
    %3089 = vmatprep.subr.mxu0 0.0
    %3090 = vmatpush1.msra.mxu0 0.0
    %3091 = vmatprep.subr.mxu0 0.0
    %3092 = vmatpush1.msra.mxu0 0.0
    %3093 = vmatprep.subr.mxu0 0.0
    %3094 = vmatpush1.msra.mxu0 0.0
    %3095 = vmatprep.subr.mxu0 0.0
    %3096 = vmatpush1.msra.mxu0 0.0
    %3097 = vmatprep.subr.mxu0 0.0
    %3098 = vmatpush1.msra.mxu0 0.0
    %3099 = vmatprep.subr.mxu0 0.0
    %3100 = vmatpush1.msra.mxu0 0.0
    %3101 = vmatprep.subr.mxu0 0.0
    %3102 = vmatpush1.msra.mxu0 0.0
    %3103 = vmatprep.subr.mxu0 0.0
    %3104 = vmatpush1.msra.mxu0 0.0
    %3105 = vmatprep.subr.mxu0 0.0
    %3106 = vmatpush1.msra.mxu0 0.0
    %3107 = vmatprep.subr.mxu0 0.0
    %3108 = vmatpush1.msra.mxu0 0.0
    %3109 = vmatprep.subr.mxu0 0.0
    %3110 = vmatpush1.msra.mxu0 0.0
    %3111 = vmatprep.subr.mxu0 0.0
    %3112 = vmatpush1.msra.mxu0 0.0
    %3113 = vmatprep.subr.mxu0 0.0
    %3114 = vmatpush1.msra.mxu0 0.0
    %3115 = vmatprep.subr.mxu0 0.0
    %3116 = vmatpush1.msra.mxu0 0.0
    %3117 = vmatprep.subr.mxu0 0.0
    %3118 = vmatpush1.msra.mxu0 0.0
    %3119 = vmatprep.subr.mxu0 0.0
    %3120 = vmatpush1.msra.mxu0 0.0
    %3121 = vmatprep.subr.mxu0 0.0
    %3122 = vmatpush1.msra.mxu0 0.0
    %3123 = vmatprep.subr.mxu0 0.0
    %3124 = vmatpush1.msra.mxu0 0.0
    %3125 = vmatprep.subr.mxu0 0.0
    %3126 = vmatpush1.msra.mxu0 0.0
    %3127 = vmatprep.subr.mxu0 0.0
    %3128 = vmatpush1.msra.mxu0 0.0
    %3129 = vmatprep.subr.mxu0 0.0
    %3130 = vmatpush1.msra.mxu0 0.0
    %3131 = vmatprep.subr.mxu0 0.0
    %3132 = vmatpush1.msra.mxu0 0.0
    %3133 = vmatprep.subr.mxu0 0.0
    %3134 = vmatpush1.msra.mxu0 0.0
    %3135 = vmatprep.subr.mxu0 0.0
    %3136 = vmatpush1.msra.mxu0 0.0
    %3137 = vmatprep.subr.mxu0 0.0
    %3138 = vmatpush1.msra.mxu0 0.0
    %3139 = vmatprep.mubr.f32.mxu0 0.0
    %3140 = vmatmul.mubr.f32.gmra.mrb[0].mxu0 %v3073
    %v3141 = vpop.f32.mrb[0].mxu0
    %v3142 = vadd.f32 0.0, %v3141
    %v3143 = vpop.f32.mrb[0].mxu0
    %3144 = vdwg.mxu0
    %v3146 = vsel %vm410, %v2775, 0
    %3148 = vmatprep.subr.mxu0 0.0
    %3149 = vmatpush1.msra.mxu0 %v381
    %3150 = vmatprep.subr.mxu0 0.0
    %3151 = vmatpush1.msra.mxu0 0.0
    %3152 = vmatprep.subr.mxu0 0.0
    %3153 = vmatpush1.msra.mxu0 0.0
    %3154 = vmatprep.subr.mxu0 0.0
    %3155 = vmatpush1.msra.mxu0 0.0
    %3156 = vmatprep.subr.mxu0 0.0
    %3157 = vmatpush1.msra.mxu0 0.0
    %3158 = vmatprep.subr.mxu0 0.0
    %3159 = vmatpush1.msra.mxu0 0.0
    %3160 = vmatprep.subr.mxu0 0.0
    %3161 = vmatpush1.msra.mxu0 0.0
    %3162 = vmatprep.subr.mxu0 0.0
    %3163 = vmatpush1.msra.mxu0 0.0
    %3164 = vmatprep.subr.mxu0 0.0
    %3165 = vmatpush1.msra.mxu0 0.0
    %3166 = vmatprep.subr.mxu0 0.0
    %3167 = vmatpush1.msra.mxu0 0.0
    %3168 = vmatprep.subr.mxu0 0.0
    %3169 = vmatpush1.msra.mxu0 0.0
    %3170 = vmatprep.subr.mxu0 0.0
    %3171 = vmatpush1.msra.mxu0 0.0
    %3172 = vmatprep.subr.mxu0 0.0
    %3173 = vmatpush1.msra.mxu0 0.0
    %3174 = vmatprep.subr.mxu0 0.0
    %3175 = vmatpush1.msra.mxu0 0.0
    %3176 = vmatprep.subr.mxu0 0.0
    %3177 = vmatpush1.msra.mxu0 0.0
    %3178 = vmatprep.subr.mxu0 0.0
    %3179 = vmatpush1.msra.mxu0 0.0
    %3180 = vmatprep.subr.mxu0 0.0
    %3181 = vmatpush1.msra.mxu0 0.0
    %3182 = vmatprep.subr.mxu0 0.0
    %3183 = vmatpush1.msra.mxu0 0.0
    %3184 = vmatprep.subr.mxu0 0.0
    %3185 = vmatpush1.msra.mxu0 0.0
    %3186 = vmatprep.subr.mxu0 0.0
    %3187 = vmatpush1.msra.mxu0 0.0
    %3188 = vmatprep.subr.mxu0 0.0
    %3189 = vmatpush1.msra.mxu0 0.0
    %3190 = vmatprep.subr.mxu0 0.0
    %3191 = vmatpush1.msra.mxu0 0.0
    %3192 = vmatprep.subr.mxu0 0.0
    %3193 = vmatpush1.msra.mxu0 0.0
    %3194 = vmatprep.subr.mxu0 0.0
    %3195 = vmatpush1.msra.mxu0 0.0
    %3196 = vmatprep.subr.mxu0 0.0
    %3197 = vmatpush1.msra.mxu0 0.0
    %3198 = vmatprep.subr.mxu0 0.0
    %3199 = vmatpush1.msra.mxu0 0.0
    %3200 = vmatprep.subr.mxu0 0.0
    %3201 = vmatpush1.msra.mxu0 0.0
    %3202 = vmatprep.subr.mxu0 0.0
    %3203 = vmatpush1.msra.mxu0 0.0
    %3204 = vmatprep.subr.mxu0 0.0
    %3205 = vmatpush1.msra.mxu0 0.0
    %3206 = vmatprep.subr.mxu0 0.0
    %3207 = vmatpush1.msra.mxu0 0.0
    %3208 = vmatprep.subr.mxu0 0.0
    %3209 = vmatpush1.msra.mxu0 0.0
    %3210 = vmatprep.subr.mxu0 0.0
    %3211 = vmatpush1.msra.mxu0 0.0
    %3212 = vmatprep.mubr.f32.mxu0 0.0
    %3213 = vmatmul.mubr.f32.gmra.mrb[0].mxu0 %v3146
    %v3214 = vpop.f32.mrb[0].mxu0
    %v3215 = vadd.f32 0.0, %v3214
    %v3216 = vpop.f32.mrb[0].mxu0
    %3217 = vdwg.mxu0
    %v3219 = vsel %vm410, %v2777, 0
    %3221 = vmatprep.subr.mxu0 0.0
    %3222 = vmatpush1.msra.mxu0 %v385
    %3223 = vmatprep.subr.mxu0 0.0
    %3224 = vmatpush1.msra.mxu0 0.0
    %3225 = vmatprep.subr.mxu0 0.0
    %3226 = vmatpush1.msra.mxu0 0.0
    %3227 = vmatprep.subr.mxu0 0.0
    %3228 = vmatpush1.msra.mxu0 0.0
    %3229 = vmatprep.subr.mxu0 0.0
    %3230 = vmatpush1.msra.mxu0 0.0
    %3231 = vmatprep.subr.mxu0 0.0
    %3232 = vmatpush1.msra.mxu0 0.0
    %3233 = vmatprep.subr.mxu0 0.0
    %3234 = vmatpush1.msra.mxu0 0.0
    %3235 = vmatprep.subr.mxu0 0.0
    %3236 = vmatpush1.msra.mxu0 0.0
    %3237 = vmatprep.subr.mxu0 0.0
    %3238 = vmatpush1.msra.mxu0 0.0
    %3239 = vmatprep.subr.mxu0 0.0
    %3240 = vmatpush1.msra.mxu0 0.0
    %3241 = vmatprep.subr.mxu0 0.0
    %3242 = vmatpush1.msra.mxu0 0.0
    %3243 = vmatprep.subr.mxu0 0.0
    %3244 = vmatpush1.msra.mxu0 0.0
    %3245 = vmatprep.subr.mxu0 0.0
    %3246 = vmatpush1.msra.mxu0 0.0
    %3247 = vmatprep.subr.mxu0 0.0
    %3248 = vmatpush1.msra.mxu0 0.0
    %3249 = vmatprep.subr.mxu0 0.0
    %3250 = vmatpush1.msra.mxu0 0.0
    %3251 = vmatprep.subr.mxu0 0.0
    %3252 = vmatpush1.msra.mxu0 0.0
    %3253 = vmatprep.subr.mxu0 0.0
    %3254 = vmatpush1.msra.mxu0 0.0
    %3255 = vmatprep.subr.mxu0 0.0
    %3256 = vmatpush1.msra.mxu0 0.0
    %3257 = vmatprep.subr.mxu0 0.0
    %3258 = vmatpush1.msra.mxu0 0.0
    %3259 = vmatprep.subr.mxu0 0.0
    %3260 = vmatpush1.msra.mxu0 0.0
    %3261 = vmatprep.subr.mxu0 0.0
    %3262 = vmatpush1.msra.mxu0 0.0
    %3263 = vmatprep.subr.mxu0 0.0
    %3264 = vmatpush1.msra.mxu0 0.0
    %3265 = vmatprep.subr.mxu0 0.0
    %3266 = vmatpush1.msra.mxu0 0.0
    %3267 = vmatprep.subr.mxu0 0.0
    %3268 = vmatpush1.msra.mxu0 0.0
    %3269 = vmatprep.subr.mxu0 0.0
    %3270 = vmatpush1.msra.mxu0 0.0
    %3271 = vmatprep.subr.mxu0 0.0
    %3272 = vmatpush1.msra.mxu0 0.0
    %3273 = vmatprep.subr.mxu0 0.0
    %3274 = vmatpush1.msra.mxu0 0.0
    %3275 = vmatprep.subr.mxu0 0.0
    %3276 = vmatpush1.msra.mxu0 0.0
    %3277 = vmatprep.subr.mxu0 0.0
    %3278 = vmatpush1.msra.mxu0 0.0
    %3279 = vmatprep.subr.mxu0 0.0
    %3280 = vmatpush1.msra.mxu0 0.0
    %3281 = vmatprep.subr.mxu0 0.0
    %3282 = vmatpush1.msra.mxu0 0.0
    %3283 = vmatprep.subr.mxu0 0.0
    %3284 = vmatpush1.msra.mxu0 0.0
    %3285 = vmatprep.mubr.f32.mxu0 0.0
    %3286 = vmatmul.mubr.f32.gmra.mrb[0].mxu0 %v3219
    %v3287 = vpop.f32.mrb[0].mxu0
    %v3288 = vadd.f32 0.0, %v3287
    %v3289 = vpop.f32.mrb[0].mxu0
    %3290 = vdwg.mxu0
    %v3292 = vsel %vm410, %v2779, 0
    %3294 = vmatprep.subr.mxu0 0.0
    %3295 = vmatpush1.msra.mxu0 %v387
    %3296 = vmatprep.subr.mxu0 0.0
    %3297 = vmatpush1.msra.mxu0 0.0
    %3298 = vmatprep.subr.mxu0 0.0
    %3299 = vmatpush1.msra.mxu0 0.0
    %3300 = vmatprep.subr.mxu0 0.0
    %3301 = vmatpush1.msra.mxu0 0.0
    %3302 = vmatprep.subr.mxu0 0.0
    %3303 = vmatpush1.msra.mxu0 0.0
    %3304 = vmatprep.subr.mxu0 0.0
    %3305 = vmatpush1.msra.mxu0 0.0
    %3306 = vmatprep.subr.mxu0 0.0
    %3307 = vmatpush1.msra.mxu0 0.0
    %3308 = vmatprep.subr.mxu0 0.0
    %3309 = vmatpush1.msra.mxu0 0.0
    %3310 = vmatprep.subr.mxu0 0.0
    %3311 = vmatpush1.msra.mxu0 0.0
    %3312 = vmatprep.subr.mxu0 0.0
    %3313 = vmatpush1.msra.mxu0 0.0
    %3314 = vmatprep.subr.mxu0 0.0
    %3315 = vmatpush1.msra.mxu0 0.0
    %3316 = vmatprep.subr.mxu0 0.0
    %3317 = vmatpush1.msra.mxu0 0.0
    %3318 = vmatprep.subr.mxu0 0.0
    %3319 = vmatpush1.msra.mxu0 0.0
    %3320 = vmatprep.subr.mxu0 0.0
    %3321 = vmatpush1.msra.mxu0 0.0
    %3322 = vmatprep.subr.mxu0 0.0
    %3323 = vmatpush1.msra.mxu0 0.0
    %3324 = vmatprep.subr.mxu0 0.0
    %3325 = vmatpush1.msra.mxu0 0.0
    %3326 = vmatprep.subr.mxu0 0.0
    %3327 = vmatpush1.msra.mxu0 0.0
    %3328 = vmatprep.subr.mxu0 0.0
    %3329 = vmatpush1.msra.mxu0 0.0
    %3330 = vmatprep.subr.mxu0 0.0
    %3331 = vmatpush1.msra.mxu0 0.0
    %3332 = vmatprep.subr.mxu0 0.0
    %3333 = vmatpush1.msra.mxu0 0.0
    %3334 = vmatprep.subr.mxu0 0.0
    %3335 = vmatpush1.msra.mxu0 0.0
    %3336 = vmatprep.subr.mxu0 0.0
    %3337 = vmatpush1.msra.mxu0 0.0
    %3338 = vmatprep.subr.mxu0 0.0
    %3339 = vmatpush1.msra.mxu0 0.0
    %3340 = vmatprep.subr.mxu0 0.0
    %3341 = vmatpush1.msra.mxu0 0.0
    %3342 = vmatprep.subr.mxu0 0.0
    %3343 = vmatpush1.msra.mxu0 0.0
    %3344 = vmatprep.subr.mxu0 0.0
    %3345 = vmatpush1.msra.mxu0 0.0
    %3346 = vmatprep.subr.mxu0 0.0
    %3347 = vmatpush1.msra.mxu0 0.0
    %3348 = vmatprep.subr.mxu0 0.0
    %3349 = vmatpush1.msra.mxu0 0.0
    %3350 = vmatprep.subr.mxu0 0.0
    %3351 = vmatpush1.msra.mxu0 0.0
    %3352 = vmatprep.subr.mxu0 0.0
    %3353 = vmatpush1.msra.mxu0 0.0
    %3354 = vmatprep.subr.mxu0 0.0
    %3355 = vmatpush1.msra.mxu0 0.0
    %3356 = vmatprep.subr.mxu0 0.0
    %3357 = vmatpush1.msra.mxu0 0.0
    %3358 = vmatprep.mubr.f32.mxu0 0.0
    %3359 = vmatmul.mubr.f32.gmra.mrb[0].mxu0 %v3292
    %v3360 = vpop.f32.mrb[0].mxu0
    %v3361 = vadd.f32 0.0, %v3360
    %v3362 = vpop.f32.mrb[0].mxu0
    %3363 = vdwg.mxu0
    %3366 = vrot.lane.b32.xlu0 %v2996, 8
    %v3367 = vpop.permute.xlu0 %3366
    %3368 = vrot.lane.b32.xlu0 %v3069, 8
    %v3369 = vpop.permute.xlu0 %3368
    %3374 = vrot.lane.b32.xlu0 %v3142, 16
    %v3375 = vpop.permute.xlu0 %3374
    %3376 = vrot.lane.b32.xlu0 %v3215, 16
    %v3377 = vpop.permute.xlu0 %3376
    %3382 = vrot.lane.b32.xlu0 %v3288, 24
    %v3383 = vpop.permute.xlu0 %3382
    %3384 = vrot.lane.b32.xlu0 %v3361, 24
    %v3385 = vpop.permute.xlu0 %3384
    %v3388 = vsel %vm410, %v2850, %v3367
    %v3389 = vsel %vm410, %v2923, %v3369
    %vm3390 = vcmask 130048
    %v3391 = vsel %vm3390, %v3388, %v3375
    %v3392 = vsel %vm3390, %v3389, %v3377
    %vm3393 = vcmask 195584
    %v3394 = vsel %vm3393, %v3391, %v3383
    %v3395 = vsel %vm3393, %v3392, %v3385
    %v3397 = vsel %vm59, %v3394, 0
    %v3400 = vsel %vm59, %v3395, 0
    %3402 = vmatprep.subr.mxu0 0.0
    %3403 = vmatpush1.msra.mxu0 %v33
    %3404 = vmatprep.subr.mxu0 0.0
    %3405 = vmatpush1.msra.mxu0 %v34
    %3406 = vmatprep.subr.mxu0 0.0
    %3407 = vmatpush1.msra.mxu0 %v35
    %3408 = vmatprep.subr.mxu0 0.0
    %3409 = vmatpush1.msra.mxu0 %v36
    %3410 = vmatprep.subr.mxu0 0.0
    %3411 = vmatpush1.msra.mxu0 0.0
    %3412 = vmatprep.subr.mxu0 0.0
    %3413 = vmatpush1.msra.mxu0 0.0
    %3414 = vmatprep.subr.mxu0 0.0
    %3415 = vmatpush1.msra.mxu0 0.0
    %3416 = vmatprep.subr.mxu0 0.0
    %3417 = vmatpush1.msra.mxu0 0.0
    %3418 = vmatprep.subr.mxu0 0.0
    %3419 = vmatpush1.msra.mxu0 0.0
    %3420 = vmatprep.subr.mxu0 0.0
    %3421 = vmatpush1.msra.mxu0 0.0
    %3422 = vmatprep.subr.mxu0 0.0
    %3423 = vmatpush1.msra.mxu0 0.0
    %3424 = vmatprep.subr.mxu0 0.0
    %3425 = vmatpush1.msra.mxu0 0.0
    %3426 = vmatprep.subr.mxu0 0.0
    %3427 = vmatpush1.msra.mxu0 0.0
    %3428 = vmatprep.subr.mxu0 0.0
    %3429 = vmatpush1.msra.mxu0 0.0
    %3430 = vmatprep.subr.mxu0 0.0
    %3431 = vmatpush1.msra.mxu0 0.0
    %3432 = vmatprep.subr.mxu0 0.0
    %3433 = vmatpush1.msra.mxu0 0.0
    %3434 = vmatprep.subr.mxu0 0.0
    %3435 = vmatpush1.msra.mxu0 0.0
    %3436 = vmatprep.subr.mxu0 0.0
    %3437 = vmatpush1.msra.mxu0 0.0
    %3438 = vmatprep.subr.mxu0 0.0
    %3439 = vmatpush1.msra.mxu0 0.0
    %3440 = vmatprep.subr.mxu0 0.0
    %3441 = vmatpush1.msra.mxu0 0.0
    %3442 = vmatprep.subr.mxu0 0.0
    %3443 = vmatpush1.msra.mxu0 0.0
    %3444 = vmatprep.subr.mxu0 0.0
    %3445 = vmatpush1.msra.mxu0 0.0
    %3446 = vmatprep.subr.mxu0 0.0
    %3447 = vmatpush1.msra.mxu0 0.0
    %3448 = vmatprep.subr.mxu0 0.0
    %3449 = vmatpush1.msra.mxu0 0.0
    %3450 = vmatprep.subr.mxu0 0.0
    %3451 = vmatpush1.msra.mxu0 0.0
    %3452 = vmatprep.subr.mxu0 0.0
    %3453 = vmatpush1.msra.mxu0 0.0
    %3454 = vmatprep.subr.mxu0 0.0
    %3455 = vmatpush1.msra.mxu0 0.0
    %3456 = vmatprep.subr.mxu0 0.0
    %3457 = vmatpush1.msra.mxu0 0.0
    %3458 = vmatprep.subr.mxu0 0.0
    %3459 = vmatpush1.msra.mxu0 0.0
    %3460 = vmatprep.subr.mxu0 0.0
    %3461 = vmatpush1.msra.mxu0 0.0
    %3462 = vmatprep.subr.mxu0 0.0
    %3463 = vmatpush1.msra.mxu0 0.0
    %3464 = vmatprep.subr.mxu0 0.0
    %3465 = vmatpush1.msra.mxu0 0.0
    %3466 = vmatprep.mubr.f32.mxu0 0.0
    %3467 = vmatmul.mubr.f32.gmra.mrb[0].mxu0 %v3397
    %v3468 = vpop.f32.mrb[0].mxu0
    %v3469 = vadd.f32 0.0, %v3468
    %v3470 = vpop.f32.mrb[0].mxu0
    %3471 = vmatprep.mubr.f32.mxu0 0.0
    %3472 = vmatmul.mubr.f32.gmra.mrb[0].mxu0 %v3400
    %v3473 = vpop.f32.mrb[0].mxu0
    %v3474 = vadd.f32 0.0, %v3473
    %v3475 = vpop.f32.mrb[0].mxu0
    %3476 = vdwg.mxu0
    %v3477 = vadd.f32 %v57, %v3469
    %v3478 = vadd.f32 %v58, %v3474
    %v3479 = vlaneseq
    %v3480 = vshrl.u32 %v3479, 7
    %v3481 = vsub.s32 5, %v3480
    %v3482 = vrot.slane %v45, %v3481
    %v3483 = vadd.f32 %v3477, %v3482
    %v3484 = vadd.f32 %v3478, %v3482
    %v3485 = vsel %vm59, %v3483, 0.0
    %3486 = vadd.xlane.f32.xlu0 %v3485
    %v3487 = vpop.xlane.xlu0 %3486
    %v3488 = vsel %vm59, %v3484, 0.0
    %3489 = vadd.xlane.f32.xlu0 %v3488
    %v3490 = vpop.xlane.xlu0 %3489
    %v3491 = vmul.f32 %v3487, %v66
    %v3492 = vmul.f32 %v3490, %v66
    %v3493 = vsub.f32 %v3483, %v3491
    %v3494 = vsub.f32 %v3484, %v3492
    %v3495 = vmul.f32 %v3493, %v3493
    %v3496 = vmul.f32 %v3494, %v3494
    %v3497 = vsel %vm59, %v3495, 0.0
    %3498 = vadd.xlane.f32.xlu0 %v3497
    %v3499 = vpop.xlane.xlu0 %3498
    %v3500 = vsel %vm59, %v3496, 0.0
    %3501 = vadd.xlane.f32.xlu0 %v3500
    %v3502 = vpop.xlane.xlu0 %3501
    %v3503 = vmul.f32 %v3499, %v66
    %v3504 = vmul.f32 %v3502, %v66
    %v3505 = vadd.f32 %v3503, 1e-05
    %v3506 = vadd.f32 %v3504, 1e-05
    %v3507 = vrsqrt.pop %v3505
    %v3508 = vrsqrt.pop %v3506
    %v3509 = vmul.f32 %v3493, %v3507
    %v3510 = vmul.f32 %v3494, %v3508
    %v3511 = vlaneseq
    %v3512 = vshrl.u32 %v3511, 7
    %v3513 = vsub.s32 6, %v3512
    %v3514 = vrot.slane %v45, %v3513
    %v3515 = vmul.f32 %v3509, %v3514
    %v3516 = vmul.f32 %v3510, %v3514
    %v3517 = vlaneseq
    %v3518 = vshrl.u32 %v3517, 7
    %v3519 = vsub.s32 7, %v3518
    %v3520 = vrot.slane %v45, %v3519
    %v3521 = vadd.f32 %v3515, %v3520
    %v3522 = vadd.f32 %v3516, %v3520
    %v3523 = vlaneseq
    %v3524 = vshrl.u32 %v3523, 7
    %v3525 = vsub.s32 0, %v3524
    %v3526 = vrot.slane %v46, %v3525
    %v3528 = vsel %vm59, %v3521, 0
    %v3531 = vsel %vm59, %v3522, 0
    %3533 = vmatprep.subr.mxu0 0.0
    %3534 = vmatpush1.msra.mxu0 %v37
    %3535 = vmatprep.subr.mxu0 0.0
    %3536 = vmatpush1.msra.mxu0 %v38
    %3537 = vmatprep.subr.mxu0 0.0
    %3538 = vmatpush1.msra.mxu0 %v39
    %3539 = vmatprep.subr.mxu0 0.0
    %3540 = vmatpush1.msra.mxu0 %v40
    %3541 = vmatprep.subr.mxu0 0.0
    %3542 = vmatpush1.msra.mxu0 0.0
    %3543 = vmatprep.subr.mxu0 0.0
    %3544 = vmatpush1.msra.mxu0 0.0
    %3545 = vmatprep.subr.mxu0 0.0
    %3546 = vmatpush1.msra.mxu0 0.0
    %3547 = vmatprep.subr.mxu0 0.0
    %3548 = vmatpush1.msra.mxu0 0.0
    %3549 = vmatprep.subr.mxu0 0.0
    %3550 = vmatpush1.msra.mxu0 0.0
    %3551 = vmatprep.subr.mxu0 0.0
    %3552 = vmatpush1.msra.mxu0 0.0
    %3553 = vmatprep.subr.mxu0 0.0
    %3554 = vmatpush1.msra.mxu0 0.0
    %3555 = vmatprep.subr.mxu0 0.0
    %3556 = vmatpush1.msra.mxu0 0.0
    %3557 = vmatprep.subr.mxu0 0.0
    %3558 = vmatpush1.msra.mxu0 0.0
    %3559 = vmatprep.subr.mxu0 0.0
    %3560 = vmatpush1.msra.mxu0 0.0
    %3561 = vmatprep.subr.mxu0 0.0
    %3562 = vmatpush1.msra.mxu0 0.0
    %3563 = vmatprep.subr.mxu0 0.0
    %3564 = vmatpush1.msra.mxu0 0.0
    %3565 = vmatprep.subr.mxu0 0.0
    %3566 = vmatpush1.msra.mxu0 0.0
    %3567 = vmatprep.subr.mxu0 0.0
    %3568 = vmatpush1.msra.mxu0 0.0
    %3569 = vmatprep.subr.mxu0 0.0
    %3570 = vmatpush1.msra.mxu0 0.0
    %3571 = vmatprep.subr.mxu0 0.0
    %3572 = vmatpush1.msra.mxu0 0.0
    %3573 = vmatprep.subr.mxu0 0.0
    %3574 = vmatpush1.msra.mxu0 0.0
    %3575 = vmatprep.subr.mxu0 0.0
    %3576 = vmatpush1.msra.mxu0 0.0
    %3577 = vmatprep.subr.mxu0 0.0
    %3578 = vmatpush1.msra.mxu0 0.0
    %3579 = vmatprep.subr.mxu0 0.0
    %3580 = vmatpush1.msra.mxu0 0.0
    %3581 = vmatprep.subr.mxu0 0.0
    %3582 = vmatpush1.msra.mxu0 0.0
    %3583 = vmatprep.subr.mxu0 0.0
    %3584 = vmatpush1.msra.mxu0 0.0
    %3585 = vmatprep.subr.mxu0 0.0
    %3586 = vmatpush1.msra.mxu0 0.0
    %3587 = vmatprep.subr.mxu0 0.0
    %3588 = vmatpush1.msra.mxu0 0.0
    %3589 = vmatprep.subr.mxu0 0.0
    %3590 = vmatpush1.msra.mxu0 0.0
    %3591 = vmatprep.subr.mxu0 0.0
    %3592 = vmatpush1.msra.mxu0 0.0
    %3593 = vmatprep.subr.mxu0 0.0
    %3594 = vmatpush1.msra.mxu0 0.0
    %3595 = vmatprep.subr.mxu0 0.0
    %3596 = vmatpush1.msra.mxu0 0.0
    %3597 = vmatprep.mubr.f32.mxu0 0.0
    %3598 = vmatmul.mubr.f32.gmra.mrb[0].mxu0 %v3528
    %v3599 = vpop.f32.mrb[0].mxu0
    %v3600 = vadd.f32 %v3526, %v3599
    %v3601 = vpop.f32.mrb[0].mxu0
    %3602 = vmatprep.mubr.f32.mxu0 0.0
    %3603 = vmatmul.mubr.f32.gmra.mrb[0].mxu0 %v3531
    %v3604 = vpop.f32.mrb[0].mxu0
    %v3605 = vadd.f32 %v3526, %v3604
    %v3606 = vpop.f32.mrb[0].mxu0
    %3607 = vdwg.mxu0
    %v3608 = vxor.u32 %v3600, 2147483648
    %v3609 = vxor.u32 %v3605, 2147483648
    %v3610 = vmul.f32 %v3608, 1.442695
    %v3611 = vpow.pop %v3610
    %v3612 = vmul.f32 %v3609, 1.442695
    %v3613 = vpow.pop %v3612
    %v3614 = vadd.f32 %v3611, 1.0
    %v3615 = vadd.f32 %v3613, 1.0
    %v3616 = vrcp.pop %v3614
    %v3617 = vmul.f32 1.0, %v3616
    %v3618 = vrcp.pop %v3615
    %v3619 = vmul.f32 1.0, %v3618
    %v3620 = vmul.f32 %v3600, %v3617
    %v3621 = vmul.f32 %v3605, %v3619
    %v3622 = vlaneseq
    %v3623 = vshrl.u32 %v3622, 7
    %v3624 = vsub.s32 1, %v3623
    %v3625 = vrot.slane %v46, %v3624
    %v3627 = vsel %vm59, %v3620, 0
    %v3630 = vsel %vm59, %v3621, 0
    %3632 = vmatprep.subr.mxu0 0.0
    %3633 = vmatpush1.msra.mxu0 %v41
    %3634 = vmatprep.subr.mxu0 0.0
    %3635 = vmatpush1.msra.mxu0 %v42
    %3636 = vmatprep.subr.mxu0 0.0
    %3637 = vmatpush1.msra.mxu0 %v43
    %3638 = vmatprep.subr.mxu0 0.0
    %3639 = vmatpush1.msra.mxu0 %v44
    %3640 = vmatprep.subr.mxu0 0.0
    %3641 = vmatpush1.msra.mxu0 0.0
    %3642 = vmatprep.subr.mxu0 0.0
    %3643 = vmatpush1.msra.mxu0 0.0
    %3644 = vmatprep.subr.mxu0 0.0
    %3645 = vmatpush1.msra.mxu0 0.0
    %3646 = vmatprep.subr.mxu0 0.0
    %3647 = vmatpush1.msra.mxu0 0.0
    %3648 = vmatprep.subr.mxu0 0.0
    %3649 = vmatpush1.msra.mxu0 0.0
    %3650 = vmatprep.subr.mxu0 0.0
    %3651 = vmatpush1.msra.mxu0 0.0
    %3652 = vmatprep.subr.mxu0 0.0
    %3653 = vmatpush1.msra.mxu0 0.0
    %3654 = vmatprep.subr.mxu0 0.0
    %3655 = vmatpush1.msra.mxu0 0.0
    %3656 = vmatprep.subr.mxu0 0.0
    %3657 = vmatpush1.msra.mxu0 0.0
    %3658 = vmatprep.subr.mxu0 0.0
    %3659 = vmatpush1.msra.mxu0 0.0
    %3660 = vmatprep.subr.mxu0 0.0
    %3661 = vmatpush1.msra.mxu0 0.0
    %3662 = vmatprep.subr.mxu0 0.0
    %3663 = vmatpush1.msra.mxu0 0.0
    %3664 = vmatprep.subr.mxu0 0.0
    %3665 = vmatpush1.msra.mxu0 0.0
    %3666 = vmatprep.subr.mxu0 0.0
    %3667 = vmatpush1.msra.mxu0 0.0
    %3668 = vmatprep.subr.mxu0 0.0
    %3669 = vmatpush1.msra.mxu0 0.0
    %3670 = vmatprep.subr.mxu0 0.0
    %3671 = vmatpush1.msra.mxu0 0.0
    %3672 = vmatprep.subr.mxu0 0.0
    %3673 = vmatpush1.msra.mxu0 0.0
    %3674 = vmatprep.subr.mxu0 0.0
    %3675 = vmatpush1.msra.mxu0 0.0
    %3676 = vmatprep.subr.mxu0 0.0
    %3677 = vmatpush1.msra.mxu0 0.0
    %3678 = vmatprep.subr.mxu0 0.0
    %3679 = vmatpush1.msra.mxu0 0.0
    %3680 = vmatprep.subr.mxu0 0.0
    %3681 = vmatpush1.msra.mxu0 0.0
    %3682 = vmatprep.subr.mxu0 0.0
    %3683 = vmatpush1.msra.mxu0 0.0
    %3684 = vmatprep.subr.mxu0 0.0
    %3685 = vmatpush1.msra.mxu0 0.0
    %3686 = vmatprep.subr.mxu0 0.0
    %3687 = vmatpush1.msra.mxu0 0.0
    %3688 = vmatprep.subr.mxu0 0.0
    %3689 = vmatpush1.msra.mxu0 0.0
    %3690 = vmatprep.subr.mxu0 0.0
    %3691 = vmatpush1.msra.mxu0 0.0
    %3692 = vmatprep.subr.mxu0 0.0
    %3693 = vmatpush1.msra.mxu0 0.0
    %3694 = vmatprep.subr.mxu0 0.0
    %3695 = vmatpush1.msra.mxu0 0.0
    %3696 = vmatprep.mubr.f32.mxu0 0.0
    %3697 = vmatmul.mubr.f32.gmra.mrb[0].mxu0 %v3627
    %v3698 = vpop.f32.mrb[0].mxu0
    %v3699 = vadd.f32 %v3625, %v3698
    %v3700 = vpop.f32.mrb[0].mxu0
    %3701 = vmatprep.mubr.f32.mxu0 0.0
    %3702 = vmatmul.mubr.f32.gmra.mrb[0].mxu0 %v3630
    %v3703 = vpop.f32.mrb[0].mxu0
    %v3704 = vadd.f32 %v3625, %v3703
    %v3705 = vpop.f32.mrb[0].mxu0
    %3706 = vdwg.mxu0
    %v3707 = vadd.f32 %v3483, %v3699
    %v3708 = vadd.f32 %v3484, %v3704
    %3709 = vst.msk [vmem:[#allocation2] sm:$0xff] %vm59, %v3707
    %3710 = vst.msk [vmem:[#allocation2 + $0x8] sm:$0xff] %vm59, %v3708
    // Predicated region
    $region22: #{tpu_custom_call.1} parent=1 // pred_check
      _
    $region23: #{tpu_custom_call.1} parent=1 // pred_check_branch
      %3712 = sbr.rel (0) target = $region25
    $region24: #{tpu_custom_call.1} parent=1 // pred_region
      %s3714 = ssub.s32 256, 256
      %3715 = vsyncadd [#allocation3], %s3714
      %s3716 = sshll.u32 [#allocation2], 4
      %s3717 = int_to_ptr.vmem [resolvable:$true] %s3716
      %3722 = dma.vmem_to_hbm [thread:$0]  %s3717, 256, %s5, [#allocation3], 128, 128, 8
    $region25: #{tpu_custom_call.1} parent=1 // pred_fallthru
      _
    // Predicated region
    $region26: #{tpu_custom_call.1} parent=1 // pred_check
      _
    $region27: #{tpu_custom_call.1} parent=1 // pred_check_branch
      %3724 = sbr.rel (0) target = $region29
    $region28: #{tpu_custom_call.1} parent=1 // pred_region
      %3725 = dma.done [#allocation3], 256
    $region29: #{tpu_custom_call.1} parent=1 // pred_fallthru
      _
    %3726 = vsyncpa [#allocation3], 1

</llo_original>
